<compile_context>
chip_gen: v7x
topology: tpu7x:2x2x1
jax: 0.10.0
libtpu: 0.0.40
codegen_flags: <defaults>
</compile_context>

<pallas_src>
import functools
import math

import jax
import jax.numpy as jnp
from jax import lax
from jax.experimental import pallas as pl
from jax.experimental.pallas import tpu as pltpu


# ----------------------------- config ---------------------------------------
B = 2            # batch
L = 8            # sequence length
H = 32           # hidden size (small synthetic BERT)
NH = 4           # attention heads
DH = H // NH     # head dim
I = 4 * H        # FFN intermediate size (=128)
V = 100          # vocab size
TV = 2           # token-type vocab size
C = 2            # num_classes
LANE = 128       # lane-dense padding width (>= I and >= C)
EMB_ROWS = 128   # word(100) | pos(8) | type(2) rows, zero-padded to 128
assert I <= LANE and C <= LANE and V + L + TV <= EMB_ROWS


# --------------------------- kernel helpers ----------------------------------
def _layer_norm(x, g, b, eps=1e-12):
    mu = jnp.mean(x, axis=-1, keepdims=True)
    var = jnp.mean((x - mu) ** 2, axis=-1, keepdims=True)
    return (x - mu) * lax.rsqrt(var + eps) * g + b


def _gelu(x):
    # TODO(synk): PyTorch nn.GELU default is the erf form; tanh approx used here.
    c = math.sqrt(2.0 / math.pi)
    return 0.5 * x * (1.0 + jnp.tanh(c * (x + 0.044715 * x * x * x)))


# ------------------------------ kernel ---------------------------------------
def fused_bert_classifier_kernel(
    # VMEM inputs
    idx_ref,     # [B*L, 5] int32: [tok_row, pos_row, type_row, key_start, key_end]
    emb_ref,     # [EMB_ROWS, H]  bf16  (word | pos | type rows, zero padded)
    wqkv_ref,    # [3, NH, H, DH] bf16  (per-head Q/K/V weights)
    bqkv_ref,    # [3, NH, 1, DH] f32   (per-head Q/K/V biases)
    wo_ref,      # [NH, DH, H]    bf16  (per-head output-projection rows)
    w1_ref,      # [H, I]         bf16
    w2_ref,      # [I, H]         bf16
    wp_ref,      # [H, H]         bf16
    wc_ref,      # [H, LANE]      bf16  (classifier, zero-padded columns)
    bias_ref,    # [11, LANE]     f32   (biases / LayerNorm params)
    # output
    out_ref,     # [B, LANE]      f32
    *, num_heads,
):
    bl = idx_ref.shape[0]              # B*L
    hid = w1_ref.shape[0]
    inter = w1_ref.shape[1]
    batch = out_ref.shape[0]
    seq = bl // batch
    dh = hid // num_heads
    f32 = jnp.float32
    mmdt = emb_ref.dtype               # bf16 matmul-operand dtype

    def brow(r, n):
        return bias_ref[r:r + 1, 0:n]  # [1, n]

    idx = idx_ref[...]                 # [bl, 5] int32

    # ---- embedding gather as ONE multi-hot MXU matmul (word + pos + type) ----
    col = lax.broadcasted_iota(jnp.int32, (bl, emb_ref.shape[0]), 1)      # [bl, 128]
    multi_hot = ((col == idx[:, 0:1]) | (col == idx[:, 1:2]) | (col == idx[:, 2:3]))
    mh = jnp.where(multi_hot, 1.0, 0.0).astype(mmdt)
    x = jnp.dot(mh, emb_ref[...], preferred_element_type=f32)             # [bl, H]
    x = _layer_norm(x, brow(0, hid), brow(1, hid))

    # ---- attention bias: key j valid for query row iff j in [start, end) ----
    ci = lax.broadcasted_iota(jnp.int32, (bl, bl), 1)
    valid = jnp.logical_and(ci >= idx[:, 3:4], ci < idx[:, 4:5])
    attn_bias = jnp.where(valid, 0.0, -10000.0)                            # [bl, bl]

    # ---- multi-head self-attention: per-head 2-D matmuls, accumulated O-proj ----
    x_mm = x.astype(mmdt)
    scale = 1.0 / math.sqrt(dh)
    attn_out = jnp.zeros((bl, hid), f32)
    for h in range(num_heads):
        q_h = jnp.dot(x_mm, wqkv_ref[0, h], preferred_element_type=f32) + bqkv_ref[0, h]
        k_h = jnp.dot(x_mm, wqkv_ref[1, h], preferred_element_type=f32) + bqkv_ref[1, h]
        v_h = jnp.dot(x_mm, wqkv_ref[2, h], preferred_element_type=f32) + bqkv_ref[2, h]
        s = jnp.dot(q_h, k_h.T, preferred_element_type=f32) * scale + attn_bias
        m = jnp.max(s, axis=-1, keepdims=True)
        p = jnp.exp(s - m)
        p = p * pl.reciprocal(jnp.sum(p, axis=-1, keepdims=True), approx=True)
        ctx_h = jnp.dot(p, v_h, preferred_element_type=f32)                # [bl, dh]
        attn_out = attn_out + jnp.dot(ctx_h.astype(mmdt), wo_ref[h],
                                      preferred_element_type=f32)          # [bl, H]
    attn_out = attn_out + brow(2, hid)

    h1 = _layer_norm(x + attn_out, brow(3, hid), brow(4, hid))

    # ---- feed-forward ----
    ff = _gelu(jnp.dot(h1.astype(mmdt), w1_ref[...], preferred_element_type=f32)
               + brow(5, inter))
    ff = jnp.dot(ff.astype(mmdt), w2_ref[...], preferred_element_type=f32) + brow(6, hid)
    h2 = _layer_norm(h1 + ff, brow(7, hid), brow(8, hid))

    # ---- BERT pooler on each example's [CLS] token ----
    # one-hot selection matmul (rows b*seq) replaces per-batch slices + concat
    cls_col = lax.broadcasted_iota(jnp.int32, (batch, bl), 1)
    cls_row = lax.broadcasted_iota(jnp.int32, (batch, bl), 0)
    cls_sel = jnp.where(cls_col == cls_row * seq, 1.0, 0.0)                # [B, bl] f32
    cls = jnp.dot(cls_sel, h2, preferred_element_type=f32)                 # [B, H]
    pooled = jnp.tanh(jnp.dot(cls.astype(mmdt), wp_ref[...],
                              preferred_element_type=f32) + brow(9, hid))

    # TODO(synk): dropout (dr_rate) omitted — eval-mode dropout is identity.

    # classifier Linear(hidden -> num_classes), lane-dense padded to LANE columns
    logits = jnp.dot(pooled.astype(mmdt), wc_ref[...],
                     preferred_element_type=f32) + bias_ref[10:11, :]      # [B, LANE]
    out_ref[...] = logits


# ------------------------------ packing ---------------------------------------
def pack_params(params):
    """Pack raw parameter tensors into bf16 weight slabs + one f32 bias slab."""
    wdt = jnp.bfloat16

    def split_cols(w):   # [H, H] -> [NH, H, DH]   (per-head output columns)
        return jnp.stack([w[:, h * DH:(h + 1) * DH] for h in range(NH)], axis=0)

    def split_rows(w):   # [H, H] -> [NH, DH, H]   (per-head input rows of W_o)
        return jnp.stack([w[h * DH:(h + 1) * DH, :] for h in range(NH)], axis=0)

    def split_bias(b):   # [1, H] -> [NH, 1, DH]
        return jnp.stack([b[:, h * DH:(h + 1) * DH] for h in range(NH)], axis=0)

    def pad_row(v, width=LANE):
        v = jnp.asarray(v, jnp.float32).reshape(1, -1)
        return jnp.pad(v, ((0, 0), (0, width - v.shape[1])))

    emb = jnp.concatenate(
        [params["word_emb"], params["pos_emb"], params["type_emb"]], axis=0)
    emb = jnp.pad(emb, ((0, EMB_ROWS - emb.shape[0]), (0, 0)))

    return {
        "emb": emb.astype(wdt),                                             # [128, H]
        "w_qkv_h": jnp.stack([split_cols(params["wq"]),
                              split_cols(params["wk"]),
                              split_cols(params["wv"])], axis=0).astype(wdt),   # [3,NH,H,DH]
        "b_qkv_h": jnp.stack([split_bias(params["bq"]),
                              split_bias(params["bk"]),
                              split_bias(params["bv"])],
                             axis=0).astype(jnp.float32),                   # [3,NH,1,DH]
        "w_o_h": split_rows(params["wo"]).astype(wdt),                      # [NH,DH,H]
        "w_ffn1": params["w1"].astype(wdt),
        "w_ffn2": params["w2"].astype(wdt),
        "w_pool": params["wp"].astype(wdt),
        "w_cls": jnp.pad(params["wc"],
                         ((0, 0), (0, LANE - params["wc"].shape[1]))).astype(wdt),
        "bias_slab": jnp.concatenate([
            pad_row(params["ln_e_g"]), pad_row(params["ln_e_b"]),           # 0,1
            pad_row(params["bo"]),                                          # 2
            pad_row(params["ln1_g"]), pad_row(params["ln1_b"]),             # 3,4
            pad_row(params["b1"]), pad_row(params["b2"]),                   # 5,6
            pad_row(params["ln2_g"]), pad_row(params["ln2_b"]),             # 7,8
            pad_row(params["bp"]), pad_row(params["bc"]),                   # 9,10
        ], axis=0),                                                         # [11, LANE] f32
    }


# ------------------------------ wrapper ---------------------------------------
def bert_classifier_forward(packed, token_ids, valid_length, segment_ids):
    batch, seq = token_ids.shape
    bl = batch * seq
    hid = packed["w_ffn1"].shape[0]
    inter = packed["w_ffn1"].shape[1]

    # integer index prep (trivial, outside the kernel):
    #   [token row, V + position row, V + L + type row, key window start, key window end]
    tok = token_ids.reshape(bl, 1).astype(jnp.int32)
    pos = (V + jnp.tile(jnp.arange(seq, dtype=jnp.int32), batch)).reshape(bl, 1)
    typ = (V + seq + segment_ids.reshape(bl).astype(jnp.int32)).reshape(bl, 1)
    start = jnp.repeat(jnp.arange(batch, dtype=jnp.int32) * seq, seq).reshape(bl, 1)
    end = start + jnp.repeat(valid_length.astype(jnp.int32), seq).reshape(bl, 1)
    idx = jnp.concatenate([tok, pos, typ, start, end], axis=1)              # [bl, 5]

    args = (idx, packed["emb"], packed["w_qkv_h"], packed["b_qkv_h"], packed["w_o_h"],
            packed["w_ffn1"], packed["w_ffn2"], packed["w_pool"], packed["w_cls"],
            packed["bias_slab"])

    # advisory cost estimate (free scheduling hint)
    flops = 2 * (bl * EMB_ROWS * hid
                 + 3 * NH * bl * hid * DH
                 + 2 * NH * bl * bl * DH
                 + NH * bl * DH * hid
                 + bl * hid * inter + bl * inter * hid
                 + batch * bl * hid
                 + batch * hid * hid
                 + batch * hid * LANE)
    transcendentals = NH * bl * bl + bl * inter + batch * hid
    bytes_accessed = int(sum(a.size * a.dtype.itemsize for a in args)
                         + batch * LANE * 4)

    vmem = pl.BlockSpec(memory_space=pltpu.MemorySpace.VMEM)
    out = pl.pallas_call(
        functools.partial(fused_bert_classifier_kernel, num_heads=NH),
        out_shape=jax.ShapeDtypeStruct((batch, LANE), jnp.float32),
        in_specs=[vmem] * len(args),
        out_specs=vmem,
        cost_estimate=pl.CostEstimate(flops=int(flops),
                                      transcendentals=int(transcendentals),
                                      bytes_accessed=bytes_accessed),
    )(*args)
    return out[:, :C]                                                       # drop lane padding


# --------------------------- parameter init -----------------------------------
def init_params(key):
    keys = jax.random.split(key, 16)
    s = 0.02

    def nrm(k, shape):
        return (s * jax.random.normal(k, shape)).astype(jnp.float32)

    return {
        "word_emb": nrm(keys[0], (V, H)),
        "pos_emb":  nrm(keys[1], (L, H)),
        "type_emb": nrm(keys[2], (TV, H)),
        "ln_e_g": jnp.ones((1, H), jnp.float32),
        "ln_e_b": jnp.zeros((1, H), jnp.float32),
        "wq": nrm(keys[3], (H, H)), "bq": jnp.zeros((1, H), jnp.float32),
        "wk": nrm(keys[4], (H, H)), "bk": jnp.zeros((1, H), jnp.float32),
        "wv": nrm(keys[5], (H, H)), "bv": jnp.zeros((1, H), jnp.float32),
        "wo": nrm(keys[6], (H, H)), "bo": jnp.zeros((1, H), jnp.float32),
        "ln1_g": jnp.ones((1, H), jnp.float32),
        "ln1_b": jnp.zeros((1, H), jnp.float32),
        "w1": nrm(keys[7], (H, I)), "b1": jnp.zeros((1, I), jnp.float32),
        "w2": nrm(keys[8], (I, H)), "b2": jnp.zeros((1, H), jnp.float32),
        "ln2_g": jnp.ones((1, H), jnp.float32),
        "ln2_b": jnp.zeros((1, H), jnp.float32),
        "wp": nrm(keys[9], (H, H)), "bp": jnp.zeros((1, H), jnp.float32),
        "wc": nrm(keys[10], (H, C)), "bc": jnp.zeros((1, C), jnp.float32),
    }


# ------------------------------- main -----------------------------------------
if __name__ == "__main__":
    key = jax.random.PRNGKey(0)
    k_tok, k_seg, k_par = jax.random.split(key, 3)

    token_ids = jax.random.randint(k_tok, (B, L), 0, V, dtype=jnp.int32)
    segment_ids = jax.random.randint(k_seg, (B, L), 0, TV, dtype=jnp.int32)
    valid_length = jnp.array([5, L], dtype=jnp.int32)

    params = init_params(k_par)
    packed = pack_params(params)

    logits = bert_classifier_forward(packed, token_ids, valid_length, segment_ids)
    logits = jax.block_until_ready(logits)

    assert logits.shape == (B, C)
    assert bool(jnp.all(jnp.isfinite(logits)))
    print("KERNEL_OK")
</pallas_src>

<mosaic_0001>
module attributes {stable_mosaic.version = 11 : i64} {
  func.func @fused_bert_classifier_kernel(%arg0: memref<16x5xi32, #tpu.memory_space<vmem>>, %arg1: memref<128x32xbf16, #tpu.memory_space<vmem>>, %arg2: memref<3x4x32x8xbf16, #tpu.memory_space<vmem>>, %arg3: memref<3x4x1x8xf32, #tpu.memory_space<vmem>>, %arg4: memref<4x8x32xbf16, #tpu.memory_space<vmem>>, %arg5: memref<32x128xbf16, #tpu.memory_space<vmem>>, %arg6: memref<128x32xbf16, #tpu.memory_space<vmem>>, %arg7: memref<32x32xbf16, #tpu.memory_space<vmem>>, %arg8: memref<32x128xbf16, #tpu.memory_space<vmem>>, %arg9: memref<11x128xf32, #tpu.memory_space<vmem>>, %arg10: memref<2x128xf32, #tpu.memory_space<vmem>>) attributes {dimension_semantics = [], scalar_prefetch = 0 : i64, scratch_operands = 0 : i64, tpu.core_type = #tpu.core_type<tc>} {
    %c0 = arith.constant 0 : index
    %c0_0 = arith.constant 0 : index
    %0 = vector.load %arg0[%c0, %c0_0] : memref<16x5xi32, #tpu.memory_space<vmem>>, vector<16x5xi32>
    %1 = tpu.iota {dimensions = array<i32: 1>} : vector<16x128xi32>
    %2 = vector.extract_strided_slice %0 {offsets = [0, 0], sizes = [16, 1], strides = [1, 1]} : vector<16x5xi32> to vector<16x1xi32>
    %3 = vector.broadcast %2 : vector<16x1xi32> to vector<16x128xi32>
    %4 = arith.cmpi eq, %1, %3 : vector<16x128xi32>
    %5 = vector.extract_strided_slice %0 {offsets = [0, 1], sizes = [16, 1], strides = [1, 1]} : vector<16x5xi32> to vector<16x1xi32>
    %6 = vector.broadcast %5 : vector<16x1xi32> to vector<16x128xi32>
    %7 = arith.cmpi eq, %1, %6 : vector<16x128xi32>
    %8 = arith.ori %4, %7 : vector<16x128xi1>
    %9 = vector.extract_strided_slice %0 {offsets = [0, 2], sizes = [16, 1], strides = [1, 1]} : vector<16x5xi32> to vector<16x1xi32>
    %10 = vector.broadcast %9 : vector<16x1xi32> to vector<16x128xi32>
    %11 = arith.cmpi eq, %1, %10 : vector<16x128xi32>
    %12 = arith.ori %8, %11 : vector<16x128xi1>
    %cst = arith.constant 1.000000e+00 : f32
    %cst_1 = arith.constant 0.000000e+00 : f32
    %13 = vector.broadcast %cst : f32 to vector<16x128xf32>
    %14 = vector.broadcast %cst_1 : f32 to vector<16x128xf32>
    %15 = arith.select %12, %13, %14 : vector<16x128xi1>, vector<16x128xf32>
    %16 = arith.truncf %15 : vector<16x128xf32> to vector<16x128xbf16>
    %c0_2 = arith.constant 0 : index
    %c0_3 = arith.constant 0 : index
    %17 = vector.load %arg1[%c0_2, %c0_3] : memref<128x32xbf16, #tpu.memory_space<vmem>>, vector<128x32xbf16>
    %cst_4 = arith.constant dense<0.000000e+00> : vector<16x32xf32>
    %18 = tpu.matmul %16, %17, %cst_4 {dimension_numbers = #tpu.dot_dimension_numbers<[1], [0], [0], [1], [0, 0, 1, 1], [], []>} : vector<16x128xbf16>, vector<128x32xbf16>, vector<16x32xf32> -> vector<16x32xf32>
    %c0_5 = arith.constant 0 : index
    %c0_6 = arith.constant 0 : index
    %19 = vector.load %arg9[%c0_5, %c0_6] : memref<11x128xf32, #tpu.memory_space<vmem>>, vector<1x32xf32>
    %c1 = arith.constant 1 : index
    %c0_7 = arith.constant 0 : index
    %20 = vector.load %arg9[%c1, %c0_7] : memref<11x128xf32, #tpu.memory_space<vmem>>, vector<1x32xf32>
    %cst_8 = arith.constant dense<0.000000e+00> : vector<16xf32>
    %21 = vector.multi_reduction <add>, %18, %cst_8 [1] : vector<16x32xf32> to vector<16xf32>
    %22 = vector.shape_cast %21 : vector<16xf32> to vector<16x1xf32>
    %cst_9 = arith.constant 3.200000e+01 : f32
    %23 = vector.broadcast %cst_9 : f32 to vector<16x1xf32>
    %24 = arith.divf %22, %23 : vector<16x1xf32>
    %25 = vector.broadcast %24 : vector<16x1xf32> to vector<16x32xf32>
    %26 = arith.subf %18, %25 : vector<16x32xf32>
    %27 = arith.mulf %26, %26 : vector<16x32xf32>
    %cst_10 = arith.constant dense<0.000000e+00> : vector<16xf32>
    %28 = vector.multi_reduction <add>, %27, %cst_10 [1] : vector<16x32xf32> to vector<16xf32>
    %29 = vector.shape_cast %28 : vector<16xf32> to vector<16x1xf32>
    %cst_11 = arith.constant 3.200000e+01 : f32
    %30 = vector.broadcast %cst_11 : f32 to vector<16x1xf32>
    %31 = arith.divf %29, %30 : vector<16x1xf32>
    %32 = vector.broadcast %24 : vector<16x1xf32> to vector<16x32xf32>
    %33 = arith.subf %18, %32 : vector<16x32xf32>
    %cst_12 = arith.constant 9.99999996E-13 : f32
    %34 = vector.broadcast %cst_12 : f32 to vector<16x1xf32>
    %35 = arith.addf %31, %34 : vector<16x1xf32>
    %36 = math.rsqrt %35 : vector<16x1xf32>
    %37 = vector.broadcast %36 : vector<16x1xf32> to vector<16x32xf32>
    %38 = arith.mulf %33, %37 : vector<16x32xf32>
    %39 = vector.broadcast %19 : vector<1x32xf32> to vector<16x32xf32>
    %40 = arith.mulf %38, %39 : vector<16x32xf32>
    %41 = vector.broadcast %20 : vector<1x32xf32> to vector<16x32xf32>
    %42 = arith.addf %40, %41 : vector<16x32xf32>
    %43 = tpu.iota {dimensions = array<i32: 1>} : vector<16x16xi32>
    %44 = vector.extract_strided_slice %0 {offsets = [0, 3], sizes = [16, 1], strides = [1, 1]} : vector<16x5xi32> to vector<16x1xi32>
    %45 = vector.broadcast %44 : vector<16x1xi32> to vector<16x16xi32>
    %46 = arith.cmpi sge, %43, %45 : vector<16x16xi32>
    %47 = vector.extract_strided_slice %0 {offsets = [0, 4], sizes = [16, 1], strides = [1, 1]} : vector<16x5xi32> to vector<16x1xi32>
    %48 = vector.broadcast %47 : vector<16x1xi32> to vector<16x16xi32>
    %49 = arith.cmpi slt, %43, %48 : vector<16x16xi32>
    %50 = arith.andi %46, %49 : vector<16x16xi1>
    %cst_13 = arith.constant 0.000000e+00 : f32
    %cst_14 = arith.constant -1.000000e+04 : f32
    %51 = vector.broadcast %cst_13 : f32 to vector<16x16xf32>
    %52 = vector.broadcast %cst_14 : f32 to vector<16x16xf32>
    %53 = arith.select %50, %51, %52 : vector<16x16xi1>, vector<16x16xf32>
    %54 = arith.truncf %42 : vector<16x32xf32> to vector<16x32xbf16>
    %cst_15 = arith.constant 0.000000e+00 : f32
    %55 = vector.broadcast %cst_15 : f32 to vector<16x32xf32>
    %c0_16 = arith.constant 0 : index
    %c0_17 = arith.constant 0 : index
    %c0_18 = arith.constant 0 : index
    %c0_19 = arith.constant 0 : index
    %56 = vector.load %arg2[%c0_16, %c0_17, %c0_18, %c0_19] : memref<3x4x32x8xbf16, #tpu.memory_space<vmem>>, vector<1x1x32x8xbf16>
    %57 = vector.shape_cast %56 : vector<1x1x32x8xbf16> to vector<32x8xbf16>
    %cst_20 = arith.constant dense<0.000000e+00> : vector<16x8xf32>
    %58 = tpu.matmul %54, %57, %cst_20 {dimension_numbers = #tpu.dot_dimension_numbers<[1], [0], [0], [1], [0, 0, 1, 1], [], []>} : vector<16x32xbf16>, vector<32x8xbf16>, vector<16x8xf32> -> vector<16x8xf32>
    %c0_21 = arith.constant 0 : index
    %c0_22 = arith.constant 0 : index
    %c0_23 = arith.constant 0 : index
    %c0_24 = arith.constant 0 : index
    %59 = vector.load %arg3[%c0_21, %c0_22, %c0_23, %c0_24] : memref<3x4x1x8xf32, #tpu.memory_space<vmem>>, vector<1x1x1x8xf32>
    %60 = vector.shape_cast %59 : vector<1x1x1x8xf32> to vector<1x8xf32>
    %61 = vector.broadcast %60 : vector<1x8xf32> to vector<16x8xf32>
    %62 = arith.addf %58, %61 : vector<16x8xf32>
    %c1_25 = arith.constant 1 : index
    %c0_26 = arith.constant 0 : index
    %c0_27 = arith.constant 0 : index
    %c0_28 = arith.constant 0 : index
    %63 = vector.load %arg2[%c1_25, %c0_26, %c0_27, %c0_28] : memref<3x4x32x8xbf16, #tpu.memory_space<vmem>>, vector<1x1x32x8xbf16>
    %64 = vector.shape_cast %63 : vector<1x1x32x8xbf16> to vector<32x8xbf16>
    %cst_29 = arith.constant dense<0.000000e+00> : vector<16x8xf32>
    %65 = tpu.matmul %54, %64, %cst_29 {dimension_numbers = #tpu.dot_dimension_numbers<[1], [0], [0], [1], [0, 0, 1, 1], [], []>} : vector<16x32xbf16>, vector<32x8xbf16>, vector<16x8xf32> -> vector<16x8xf32>
    %c1_30 = arith.constant 1 : index
    %c0_31 = arith.constant 0 : index
    %c0_32 = arith.constant 0 : index
    %c0_33 = arith.constant 0 : index
    %66 = vector.load %arg3[%c1_30, %c0_31, %c0_32, %c0_33] : memref<3x4x1x8xf32, #tpu.memory_space<vmem>>, vector<1x1x1x8xf32>
    %67 = vector.shape_cast %66 : vector<1x1x1x8xf32> to vector<1x8xf32>
    %68 = vector.broadcast %67 : vector<1x8xf32> to vector<16x8xf32>
    %69 = arith.addf %65, %68 : vector<16x8xf32>
    %c2 = arith.constant 2 : index
    %c0_34 = arith.constant 0 : index
    %c0_35 = arith.constant 0 : index
    %c0_36 = arith.constant 0 : index
    %70 = vector.load %arg2[%c2, %c0_34, %c0_35, %c0_36] : memref<3x4x32x8xbf16, #tpu.memory_space<vmem>>, vector<1x1x32x8xbf16>
    %71 = vector.shape_cast %70 : vector<1x1x32x8xbf16> to vector<32x8xbf16>
    %cst_37 = arith.constant dense<0.000000e+00> : vector<16x8xf32>
    %72 = tpu.matmul %54, %71, %cst_37 {dimension_numbers = #tpu.dot_dimension_numbers<[1], [0], [0], [1], [0, 0, 1, 1], [], []>} : vector<16x32xbf16>, vector<32x8xbf16>, vector<16x8xf32> -> vector<16x8xf32>
    %c2_38 = arith.constant 2 : index
    %c0_39 = arith.constant 0 : index
    %c0_40 = arith.constant 0 : index
    %c0_41 = arith.constant 0 : index
    %73 = vector.load %arg3[%c2_38, %c0_39, %c0_40, %c0_41] : memref<3x4x1x8xf32, #tpu.memory_space<vmem>>, vector<1x1x1x8xf32>
    %74 = vector.shape_cast %73 : vector<1x1x1x8xf32> to vector<1x8xf32>
    %75 = vector.broadcast %74 : vector<1x8xf32> to vector<16x8xf32>
    %76 = arith.addf %72, %75 : vector<16x8xf32>
    %77 = tpu.transpose %69, [1, 0] : vector<16x8xf32> -> vector<8x16xf32>
    %cst_42 = arith.constant dense<0.000000e+00> : vector<16x16xf32>
    %78 = tpu.matmul %62, %77, %cst_42 {dimension_numbers = #tpu.dot_dimension_numbers<[1], [0], [0], [1], [0, 0, 1, 1], [], []>} : vector<16x8xf32>, vector<8x16xf32>, vector<16x16xf32> -> vector<16x16xf32>
    %cst_43 = arith.constant 0.353553385 : f32
    %79 = vector.broadcast %cst_43 : f32 to vector<16x16xf32>
    %80 = arith.mulf %78, %79 : vector<16x16xf32>
    %81 = arith.addf %80, %53 : vector<16x16xf32>
    %cst_44 = arith.constant dense<0xFF800000> : vector<16xf32>
    %82 = vector.multi_reduction <maximumf>, %81, %cst_44 [1] : vector<16x16xf32> to vector<16xf32>
    %83 = vector.shape_cast %82 : vector<16xf32> to vector<16x1xf32>
    %84 = vector.broadcast %83 : vector<16x1xf32> to vector<16x16xf32>
    %85 = arith.subf %81, %84 : vector<16x16xf32>
    %86 = math.exp %85 : vector<16x16xf32>
    %cst_45 = arith.constant dense<0.000000e+00> : vector<16xf32>
    %87 = vector.multi_reduction <add>, %86, %cst_45 [1] : vector<16x16xf32> to vector<16xf32>
    %88 = vector.shape_cast %87 : vector<16xf32> to vector<16x1xf32>
    %89 = tpu.reciprocal %88 {approx = true} : vector<16x1xf32> -> vector<16x1xf32>
    %90 = vector.broadcast %89 : vector<16x1xf32> to vector<16x16xf32>
    %91 = arith.mulf %86, %90 : vector<16x16xf32>
    %cst_46 = arith.constant dense<0.000000e+00> : vector<16x8xf32>
    %92 = tpu.matmul %91, %76, %cst_46 {dimension_numbers = #tpu.dot_dimension_numbers<[1], [0], [0], [1], [0, 0, 1, 1], [], []>} : vector<16x16xf32>, vector<16x8xf32>, vector<16x8xf32> -> vector<16x8xf32>
    %93 = arith.truncf %92 : vector<16x8xf32> to vector<16x8xbf16>
    %c0_47 = arith.constant 0 : index
    %c0_48 = arith.constant 0 : index
    %c0_49 = arith.constant 0 : index
    %94 = vector.load %arg4[%c0_47, %c0_48, %c0_49] : memref<4x8x32xbf16, #tpu.memory_space<vmem>>, vector<1x8x32xbf16>
    %95 = vector.shape_cast %94 : vector<1x8x32xbf16> to vector<8x32xbf16>
    %cst_50 = arith.constant dense<0.000000e+00> : vector<16x32xf32>
    %96 = tpu.matmul %93, %95, %cst_50 {dimension_numbers = #tpu.dot_dimension_numbers<[1], [0], [0], [1], [0, 0, 1, 1], [], []>} : vector<16x8xbf16>, vector<8x32xbf16>, vector<16x32xf32> -> vector<16x32xf32>
    %97 = arith.addf %55, %96 : vector<16x32xf32>
    %c0_51 = arith.constant 0 : index
    %c1_52 = arith.constant 1 : index
    %c0_53 = arith.constant 0 : index
    %c0_54 = arith.constant 0 : index
    %98 = vector.load %arg2[%c0_51, %c1_52, %c0_53, %c0_54] : memref<3x4x32x8xbf16, #tpu.memory_space<vmem>>, vector<1x1x32x8xbf16>
    %99 = vector.shape_cast %98 : vector<1x1x32x8xbf16> to vector<32x8xbf16>
    %cst_55 = arith.constant dense<0.000000e+00> : vector<16x8xf32>
    %100 = tpu.matmul %54, %99, %cst_55 {dimension_numbers = #tpu.dot_dimension_numbers<[1], [0], [0], [1], [0, 0, 1, 1], [], []>} : vector<16x32xbf16>, vector<32x8xbf16>, vector<16x8xf32> -> vector<16x8xf32>
    %c0_56 = arith.constant 0 : index
    %c1_57 = arith.constant 1 : index
    %c0_58 = arith.constant 0 : index
    %c0_59 = arith.constant 0 : index
    %101 = vector.load %arg3[%c0_56, %c1_57, %c0_58, %c0_59] : memref<3x4x1x8xf32, #tpu.memory_space<vmem>>, vector<1x1x1x8xf32>
    %102 = vector.shape_cast %101 : vector<1x1x1x8xf32> to vector<1x8xf32>
    %103 = vector.broadcast %102 : vector<1x8xf32> to vector<16x8xf32>
    %104 = arith.addf %100, %103 : vector<16x8xf32>
    %c1_60 = arith.constant 1 : index
    %c1_61 = arith.constant 1 : index
    %c0_62 = arith.constant 0 : index
    %c0_63 = arith.constant 0 : index
    %105 = vector.load %arg2[%c1_60, %c1_61, %c0_62, %c0_63] : memref<3x4x32x8xbf16, #tpu.memory_space<vmem>>, vector<1x1x32x8xbf16>
    %106 = vector.shape_cast %105 : vector<1x1x32x8xbf16> to vector<32x8xbf16>
    %cst_64 = arith.constant dense<0.000000e+00> : vector<16x8xf32>
    %107 = tpu.matmul %54, %106, %cst_64 {dimension_numbers = #tpu.dot_dimension_numbers<[1], [0], [0], [1], [0, 0, 1, 1], [], []>} : vector<16x32xbf16>, vector<32x8xbf16>, vector<16x8xf32> -> vector<16x8xf32>
    %c1_65 = arith.constant 1 : index
    %c1_66 = arith.constant 1 : index
    %c0_67 = arith.constant 0 : index
    %c0_68 = arith.constant 0 : index
    %108 = vector.load %arg3[%c1_65, %c1_66, %c0_67, %c0_68] : memref<3x4x1x8xf32, #tpu.memory_space<vmem>>, vector<1x1x1x8xf32>
    %109 = vector.shape_cast %108 : vector<1x1x1x8xf32> to vector<1x8xf32>
    %110 = vector.broadcast %109 : vector<1x8xf32> to vector<16x8xf32>
    %111 = arith.addf %107, %110 : vector<16x8xf32>
    %c2_69 = arith.constant 2 : index
    %c1_70 = arith.constant 1 : index
    %c0_71 = arith.constant 0 : index
    %c0_72 = arith.constant 0 : index
    %112 = vector.load %arg2[%c2_69, %c1_70, %c0_71, %c0_72] : memref<3x4x32x8xbf16, #tpu.memory_space<vmem>>, vector<1x1x32x8xbf16>
    %113 = vector.shape_cast %112 : vector<1x1x32x8xbf16> to vector<32x8xbf16>
    %cst_73 = arith.constant dense<0.000000e+00> : vector<16x8xf32>
    %114 = tpu.matmul %54, %113, %cst_73 {dimension_numbers = #tpu.dot_dimension_numbers<[1], [0], [0], [1], [0, 0, 1, 1], [], []>} : vector<16x32xbf16>, vector<32x8xbf16>, vector<16x8xf32> -> vector<16x8xf32>
    %c2_74 = arith.constant 2 : index
    %c1_75 = arith.constant 1 : index
    %c0_76 = arith.constant 0 : index
    %c0_77 = arith.constant 0 : index
    %115 = vector.load %arg3[%c2_74, %c1_75, %c0_76, %c0_77] : memref<3x4x1x8xf32, #tpu.memory_space<vmem>>, vector<1x1x1x8xf32>
    %116 = vector.shape_cast %115 : vector<1x1x1x8xf32> to vector<1x8xf32>
    %117 = vector.broadcast %116 : vector<1x8xf32> to vector<16x8xf32>
    %118 = arith.addf %114, %117 : vector<16x8xf32>
    %119 = tpu.transpose %111, [1, 0] : vector<16x8xf32> -> vector<8x16xf32>
    %cst_78 = arith.constant dense<0.000000e+00> : vector<16x16xf32>
    %120 = tpu.matmul %104, %119, %cst_78 {dimension_numbers = #tpu.dot_dimension_numbers<[1], [0], [0], [1], [0, 0, 1, 1], [], []>} : vector<16x8xf32>, vector<8x16xf32>, vector<16x16xf32> -> vector<16x16xf32>
    %cst_79 = arith.constant 0.353553385 : f32
    %121 = vector.broadcast %cst_79 : f32 to vector<16x16xf32>
    %122 = arith.mulf %120, %121 : vector<16x16xf32>
    %123 = arith.addf %122, %53 : vector<16x16xf32>
    %cst_80 = arith.constant dense<0xFF800000> : vector<16xf32>
    %124 = vector.multi_reduction <maximumf>, %123, %cst_80 [1] : vector<16x16xf32> to vector<16xf32>
    %125 = vector.shape_cast %124 : vector<16xf32> to vector<16x1xf32>
    %126 = vector.broadcast %125 : vector<16x1xf32> to vector<16x16xf32>
    %127 = arith.subf %123, %126 : vector<16x16xf32>
    %128 = math.exp %127 : vector<16x16xf32>
    %cst_81 = arith.constant dense<0.000000e+00> : vector<16xf32>
    %129 = vector.multi_reduction <add>, %128, %cst_81 [1] : vector<16x16xf32> to vector<16xf32>
    %130 = vector.shape_cast %129 : vector<16xf32> to vector<16x1xf32>
    %131 = tpu.reciprocal %130 {approx = true} : vector<16x1xf32> -> vector<16x1xf32>
    %132 = vector.broadcast %131 : vector<16x1xf32> to vector<16x16xf32>
    %133 = arith.mulf %128, %132 : vector<16x16xf32>
    %cst_82 = arith.constant dense<0.000000e+00> : vector<16x8xf32>
    %134 = tpu.matmul %133, %118, %cst_82 {dimension_numbers = #tpu.dot_dimension_numbers<[1], [0], [0], [1], [0, 0, 1, 1], [], []>} : vector<16x16xf32>, vector<16x8xf32>, vector<16x8xf32> -> vector<16x8xf32>
    %135 = arith.truncf %134 : vector<16x8xf32> to vector<16x8xbf16>
    %c1_83 = arith.constant 1 : index
    %c0_84 = arith.constant 0 : index
    %c0_85 = arith.constant 0 : index
    %136 = vector.load %arg4[%c1_83, %c0_84, %c0_85] : memref<4x8x32xbf16, #tpu.memory_space<vmem>>, vector<1x8x32xbf16>
    %137 = vector.shape_cast %136 : vector<1x8x32xbf16> to vector<8x32xbf16>
    %cst_86 = arith.constant dense<0.000000e+00> : vector<16x32xf32>
    %138 = tpu.matmul %135, %137, %cst_86 {dimension_numbers = #tpu.dot_dimension_numbers<[1], [0], [0], [1], [0, 0, 1, 1], [], []>} : vector<16x8xbf16>, vector<8x32xbf16>, vector<16x32xf32> -> vector<16x32xf32>
    %139 = arith.addf %97, %138 : vector<16x32xf32>
    %c0_87 = arith.constant 0 : index
    %c2_88 = arith.constant 2 : index
    %c0_89 = arith.constant 0 : index
    %c0_90 = arith.constant 0 : index
    %140 = vector.load %arg2[%c0_87, %c2_88, %c0_89, %c0_90] : memref<3x4x32x8xbf16, #tpu.memory_space<vmem>>, vector<1x1x32x8xbf16>
    %141 = vector.shape_cast %140 : vector<1x1x32x8xbf16> to vector<32x8xbf16>
    %cst_91 = arith.constant dense<0.000000e+00> : vector<16x8xf32>
    %142 = tpu.matmul %54, %141, %cst_91 {dimension_numbers = #tpu.dot_dimension_numbers<[1], [0], [0], [1], [0, 0, 1, 1], [], []>} : vector<16x32xbf16>, vector<32x8xbf16>, vector<16x8xf32> -> vector<16x8xf32>
    %c0_92 = arith.constant 0 : index
    %c2_93 = arith.constant 2 : index
    %c0_94 = arith.constant 0 : index
    %c0_95 = arith.constant 0 : index
    %143 = vector.load %arg3[%c0_92, %c2_93, %c0_94, %c0_95] : memref<3x4x1x8xf32, #tpu.memory_space<vmem>>, vector<1x1x1x8xf32>
    %144 = vector.shape_cast %143 : vector<1x1x1x8xf32> to vector<1x8xf32>
    %145 = vector.broadcast %144 : vector<1x8xf32> to vector<16x8xf32>
    %146 = arith.addf %142, %145 : vector<16x8xf32>
    %c1_96 = arith.constant 1 : index
    %c2_97 = arith.constant 2 : index
    %c0_98 = arith.constant 0 : index
    %c0_99 = arith.constant 0 : index
    %147 = vector.load %arg2[%c1_96, %c2_97, %c0_98, %c0_99] : memref<3x4x32x8xbf16, #tpu.memory_space<vmem>>, vector<1x1x32x8xbf16>
    %148 = vector.shape_cast %147 : vector<1x1x32x8xbf16> to vector<32x8xbf16>
    %cst_100 = arith.constant dense<0.000000e+00> : vector<16x8xf32>
    %149 = tpu.matmul %54, %148, %cst_100 {dimension_numbers = #tpu.dot_dimension_numbers<[1], [0], [0], [1], [0, 0, 1, 1], [], []>} : vector<16x32xbf16>, vector<32x8xbf16>, vector<16x8xf32> -> vector<16x8xf32>
    %c1_101 = arith.constant 1 : index
    %c2_102 = arith.constant 2 : index
    %c0_103 = arith.constant 0 : index
    %c0_104 = arith.constant 0 : index
    %150 = vector.load %arg3[%c1_101, %c2_102, %c0_103, %c0_104] : memref<3x4x1x8xf32, #tpu.memory_space<vmem>>, vector<1x1x1x8xf32>
    %151 = vector.shape_cast %150 : vector<1x1x1x8xf32> to vector<1x8xf32>
    %152 = vector.broadcast %151 : vector<1x8xf32> to vector<16x8xf32>
    %153 = arith.addf %149, %152 : vector<16x8xf32>
    %c2_105 = arith.constant 2 : index
    %c2_106 = arith.constant 2 : index
    %c0_107 = arith.constant 0 : index
    %c0_108 = arith.constant 0 : index
    %154 = vector.load %arg2[%c2_105, %c2_106, %c0_107, %c0_108] : memref<3x4x32x8xbf16, #tpu.memory_space<vmem>>, vector<1x1x32x8xbf16>
    %155 = vector.shape_cast %154 : vector<1x1x32x8xbf16> to vector<32x8xbf16>
    %cst_109 = arith.constant dense<0.000000e+00> : vector<16x8xf32>
    %156 = tpu.matmul %54, %155, %cst_109 {dimension_numbers = #tpu.dot_dimension_numbers<[1], [0], [0], [1], [0, 0, 1, 1], [], []>} : vector<16x32xbf16>, vector<32x8xbf16>, vector<16x8xf32> -> vector<16x8xf32>
    %c2_110 = arith.constant 2 : index
    %c2_111 = arith.constant 2 : index
    %c0_112 = arith.constant 0 : index
    %c0_113 = arith.constant 0 : index
    %157 = vector.load %arg3[%c2_110, %c2_111, %c0_112, %c0_113] : memref<3x4x1x8xf32, #tpu.memory_space<vmem>>, vector<1x1x1x8xf32>
    %158 = vector.shape_cast %157 : vector<1x1x1x8xf32> to vector<1x8xf32>
    %159 = vector.broadcast %158 : vector<1x8xf32> to vector<16x8xf32>
    %160 = arith.addf %156, %159 : vector<16x8xf32>
    %161 = tpu.transpose %153, [1, 0] : vector<16x8xf32> -> vector<8x16xf32>
    %cst_114 = arith.constant dense<0.000000e+00> : vector<16x16xf32>
    %162 = tpu.matmul %146, %161, %cst_114 {dimension_numbers = #tpu.dot_dimension_numbers<[1], [0], [0], [1], [0, 0, 1, 1], [], []>} : vector<16x8xf32>, vector<8x16xf32>, vector<16x16xf32> -> vector<16x16xf32>
    %cst_115 = arith.constant 0.353553385 : f32
    %163 = vector.broadcast %cst_115 : f32 to vector<16x16xf32>
    %164 = arith.mulf %162, %163 : vector<16x16xf32>
    %165 = arith.addf %164, %53 : vector<16x16xf32>
    %cst_116 = arith.constant dense<0xFF800000> : vector<16xf32>
    %166 = vector.multi_reduction <maximumf>, %165, %cst_116 [1] : vector<16x16xf32> to vector<16xf32>
    %167 = vector.shape_cast %166 : vector<16xf32> to vector<16x1xf32>
    %168 = vector.broadcast %167 : vector<16x1xf32> to vector<16x16xf32>
    %169 = arith.subf %165, %168 : vector<16x16xf32>
    %170 = math.exp %169 : vector<16x16xf32>
    %cst_117 = arith.constant dense<0.000000e+00> : vector<16xf32>
    %171 = vector.multi_reduction <add>, %170, %cst_117 [1] : vector<16x16xf32> to vector<16xf32>
    %172 = vector.shape_cast %171 : vector<16xf32> to vector<16x1xf32>
    %173 = tpu.reciprocal %172 {approx = true} : vector<16x1xf32> -> vector<16x1xf32>
    %174 = vector.broadcast %173 : vector<16x1xf32> to vector<16x16xf32>
    %175 = arith.mulf %170, %174 : vector<16x16xf32>
    %cst_118 = arith.constant dense<0.000000e+00> : vector<16x8xf32>
    %176 = tpu.matmul %175, %160, %cst_118 {dimension_numbers = #tpu.dot_dimension_numbers<[1], [0], [0], [1], [0, 0, 1, 1], [], []>} : vector<16x16xf32>, vector<16x8xf32>, vector<16x8xf32> -> vector<16x8xf32>
    %177 = arith.truncf %176 : vector<16x8xf32> to vector<16x8xbf16>
    %c2_119 = arith.constant 2 : index
    %c0_120 = arith.constant 0 : index
    %c0_121 = arith.constant 0 : index
    %178 = vector.load %arg4[%c2_119, %c0_120, %c0_121] : memref<4x8x32xbf16, #tpu.memory_space<vmem>>, vector<1x8x32xbf16>
    %179 = vector.shape_cast %178 : vector<1x8x32xbf16> to vector<8x32xbf16>
    %cst_122 = arith.constant dense<0.000000e+00> : vector<16x32xf32>
    %180 = tpu.matmul %177, %179, %cst_122 {dimension_numbers = #tpu.dot_dimension_numbers<[1], [0], [0], [1], [0, 0, 1, 1], [], []>} : vector<16x8xbf16>, vector<8x32xbf16>, vector<16x32xf32> -> vector<16x32xf32>
    %181 = arith.addf %139, %180 : vector<16x32xf32>
    %c0_123 = arith.constant 0 : index
    %c3 = arith.constant 3 : index
    %c0_124 = arith.constant 0 : index
    %c0_125 = arith.constant 0 : index
    %182 = vector.load %arg2[%c0_123, %c3, %c0_124, %c0_125] : memref<3x4x32x8xbf16, #tpu.memory_space<vmem>>, vector<1x1x32x8xbf16>
    %183 = vector.shape_cast %182 : vector<1x1x32x8xbf16> to vector<32x8xbf16>
    %cst_126 = arith.constant dense<0.000000e+00> : vector<16x8xf32>
    %184 = tpu.matmul %54, %183, %cst_126 {dimension_numbers = #tpu.dot_dimension_numbers<[1], [0], [0], [1], [0, 0, 1, 1], [], []>} : vector<16x32xbf16>, vector<32x8xbf16>, vector<16x8xf32> -> vector<16x8xf32>
    %c0_127 = arith.constant 0 : index
    %c3_128 = arith.constant 3 : index
    %c0_129 = arith.constant 0 : index
    %c0_130 = arith.constant 0 : index
    %185 = vector.load %arg3[%c0_127, %c3_128, %c0_129, %c0_130] : memref<3x4x1x8xf32, #tpu.memory_space<vmem>>, vector<1x1x1x8xf32>
    %186 = vector.shape_cast %185 : vector<1x1x1x8xf32> to vector<1x8xf32>
    %187 = vector.broadcast %186 : vector<1x8xf32> to vector<16x8xf32>
    %188 = arith.addf %184, %187 : vector<16x8xf32>
    %c1_131 = arith.constant 1 : index
    %c3_132 = arith.constant 3 : index
    %c0_133 = arith.constant 0 : index
    %c0_134 = arith.constant 0 : index
    %189 = vector.load %arg2[%c1_131, %c3_132, %c0_133, %c0_134] : memref<3x4x32x8xbf16, #tpu.memory_space<vmem>>, vector<1x1x32x8xbf16>
    %190 = vector.shape_cast %189 : vector<1x1x32x8xbf16> to vector<32x8xbf16>
    %cst_135 = arith.constant dense<0.000000e+00> : vector<16x8xf32>
    %191 = tpu.matmul %54, %190, %cst_135 {dimension_numbers = #tpu.dot_dimension_numbers<[1], [0], [0], [1], [0, 0, 1, 1], [], []>} : vector<16x32xbf16>, vector<32x8xbf16>, vector<16x8xf32> -> vector<16x8xf32>
    %c1_136 = arith.constant 1 : index
    %c3_137 = arith.constant 3 : index
    %c0_138 = arith.constant 0 : index
    %c0_139 = arith.constant 0 : index
    %192 = vector.load %arg3[%c1_136, %c3_137, %c0_138, %c0_139] : memref<3x4x1x8xf32, #tpu.memory_space<vmem>>, vector<1x1x1x8xf32>
    %193 = vector.shape_cast %192 : vector<1x1x1x8xf32> to vector<1x8xf32>
    %194 = vector.broadcast %193 : vector<1x8xf32> to vector<16x8xf32>
    %195 = arith.addf %191, %194 : vector<16x8xf32>
    %c2_140 = arith.constant 2 : index
    %c3_141 = arith.constant 3 : index
    %c0_142 = arith.constant 0 : index
    %c0_143 = arith.constant 0 : index
    %196 = vector.load %arg2[%c2_140, %c3_141, %c0_142, %c0_143] : memref<3x4x32x8xbf16, #tpu.memory_space<vmem>>, vector<1x1x32x8xbf16>
    %197 = vector.shape_cast %196 : vector<1x1x32x8xbf16> to vector<32x8xbf16>
    %cst_144 = arith.constant dense<0.000000e+00> : vector<16x8xf32>
    %198 = tpu.matmul %54, %197, %cst_144 {dimension_numbers = #tpu.dot_dimension_numbers<[1], [0], [0], [1], [0, 0, 1, 1], [], []>} : vector<16x32xbf16>, vector<32x8xbf16>, vector<16x8xf32> -> vector<16x8xf32>
    %c2_145 = arith.constant 2 : index
    %c3_146 = arith.constant 3 : index
    %c0_147 = arith.constant 0 : index
    %c0_148 = arith.constant 0 : index
    %199 = vector.load %arg3[%c2_145, %c3_146, %c0_147, %c0_148] : memref<3x4x1x8xf32, #tpu.memory_space<vmem>>, vector<1x1x1x8xf32>
    %200 = vector.shape_cast %199 : vector<1x1x1x8xf32> to vector<1x8xf32>
    %201 = vector.broadcast %200 : vector<1x8xf32> to vector<16x8xf32>
    %202 = arith.addf %198, %201 : vector<16x8xf32>
    %203 = tpu.transpose %195, [1, 0] : vector<16x8xf32> -> vector<8x16xf32>
    %cst_149 = arith.constant dense<0.000000e+00> : vector<16x16xf32>
    %204 = tpu.matmul %188, %203, %cst_149 {dimension_numbers = #tpu.dot_dimension_numbers<[1], [0], [0], [1], [0, 0, 1, 1], [], []>} : vector<16x8xf32>, vector<8x16xf32>, vector<16x16xf32> -> vector<16x16xf32>
    %cst_150 = arith.constant 0.353553385 : f32
    %205 = vector.broadcast %cst_150 : f32 to vector<16x16xf32>
    %206 = arith.mulf %204, %205 : vector<16x16xf32>
    %207 = arith.addf %206, %53 : vector<16x16xf32>
    %cst_151 = arith.constant dense<0xFF800000> : vector<16xf32>
    %208 = vector.multi_reduction <maximumf>, %207, %cst_151 [1] : vector<16x16xf32> to vector<16xf32>
    %209 = vector.shape_cast %208 : vector<16xf32> to vector<16x1xf32>
    %210 = vector.broadcast %209 : vector<16x1xf32> to vector<16x16xf32>
    %211 = arith.subf %207, %210 : vector<16x16xf32>
    %212 = math.exp %211 : vector<16x16xf32>
    %cst_152 = arith.constant dense<0.000000e+00> : vector<16xf32>
    %213 = vector.multi_reduction <add>, %212, %cst_152 [1] : vector<16x16xf32> to vector<16xf32>
    %214 = vector.shape_cast %213 : vector<16xf32> to vector<16x1xf32>
    %215 = tpu.reciprocal %214 {approx = true} : vector<16x1xf32> -> vector<16x1xf32>
    %216 = vector.broadcast %215 : vector<16x1xf32> to vector<16x16xf32>
    %217 = arith.mulf %212, %216 : vector<16x16xf32>
    %cst_153 = arith.constant dense<0.000000e+00> : vector<16x8xf32>
    %218 = tpu.matmul %217, %202, %cst_153 {dimension_numbers = #tpu.dot_dimension_numbers<[1], [0], [0], [1], [0, 0, 1, 1], [], []>} : vector<16x16xf32>, vector<16x8xf32>, vector<16x8xf32> -> vector<16x8xf32>
    %219 = arith.truncf %218 : vector<16x8xf32> to vector<16x8xbf16>
    %c3_154 = arith.constant 3 : index
    %c0_155 = arith.constant 0 : index
    %c0_156 = arith.constant 0 : index
    %220 = vector.load %arg4[%c3_154, %c0_155, %c0_156] : memref<4x8x32xbf16, #tpu.memory_space<vmem>>, vector<1x8x32xbf16>
    %221 = vector.shape_cast %220 : vector<1x8x32xbf16> to vector<8x32xbf16>
    %cst_157 = arith.constant dense<0.000000e+00> : vector<16x32xf32>
    %222 = tpu.matmul %219, %221, %cst_157 {dimension_numbers = #tpu.dot_dimension_numbers<[1], [0], [0], [1], [0, 0, 1, 1], [], []>} : vector<16x8xbf16>, vector<8x32xbf16>, vector<16x32xf32> -> vector<16x32xf32>
    %223 = arith.addf %181, %222 : vector<16x32xf32>
    %c2_158 = arith.constant 2 : index
    %c0_159 = arith.constant 0 : index
    %224 = vector.load %arg9[%c2_158, %c0_159] : memref<11x128xf32, #tpu.memory_space<vmem>>, vector<1x32xf32>
    %225 = vector.broadcast %224 : vector<1x32xf32> to vector<16x32xf32>
    %226 = arith.addf %223, %225 : vector<16x32xf32>
    %227 = arith.addf %42, %226 : vector<16x32xf32>
    %c3_160 = arith.constant 3 : index
    %c0_161 = arith.constant 0 : index
    %228 = vector.load %arg9[%c3_160, %c0_161] : memref<11x128xf32, #tpu.memory_space<vmem>>, vector<1x32xf32>
    %c4 = arith.constant 4 : index
    %c0_162 = arith.constant 0 : index
    %229 = vector.load %arg9[%c4, %c0_162] : memref<11x128xf32, #tpu.memory_space<vmem>>, vector<1x32xf32>
    %cst_163 = arith.constant dense<0.000000e+00> : vector<16xf32>
    %230 = vector.multi_reduction <add>, %227, %cst_163 [1] : vector<16x32xf32> to vector<16xf32>
    %231 = vector.shape_cast %230 : vector<16xf32> to vector<16x1xf32>
    %cst_164 = arith.constant 3.200000e+01 : f32
    %232 = vector.broadcast %cst_164 : f32 to vector<16x1xf32>
    %233 = arith.divf %231, %232 : vector<16x1xf32>
    %234 = vector.broadcast %233 : vector<16x1xf32> to vector<16x32xf32>
    %235 = arith.subf %227, %234 : vector<16x32xf32>
    %236 = arith.mulf %235, %235 : vector<16x32xf32>
    %cst_165 = arith.constant dense<0.000000e+00> : vector<16xf32>
    %237 = vector.multi_reduction <add>, %236, %cst_165 [1] : vector<16x32xf32> to vector<16xf32>
    %238 = vector.shape_cast %237 : vector<16xf32> to vector<16x1xf32>
    %cst_166 = arith.constant 3.200000e+01 : f32
    %239 = vector.broadcast %cst_166 : f32 to vector<16x1xf32>
    %240 = arith.divf %238, %239 : vector<16x1xf32>
    %241 = vector.broadcast %233 : vector<16x1xf32> to vector<16x32xf32>
    %242 = arith.subf %227, %241 : vector<16x32xf32>
    %cst_167 = arith.constant 9.99999996E-13 : f32
    %243 = vector.broadcast %cst_167 : f32 to vector<16x1xf32>
    %244 = arith.addf %240, %243 : vector<16x1xf32>
    %245 = math.rsqrt %244 : vector<16x1xf32>
    %246 = vector.broadcast %245 : vector<16x1xf32> to vector<16x32xf32>
    %247 = arith.mulf %242, %246 : vector<16x32xf32>
    %248 = vector.broadcast %228 : vector<1x32xf32> to vector<16x32xf32>
    %249 = arith.mulf %247, %248 : vector<16x32xf32>
    %250 = vector.broadcast %229 : vector<1x32xf32> to vector<16x32xf32>
    %251 = arith.addf %249, %250 : vector<16x32xf32>
    %252 = arith.truncf %251 : vector<16x32xf32> to vector<16x32xbf16>
    %c0_168 = arith.constant 0 : index
    %c0_169 = arith.constant 0 : index
    %253 = vector.load %arg5[%c0_168, %c0_169] : memref<32x128xbf16, #tpu.memory_space<vmem>>, vector<32x128xbf16>
    %cst_170 = arith.constant dense<0.000000e+00> : vector<16x128xf32>
    %254 = tpu.matmul %252, %253, %cst_170 {dimension_numbers = #tpu.dot_dimension_numbers<[1], [0], [0], [1], [0, 0, 1, 1], [], []>} : vector<16x32xbf16>, vector<32x128xbf16>, vector<16x128xf32> -> vector<16x128xf32>
    %c5 = arith.constant 5 : index
    %c0_171 = arith.constant 0 : index
    %255 = vector.load %arg9[%c5, %c0_171] : memref<11x128xf32, #tpu.memory_space<vmem>>, vector<1x128xf32>
    %256 = vector.broadcast %255 : vector<1x128xf32> to vector<16x128xf32>
    %257 = arith.addf %254, %256 : vector<16x128xf32>
    %cst_172 = arith.constant 5.000000e-01 : f32
    %258 = vector.broadcast %cst_172 : f32 to vector<16x128xf32>
    %259 = arith.mulf %258, %257 : vector<16x128xf32>
    %cst_173 = arith.constant 4.471500e-02 : f32
    %260 = vector.broadcast %cst_173 : f32 to vector<16x128xf32>
    %261 = arith.mulf %260, %257 : vector<16x128xf32>
    %262 = arith.mulf %261, %257 : vector<16x128xf32>
    %263 = arith.mulf %262, %257 : vector<16x128xf32>
    %264 = arith.addf %257, %263 : vector<16x128xf32>
    %cst_174 = arith.constant 0.797884583 : f32
    %265 = vector.broadcast %cst_174 : f32 to vector<16x128xf32>
    %266 = arith.mulf %265, %264 : vector<16x128xf32>
    %267 = math.tanh %266 : vector<16x128xf32>
    %cst_175 = arith.constant 1.000000e+00 : f32
    %268 = vector.broadcast %cst_175 : f32 to vector<16x128xf32>
    %269 = arith.addf %268, %267 : vector<16x128xf32>
    %270 = arith.mulf %259, %269 : vector<16x128xf32>
    %271 = arith.truncf %270 : vector<16x128xf32> to vector<16x128xbf16>
    %c0_176 = arith.constant 0 : index
    %c0_177 = arith.constant 0 : index
    %272 = vector.load %arg6[%c0_176, %c0_177] : memref<128x32xbf16, #tpu.memory_space<vmem>>, vector<128x32xbf16>
    %cst_178 = arith.constant dense<0.000000e+00> : vector<16x32xf32>
    %273 = tpu.matmul %271, %272, %cst_178 {dimension_numbers = #tpu.dot_dimension_numbers<[1], [0], [0], [1], [0, 0, 1, 1], [], []>} : vector<16x128xbf16>, vector<128x32xbf16>, vector<16x32xf32> -> vector<16x32xf32>
    %c6 = arith.constant 6 : index
    %c0_179 = arith.constant 0 : index
    %274 = vector.load %arg9[%c6, %c0_179] : memref<11x128xf32, #tpu.memory_space<vmem>>, vector<1x32xf32>
    %275 = vector.broadcast %274 : vector<1x32xf32> to vector<16x32xf32>
    %276 = arith.addf %273, %275 : vector<16x32xf32>
    %277 = arith.addf %251, %276 : vector<16x32xf32>
    %c7 = arith.constant 7 : index
    %c0_180 = arith.constant 0 : index
    %278 = vector.load %arg9[%c7, %c0_180] : memref<11x128xf32, #tpu.memory_space<vmem>>, vector<1x32xf32>
    %c8 = arith.constant 8 : index
    %c0_181 = arith.constant 0 : index
    %279 = vector.load %arg9[%c8, %c0_181] : memref<11x128xf32, #tpu.memory_space<vmem>>, vector<1x32xf32>
    %cst_182 = arith.constant dense<0.000000e+00> : vector<16xf32>
    %280 = vector.multi_reduction <add>, %277, %cst_182 [1] : vector<16x32xf32> to vector<16xf32>
    %281 = vector.shape_cast %280 : vector<16xf32> to vector<16x1xf32>
    %cst_183 = arith.constant 3.200000e+01 : f32
    %282 = vector.broadcast %cst_183 : f32 to vector<16x1xf32>
    %283 = arith.divf %281, %282 : vector<16x1xf32>
    %284 = vector.broadcast %283 : vector<16x1xf32> to vector<16x32xf32>
    %285 = arith.subf %277, %284 : vector<16x32xf32>
    %286 = arith.mulf %285, %285 : vector<16x32xf32>
    %cst_184 = arith.constant dense<0.000000e+00> : vector<16xf32>
    %287 = vector.multi_reduction <add>, %286, %cst_184 [1] : vector<16x32xf32> to vector<16xf32>
    %288 = vector.shape_cast %287 : vector<16xf32> to vector<16x1xf32>
    %cst_185 = arith.constant 3.200000e+01 : f32
    %289 = vector.broadcast %cst_185 : f32 to vector<16x1xf32>
    %290 = arith.divf %288, %289 : vector<16x1xf32>
    %291 = vector.broadcast %283 : vector<16x1xf32> to vector<16x32xf32>
    %292 = arith.subf %277, %291 : vector<16x32xf32>
    %cst_186 = arith.constant 9.99999996E-13 : f32
    %293 = vector.broadcast %cst_186 : f32 to vector<16x1xf32>
    %294 = arith.addf %290, %293 : vector<16x1xf32>
    %295 = math.rsqrt %294 : vector<16x1xf32>
    %296 = vector.broadcast %295 : vector<16x1xf32> to vector<16x32xf32>
    %297 = arith.mulf %292, %296 : vector<16x32xf32>
    %298 = vector.broadcast %278 : vector<1x32xf32> to vector<16x32xf32>
    %299 = arith.mulf %297, %298 : vector<16x32xf32>
    %300 = vector.broadcast %279 : vector<1x32xf32> to vector<16x32xf32>
    %301 = arith.addf %299, %300 : vector<16x32xf32>
    %302 = tpu.iota {dimensions = array<i32: 1>} : vector<2x16xi32>
    %303 = tpu.iota {dimensions = array<i32: 0>} : vector<2x16xi32>
    %c8_i32 = arith.constant 8 : i32
    %304 = vector.broadcast %c8_i32 : i32 to vector<2x16xi32>
    %305 = arith.muli %303, %304 : vector<2x16xi32>
    %306 = arith.cmpi eq, %302, %305 : vector<2x16xi32>
    %cst_187 = arith.constant 1.000000e+00 : f32
    %cst_188 = arith.constant 0.000000e+00 : f32
    %307 = vector.broadcast %cst_187 : f32 to vector<2x16xf32>
    %308 = vector.broadcast %cst_188 : f32 to vector<2x16xf32>
    %309 = arith.select %306, %307, %308 : vector<2x16xi1>, vector<2x16xf32>
    %cst_189 = arith.constant dense<0.000000e+00> : vector<2x32xf32>
    %310 = tpu.matmul %309, %301, %cst_189 {dimension_numbers = #tpu.dot_dimension_numbers<[1], [0], [0], [1], [0, 0, 1, 1], [], []>} : vector<2x16xf32>, vector<16x32xf32>, vector<2x32xf32> -> vector<2x32xf32>
    %311 = arith.truncf %310 : vector<2x32xf32> to vector<2x32xbf16>
    %c0_190 = arith.constant 0 : index
    %c0_191 = arith.constant 0 : index
    %312 = vector.load %arg7[%c0_190, %c0_191] : memref<32x32xbf16, #tpu.memory_space<vmem>>, vector<32x32xbf16>
    %cst_192 = arith.constant dense<0.000000e+00> : vector<2x32xf32>
    %313 = tpu.matmul %311, %312, %cst_192 {dimension_numbers = #tpu.dot_dimension_numbers<[1], [0], [0], [1], [0, 0, 1, 1], [], []>} : vector<2x32xbf16>, vector<32x32xbf16>, vector<2x32xf32> -> vector<2x32xf32>
    %c9 = arith.constant 9 : index
    %c0_193 = arith.constant 0 : index
    %314 = vector.load %arg9[%c9, %c0_193] : memref<11x128xf32, #tpu.memory_space<vmem>>, vector<1x32xf32>
    %315 = vector.broadcast %314 : vector<1x32xf32> to vector<2x32xf32>
    %316 = arith.addf %313, %315 : vector<2x32xf32>
    %317 = math.tanh %316 : vector<2x32xf32>
    %318 = arith.truncf %317 : vector<2x32xf32> to vector<2x32xbf16>
    %c0_194 = arith.constant 0 : index
    %c0_195 = arith.constant 0 : index
    %319 = vector.load %arg8[%c0_194, %c0_195] : memref<32x128xbf16, #tpu.memory_space<vmem>>, vector<32x128xbf16>
    %cst_196 = arith.constant dense<0.000000e+00> : vector<2x128xf32>
    %320 = tpu.matmul %318, %319, %cst_196 {dimension_numbers = #tpu.dot_dimension_numbers<[1], [0], [0], [1], [0, 0, 1, 1], [], []>} : vector<2x32xbf16>, vector<32x128xbf16>, vector<2x128xf32> -> vector<2x128xf32>
    %c10 = arith.constant 10 : index
    %c0_197 = arith.constant 0 : index
    %321 = vector.load %arg9[%c10, %c0_197] : memref<11x128xf32, #tpu.memory_space<vmem>>, vector<1x128xf32>
    %322 = vector.broadcast %321 : vector<1x128xf32> to vector<2x128xf32>
    %323 = arith.addf %320, %322 : vector<2x128xf32>
    %c0_198 = arith.constant 0 : index
    %c0_199 = arith.constant 0 : index
    %324 = vector.load %arg10[%c0_198, %c0_199] : memref<2x128xf32, #tpu.memory_space<vmem>>, vector<2x128xf32>
    tpu.vector_store %arg10[%c0_198, %c0_199], %323 {strides = array<i32>} : memref<2x128xf32, #tpu.memory_space<vmem>>, vector<2x128xf32>,
    return
  }
}

</mosaic_0001>

<llo_original>
// kernel: tpu_custom_call.1
$region0: #{tpu_custom_call.1}
  #allocation0 [shape = 'u32[]', space=smem, size = 0x4, offset = 0x4, fixed_abs, tag = 'smem constant byte address 0x4 - core index']
  #allocation1 [shape = 'u32[144,128]{1,0:T(1,128)}', space=vmem, size = 0x12000, scoped, tag = 'internal scratch']
  %s0 = inlined_call_operand.vmem [shape: s32[16,5], index: 0, kind: input, shape index: {}]
  %s1 = inlined_call_operand.vmem [shape: bf16[128,32], index: 1, kind: input, shape index: {}]
  %s2 = inlined_call_operand.vmem [shape: bf16[3,4,32,8], index: 2, kind: input, shape index: {}]
  %s3 = inlined_call_operand.vmem [shape: f32[3,4,1,8], index: 3, kind: input, shape index: {}]
  %s4 = inlined_call_operand.vmem [shape: bf16[4,8,32], index: 4, kind: input, shape index: {}]
  %s5 = inlined_call_operand.vmem [shape: bf16[32,128], index: 5, kind: input, shape index: {}]
  %s6 = inlined_call_operand.vmem [shape: bf16[128,32], index: 6, kind: input, shape index: {}]
  %s7 = inlined_call_operand.vmem [shape: bf16[32,32], index: 7, kind: input, shape index: {}]
  %s8 = inlined_call_operand.vmem [shape: bf16[32,128], index: 8, kind: input, shape index: {}]
  %s9 = inlined_call_operand.vmem [shape: f32[11,128], index: 9, kind: input, shape index: {}]
  %s10 = inlined_call_operand.hbm [shape: f32[2,128], index: 10, kind: output, shape index: {}]
  %s11 = sld [smem:[#allocation0]]
  $region50: #{tpu_custom_call.1} parent=0
    _
  %s13 = ssub.s32 1, %s11
  %s14 = scalar_select 0, %s13, %s11
  $region1: #{tpu_custom_call.1} parent=0
    #allocation2 [shape = 'u8[1024]{0}', space=vmem, size = 0x400, scoped, tag = 'output window, operand 0, single buffered']
    #allocation3 [shape = 's32[1]{0}', space=sflag, size = 0x4, scoped, tag = 'scoped memory for tpu_custom_call.1']
    %15 = vsyncpa [#allocation3], 0
    // Predicated region
    $region2: #{tpu_custom_call.1} parent=1 // pred_check
      _
    $region3: #{tpu_custom_call.1} parent=1 // pred_check_branch
      %17 = sbr.rel (0) target = $region5
    $region4: #{tpu_custom_call.1} parent=1 // pred_region
      _
    $region5: #{tpu_custom_call.1} parent=1 // pred_fallthru
      _
    // Predicated region
    $region6: #{tpu_custom_call.1} parent=1 // pred_check
      _
    $region7: #{tpu_custom_call.1} parent=1 // pred_check_branch
      %19 = sbr.rel (0) target = $region9
    $region8: #{tpu_custom_call.1} parent=1 // pred_region
      _
    $region9: #{tpu_custom_call.1} parent=1 // pred_fallthru
      _
    // Predicated region
    $region10: #{tpu_custom_call.1} parent=1 // pred_check
      _
    $region11: #{tpu_custom_call.1} parent=1 // pred_check_branch
      %21 = sbr.rel (0) target = $region13
    $region12: #{tpu_custom_call.1} parent=1 // pred_region
      _
    $region13: #{tpu_custom_call.1} parent=1 // pred_fallthru
      _
    // Predicated region
    $region14: #{tpu_custom_call.1} parent=1 // pred_check
      _
    $region15: #{tpu_custom_call.1} parent=1 // pred_check_branch
      %23 = sbr.rel (0) target = $region17
    $region16: #{tpu_custom_call.1} parent=1 // pred_region
      _
    $region17: #{tpu_custom_call.1} parent=1 // pred_fallthru
      _
    // Predicated region
    $region18: #{tpu_custom_call.1} parent=1 // pred_check
      _
    $region19: #{tpu_custom_call.1} parent=1 // pred_check_branch
      %25 = sbr.rel (0) target = $region21
    $region20: #{tpu_custom_call.1} parent=1 // pred_region
      _
    $region21: #{tpu_custom_call.1} parent=1 // pred_fallthru
      _
    // Predicated region
    $region22: #{tpu_custom_call.1} parent=1 // pred_check
      _
    $region23: #{tpu_custom_call.1} parent=1 // pred_check_branch
      %27 = sbr.rel (0) target = $region25
    $region24: #{tpu_custom_call.1} parent=1 // pred_region
      _
    $region25: #{tpu_custom_call.1} parent=1 // pred_fallthru
      _
    // Predicated region
    $region26: #{tpu_custom_call.1} parent=1 // pred_check
      _
    $region27: #{tpu_custom_call.1} parent=1 // pred_check_branch
      %29 = sbr.rel (0) target = $region29
    $region28: #{tpu_custom_call.1} parent=1 // pred_region
      _
    $region29: #{tpu_custom_call.1} parent=1 // pred_fallthru
      _
    // Predicated region
    $region30: #{tpu_custom_call.1} parent=1 // pred_check
      _
    $region31: #{tpu_custom_call.1} parent=1 // pred_check_branch
      %31 = sbr.rel (0) target = $region33
    $region32: #{tpu_custom_call.1} parent=1 // pred_region
      _
    $region33: #{tpu_custom_call.1} parent=1 // pred_fallthru
      _
    // Predicated region
    $region34: #{tpu_custom_call.1} parent=1 // pred_check
      _
    $region35: #{tpu_custom_call.1} parent=1 // pred_check_branch
      %33 = sbr.rel (0) target = $region37
    $region36: #{tpu_custom_call.1} parent=1 // pred_region
      _
    $region37: #{tpu_custom_call.1} parent=1 // pred_fallthru
      _
    // Predicated region
    $region38: #{tpu_custom_call.1} parent=1 // pred_check
      _
    $region39: #{tpu_custom_call.1} parent=1 // pred_check_branch
      %35 = sbr.rel (0) target = $region41
    $region40: #{tpu_custom_call.1} parent=1 // pred_region
      _
    $region41: #{tpu_custom_call.1} parent=1 // pred_fallthru
      _
    %v37 = vld [vmem:[%s0] sm:$0xff]
    %v38 = vld [vmem:[%s0 + $0x8] sm:$0xff]
    %v39 = vlaneseq
    %v40 = vand.u32 %v39, 127
    %41 = vset.pattern.permute.xlu0 0
    %42 = vperm.xlu0 %41, %v37
    %v43 = vpop.permute.xlu0 %42
    %44 = vset.pattern.permute.xlu0 0
    %45 = vperm.xlu0 %44, %v38
    %v46 = vpop.permute.xlu0 %45
    %vm47 = vcmp.eq.s32.totalorder %v40, %v43
    %vm48 = vcmp.eq.s32.totalorder %v40, %v46
    %49 = vset.pattern.permute.xlu0 1
    %50 = vperm.xlu0 %49, %v37
    %v51 = vpop.permute.xlu0 %50
    %52 = vset.pattern.permute.xlu0 1
    %53 = vperm.xlu0 %52, %v38
    %v54 = vpop.permute.xlu0 %53
    %vm55 = vcmp.eq.s32.totalorder %v40, %v51
    %vm56 = vcmp.eq.s32.totalorder %v40, %v54
    %vm57 = vmor %vm47, %vm55
    %vm58 = vmor %vm48, %vm56
    %59 = vset.pattern.permute.xlu0 2
    %60 = vperm.xlu0 %59, %v37
    %v61 = vpop.permute.xlu0 %60
    %62 = vset.pattern.permute.xlu0 2
    %63 = vperm.xlu0 %62, %v38
    %v64 = vpop.permute.xlu0 %63
    %vm65 = vcmp.eq.s32.totalorder %v40, %v61
    %vm66 = vcmp.eq.s32.totalorder %v40, %v64
    %vm67 = vmor %vm57, %vm65
    %vm68 = vmor %vm58, %vm66
    %v69 = vsel %vm67, 1.0, 0.0
    %v70 = vsel %vm68, 1.0, 0.0
    %v71 = vpack.c.bf16 %v70, %v69
    %v72 = vld [vmem:[%s1] sm:$0xf]
    %v73 = vld [vmem:[%s1 + $0x4] sm:$0xf]
    %v74 = vld [vmem:[%s1 + $0x8] sm:$0xf]
    %v75 = vld [vmem:[%s1 + $0xc] sm:$0xf]
    %v76 = vld [vmem:[%s1 + $0x10] sm:$0xf]
    %v77 = vld [vmem:[%s1 + $0x14] sm:$0xf]
    %v78 = vld [vmem:[%s1 + $0x18] sm:$0xf]
    %v79 = vld [vmem:[%s1 + $0x1c] sm:$0xf]
    %v80 = vld [vmem:[%s1 + $0x20] sm:$0xf]
    %v81 = vld [vmem:[%s1 + $0x24] sm:$0xf]
    %v82 = vld [vmem:[%s1 + $0x28] sm:$0xf]
    %v83 = vld [vmem:[%s1 + $0x2c] sm:$0xf]
    %v84 = vld [vmem:[%s1 + $0x30] sm:$0xf]
    %v85 = vld [vmem:[%s1 + $0x34] sm:$0xf]
    %v86 = vld [vmem:[%s1 + $0x38] sm:$0xf]
    %v87 = vld [vmem:[%s1 + $0x3c] sm:$0xf]
    %v104 = vunpack.c.l.b16 %v72
    %v105 = vunpack.c.l.b16 %v73
    %v106 = vunpack.c.l.b16 %v74
    %v107 = vunpack.c.l.b16 %v75
    %v108 = vunpack.c.l.b16 %v76
    %v109 = vunpack.c.l.b16 %v77
    %v110 = vunpack.c.l.b16 %v78
    %v111 = vunpack.c.l.b16 %v79
    %v112 = vunpack.c.l.b16 %v80
    %v113 = vunpack.c.l.b16 %v81
    %v114 = vunpack.c.l.b16 %v82
    %v115 = vunpack.c.l.b16 %v83
    %v116 = vunpack.c.l.b16 %v84
    %v117 = vunpack.c.l.b16 %v85
    %v118 = vunpack.c.l.b16 %v86
    %v119 = vunpack.c.l.b16 %v87
    %v120 = vpack.c.b16 %v105, %v104
    %v121 = vpack.c.b16 %v107, %v106
    %v122 = vpack.c.b16 %v109, %v108
    %v123 = vpack.c.b16 %v111, %v110
    %v124 = vpack.c.b16 %v113, %v112
    %v125 = vpack.c.b16 %v115, %v114
    %v126 = vpack.c.b16 %v117, %v116
    %v127 = vpack.c.b16 %v119, %v118
    %136 = vmatprep.subr.bf16.mxu0 0
    %137 = vmatpush1.bf16.msra.mxu0 %v120
    %138 = vmatprep.subr.bf16.mxu0 0
    %139 = vmatpush1.bf16.msra.mxu0 %v121
    %140 = vmatprep.subr.bf16.mxu0 0
    %141 = vmatpush1.bf16.msra.mxu0 %v122
    %142 = vmatprep.subr.bf16.mxu0 0
    %143 = vmatpush1.bf16.msra.mxu0 %v123
    %144 = vmatprep.subr.bf16.mxu0 0
    %145 = vmatpush1.bf16.msra.mxu0 %v124
    %146 = vmatprep.subr.bf16.mxu0 0
    %147 = vmatpush1.bf16.msra.mxu0 %v125
    %148 = vmatprep.subr.bf16.mxu0 0
    %149 = vmatpush1.bf16.msra.mxu0 %v126
    %150 = vmatprep.subr.bf16.mxu0 0
    %151 = vmatpush1.bf16.msra.mxu0 %v127
    %152 = vmatprep.subr.bf16.mxu0 0
    %153 = vmatpush1.bf16.msra.mxu0 0
    %154 = vmatprep.subr.bf16.mxu0 0
    %155 = vmatpush1.bf16.msra.mxu0 0
    %156 = vmatprep.subr.bf16.mxu0 0
    %157 = vmatpush1.bf16.msra.mxu0 0
    %158 = vmatprep.subr.bf16.mxu0 0
    %159 = vmatpush1.bf16.msra.mxu0 0
    %160 = vmatprep.subr.bf16.mxu0 0
    %161 = vmatpush1.bf16.msra.mxu0 0
    %162 = vmatprep.subr.bf16.mxu0 0
    %163 = vmatpush1.bf16.msra.mxu0 0
    %164 = vmatprep.subr.bf16.mxu0 0
    %165 = vmatpush1.bf16.msra.mxu0 0
    %166 = vmatprep.subr.bf16.mxu0 0
    %167 = vmatpush1.bf16.msra.mxu0 0
    %168 = vmatprep.mubr.bf16.mxu0 0
    %169 = vmatmul.mubr.bf16.gmra.mrb[0].mxu0 %v71
    %v170 = vpop.f32.mrb[0].mxu0
    %v171 = vadd.f32 0.0, %v170
    %v172 = vpop.f32.mrb[0].mxu0
    %v173 = vpop.f32.mrb[0].mxu0
    %v174 = vadd.f32 0.0, %v173
    %v175 = vpop.f32.mrb[0].mxu0
    %176 = vdwg.mxu0
    %v177 = vld [vmem:[%s9] sm:$0x1]
    %v178 = vld [vmem:[%s9 + $0x1] sm:$0x1]
    %vm179 = vcmask 261120
    %v180 = vsel %vm179, %v171, 0.0
    %181 = vadd.xlane.f32.xlu0 %v180
    %v182 = vpop.xlane.xlu0 %181
    %v183 = vsel %vm179, %v174, 0.0
    %184 = vadd.xlane.f32.xlu0 %v183
    %v185 = vpop.xlane.xlu0 %184
    %v186 = vrcp.pop 32.0
    %v187 = vmul.f32 %v182, %v186
    %v188 = vmul.f32 %v185, %v186
    %v189 = vsub.f32 %v171, %v187
    %v190 = vsub.f32 %v174, %v188
    %v191 = vmul.f32 %v189, %v189
    %v192 = vmul.f32 %v190, %v190
    %v193 = vsel %vm179, %v191, 0.0
    %194 = vadd.xlane.f32.xlu0 %v193
    %v195 = vpop.xlane.xlu0 %194
    %v196 = vsel %vm179, %v192, 0.0
    %197 = vadd.xlane.f32.xlu0 %v196
    %v198 = vpop.xlane.xlu0 %197
    %v199 = vmul.f32 %v195, %v186
    %v200 = vmul.f32 %v198, %v186
    %v201 = vadd.f32 %v199, 1e-12
    %v202 = vadd.f32 %v200, 1e-12
    %v203 = vrsqrt.pop %v201
    %v204 = vrsqrt.pop %v202
    %v205 = vmul.f32 %v189, %v203
    %v206 = vmul.f32 %v190, %v204
    %v207 = vlaneseq
    %v208 = vshrl.u32 %v207, 7
    %v209 = vsub.s32 0, %v208
    %v210 = vrot.slane %v177, %v209
    %v211 = vmul.f32 %v205, %v210
    %v212 = vmul.f32 %v206, %v210
    %v213 = vlaneseq
    %v214 = vshrl.u32 %v213, 7
    %v215 = vsub.s32 0, %v214
    %v216 = vrot.slane %v178, %v215
    %v217 = vadd.f32 %v211, %v216
    %v218 = vadd.f32 %v212, %v216
    %219 = vset.pattern.permute.xlu0 3
    %220 = vperm.xlu0 %219, %v37
    %v221 = vpop.permute.xlu0 %220
    %222 = vset.pattern.permute.xlu0 3
    %223 = vperm.xlu0 %222, %v38
    %v224 = vpop.permute.xlu0 %223
    %vm225 = vcmp.ge.s32.totalorder %v40, %v221
    %vm226 = vcmp.ge.s32.totalorder %v40, %v224
    %227 = vset.pattern.permute.xlu0 4
    %228 = vperm.xlu0 %227, %v37
    %v229 = vpop.permute.xlu0 %228
    %230 = vset.pattern.permute.xlu0 4
    %231 = vperm.xlu0 %230, %v38
    %v232 = vpop.permute.xlu0 %231
    %vm233 = vcmp.lt.s32.totalorder %v40, %v229
    %vm234 = vcmp.lt.s32.totalorder %v40, %v232
    %vm235 = vmand %vm225, %vm233
    %vm236 = vmand %vm226, %vm234
    %v237 = vsel %vm235, 0.0, -10000.0
    %v238 = vsel %vm236, 0.0, -10000.0
    %v239 = vpack.c.bf16 %v218, %v217
    %v240 = vld [vmem:[%s2] sm:$0xf]
    %v241 = vld [vmem:[%s2 + $0x4] sm:$0xf]
    %v242 = vld [vmem:[%s2 + $0x8] sm:$0xf]
    %v243 = vld [vmem:[%s2 + $0xc] sm:$0xf]
    %v244 = vld [vmem:[%s3] sm:$0x1]
    %v246 = vlaneseq
    %v247 = vshrl.u32 %v246, 7
    %v248 = vsub.s32 0, %v247
    %v249 = vrot.slane %v244, %v248
    %v255 = vunpack.c.l.b16 %v240
    %v256 = vunpack.c.l.b16 %v241
    %v257 = vunpack.c.l.b16 %v242
    %v258 = vunpack.c.l.b16 %v243
    %v259 = vpack.c.b16 %v256, %v255
    %v260 = vpack.c.b16 %v258, %v257
    %v264 = vsel %vm179, %v239, 0
    %266 = vmatprep.subr.bf16.mxu0 0
    %267 = vmatpush1.bf16.msra.mxu0 %v259
    %268 = vmatprep.subr.bf16.mxu0 0
    %269 = vmatpush1.bf16.msra.mxu0 %v260
    %270 = vmatprep.subr.bf16.mxu0 0
    %271 = vmatpush1.bf16.msra.mxu0 0
    %272 = vmatprep.subr.bf16.mxu0 0
    %273 = vmatpush1.bf16.msra.mxu0 0
    %274 = vmatprep.subr.bf16.mxu0 0
    %275 = vmatpush1.bf16.msra.mxu0 0
    %276 = vmatprep.subr.bf16.mxu0 0
    %277 = vmatpush1.bf16.msra.mxu0 0
    %278 = vmatprep.subr.bf16.mxu0 0
    %279 = vmatpush1.bf16.msra.mxu0 0
    %280 = vmatprep.subr.bf16.mxu0 0
    %281 = vmatpush1.bf16.msra.mxu0 0
    %282 = vmatprep.subr.bf16.mxu0 0
    %283 = vmatpush1.bf16.msra.mxu0 0
    %284 = vmatprep.subr.bf16.mxu0 0
    %285 = vmatpush1.bf16.msra.mxu0 0
    %286 = vmatprep.subr.bf16.mxu0 0
    %287 = vmatpush1.bf16.msra.mxu0 0
    %288 = vmatprep.subr.bf16.mxu0 0
    %289 = vmatpush1.bf16.msra.mxu0 0
    %290 = vmatprep.subr.bf16.mxu0 0
    %291 = vmatpush1.bf16.msra.mxu0 0
    %292 = vmatprep.subr.bf16.mxu0 0
    %293 = vmatpush1.bf16.msra.mxu0 0
    %294 = vmatprep.subr.bf16.mxu0 0
    %295 = vmatpush1.bf16.msra.mxu0 0
    %296 = vmatprep.subr.bf16.mxu0 0
    %297 = vmatpush1.bf16.msra.mxu0 0
    %298 = vmatprep.mubr.bf16.mxu0 0
    %299 = vmatmul.mubr.bf16.gmra.mrb[0].mxu0 %v264
    %v300 = vpop.f32.mrb[0].mxu0
    %v301 = vadd.f32 %v249, %v300
    %v302 = vpop.f32.mrb[0].mxu0
    %v303 = vpop.f32.mrb[0].mxu0
    %v304 = vadd.f32 %v249, %v303
    %v305 = vpop.f32.mrb[0].mxu0
    %306 = vdwg.mxu0
    %s307 = scalar_lea.vmem %s2, 64
    %v308 = vld [vmem:[%s307] sm:$0xf]
    %v309 = vld [vmem:[%s307 + $0x4] sm:$0xf]
    %v310 = vld [vmem:[%s307 + $0x8] sm:$0xf]
    %v311 = vld [vmem:[%s307 + $0xc] sm:$0xf]
    %s312 = scalar_lea.vmem %s3, 4
    %v313 = vld [vmem:[%s312] sm:$0x1]
    %v315 = vlaneseq
    %v316 = vshrl.u32 %v315, 7
    %v317 = vsub.s32 0, %v316
    %v318 = vrot.slane %v313, %v317
    %v324 = vunpack.c.l.b16 %v308
    %v325 = vunpack.c.l.b16 %v309
    %v326 = vunpack.c.l.b16 %v310
    %v327 = vunpack.c.l.b16 %v311
    %v328 = vpack.c.b16 %v325, %v324
    %v329 = vpack.c.b16 %v327, %v326
    %332 = vmatprep.subr.bf16.mxu0 0
    %333 = vmatpush1.bf16.msra.mxu0 %v328
    %334 = vmatprep.subr.bf16.mxu0 0
    %335 = vmatpush1.bf16.msra.mxu0 %v329
    %336 = vmatprep.subr.bf16.mxu0 0
    %337 = vmatpush1.bf16.msra.mxu0 0
    %338 = vmatprep.subr.bf16.mxu0 0
    %339 = vmatpush1.bf16.msra.mxu0 0
    %340 = vmatprep.subr.bf16.mxu0 0
    %341 = vmatpush1.bf16.msra.mxu0 0
    %342 = vmatprep.subr.bf16.mxu0 0
    %343 = vmatpush1.bf16.msra.mxu0 0
    %344 = vmatprep.subr.bf16.mxu0 0
    %345 = vmatpush1.bf16.msra.mxu0 0
    %346 = vmatprep.subr.bf16.mxu0 0
    %347 = vmatpush1.bf16.msra.mxu0 0
    %348 = vmatprep.subr.bf16.mxu0 0
    %349 = vmatpush1.bf16.msra.mxu0 0
    %350 = vmatprep.subr.bf16.mxu0 0
    %351 = vmatpush1.bf16.msra.mxu0 0
    %352 = vmatprep.subr.bf16.mxu0 0
    %353 = vmatpush1.bf16.msra.mxu0 0
    %354 = vmatprep.subr.bf16.mxu0 0
    %355 = vmatpush1.bf16.msra.mxu0 0
    %356 = vmatprep.subr.bf16.mxu0 0
    %357 = vmatpush1.bf16.msra.mxu0 0
    %358 = vmatprep.subr.bf16.mxu0 0
    %359 = vmatpush1.bf16.msra.mxu0 0
    %360 = vmatprep.subr.bf16.mxu0 0
    %361 = vmatpush1.bf16.msra.mxu0 0
    %362 = vmatprep.subr.bf16.mxu0 0
    %363 = vmatpush1.bf16.msra.mxu0 0
    %364 = vmatprep.mubr.bf16.mxu0 0
    %365 = vmatmul.mubr.bf16.gmra.mrb[0].mxu0 %v264
    %v366 = vpop.f32.mrb[0].mxu0
    %v367 = vadd.f32 %v318, %v366
    %v368 = vpop.f32.mrb[0].mxu0
    %v369 = vpop.f32.mrb[0].mxu0
    %v370 = vadd.f32 %v318, %v369
    %v371 = vpop.f32.mrb[0].mxu0
    %372 = vdwg.mxu0
    %s373 = scalar_lea.vmem %s2, 128
    %v374 = vld [vmem:[%s373] sm:$0xf]
    %v375 = vld [vmem:[%s373 + $0x4] sm:$0xf]
    %v376 = vld [vmem:[%s373 + $0x8] sm:$0xf]
    %v377 = vld [vmem:[%s373 + $0xc] sm:$0xf]
    %s378 = scalar_lea.vmem %s3, 8
    %v379 = vld [vmem:[%s378] sm:$0x1]
    %v381 = vlaneseq
    %v382 = vshrl.u32 %v381, 7
    %v383 = vsub.s32 0, %v382
    %v384 = vrot.slane %v379, %v383
    %v390 = vunpack.c.l.b16 %v374
    %v391 = vunpack.c.l.b16 %v375
    %v392 = vunpack.c.l.b16 %v376
    %v393 = vunpack.c.l.b16 %v377
    %v394 = vpack.c.b16 %v391, %v390
    %v395 = vpack.c.b16 %v393, %v392
    %398 = vmatprep.subr.bf16.mxu0 0
    %399 = vmatpush1.bf16.msra.mxu0 %v394
    %400 = vmatprep.subr.bf16.mxu0 0
    %401 = vmatpush1.bf16.msra.mxu0 %v395
    %402 = vmatprep.subr.bf16.mxu0 0
    %403 = vmatpush1.bf16.msra.mxu0 0
    %404 = vmatprep.subr.bf16.mxu0 0
    %405 = vmatpush1.bf16.msra.mxu0 0
    %406 = vmatprep.subr.bf16.mxu0 0
    %407 = vmatpush1.bf16.msra.mxu0 0
    %408 = vmatprep.subr.bf16.mxu0 0
    %409 = vmatpush1.bf16.msra.mxu0 0
    %410 = vmatprep.subr.bf16.mxu0 0
    %411 = vmatpush1.bf16.msra.mxu0 0
    %412 = vmatprep.subr.bf16.mxu0 0
    %413 = vmatpush1.bf16.msra.mxu0 0
    %414 = vmatprep.subr.bf16.mxu0 0
    %415 = vmatpush1.bf16.msra.mxu0 0
    %416 = vmatprep.subr.bf16.mxu0 0
    %417 = vmatpush1.bf16.msra.mxu0 0
    %418 = vmatprep.subr.bf16.mxu0 0
    %419 = vmatpush1.bf16.msra.mxu0 0
    %420 = vmatprep.subr.bf16.mxu0 0
    %421 = vmatpush1.bf16.msra.mxu0 0
    %422 = vmatprep.subr.bf16.mxu0 0
    %423 = vmatpush1.bf16.msra.mxu0 0
    %424 = vmatprep.subr.bf16.mxu0 0
    %425 = vmatpush1.bf16.msra.mxu0 0
    %426 = vmatprep.subr.bf16.mxu0 0
    %427 = vmatpush1.bf16.msra.mxu0 0
    %428 = vmatprep.subr.bf16.mxu0 0
    %429 = vmatpush1.bf16.msra.mxu0 0
    %430 = vmatprep.mubr.bf16.mxu0 0
    %431 = vmatmul.mubr.bf16.gmra.mrb[0].mxu0 %v264
    %v432 = vpop.f32.mrb[0].mxu0
    %v433 = vadd.f32 %v384, %v432
    %v434 = vpop.f32.mrb[0].mxu0
    %v435 = vpop.f32.mrb[0].mxu0
    %v436 = vadd.f32 %v384, %v435
    %v437 = vpop.f32.mrb[0].mxu0
    %438 = vdwg.mxu0
    %vm439 = vcmask 64512
    %v441 = vsel %vm439, %v301, 0
    %v444 = vsel %vm439, %v304, 0
    %v447 = vsel %vm439, %v367, 0
    %v450 = vsel %vm439, %v370, 0
    %452 = vmatprep.subr.mxu0 0.0
    %453 = vmatpush1.xpose.msra.mxu0 %v447
    %454 = vmatprep.subr.mxu0 0.0
    %455 = vmatpush1.xpose.msra.mxu0 %v450
    %456 = vmatprep.subr.mxu0 0.0
    %457 = vmatpush1.xpose.msra.mxu0 0.0
    %458 = vmatprep.subr.mxu0 0.0
    %459 = vmatpush1.xpose.msra.mxu0 0.0
    %460 = vmatprep.subr.mxu0 0.0
    %461 = vmatpush1.xpose.msra.mxu0 0.0
    %462 = vmatprep.subr.mxu0 0.0
    %463 = vmatpush1.xpose.msra.mxu0 0.0
    %464 = vmatprep.subr.mxu0 0.0
    %465 = vmatpush1.xpose.msra.mxu0 0.0
    %466 = vmatprep.subr.mxu0 0.0
    %467 = vmatpush1.xpose.msra.mxu0 0.0
    %468 = vmatprep.subr.mxu0 0.0
    %469 = vmatpush1.xpose.msra.mxu0 0.0
    %470 = vmatprep.subr.mxu0 0.0
    %471 = vmatpush1.xpose.msra.mxu0 0.0
    %472 = vmatprep.subr.mxu0 0.0
    %473 = vmatpush1.xpose.msra.mxu0 0.0
    %474 = vmatprep.subr.mxu0 0.0
    %475 = vmatpush1.xpose.msra.mxu0 0.0
    %476 = vmatprep.subr.mxu0 0.0
    %477 = vmatpush1.xpose.msra.mxu0 0.0
    %478 = vmatprep.subr.mxu0 0.0
    %479 = vmatpush1.xpose.msra.mxu0 0.0
    %480 = vmatprep.subr.mxu0 0.0
    %481 = vmatpush1.xpose.msra.mxu0 0.0
    %482 = vmatprep.subr.mxu0 0.0
    %483 = vmatpush1.xpose.msra.mxu0 0.0
    %484 = vmatprep.subr.mxu0 0.0
    %485 = vmatpush1.xpose.msra.mxu0 0.0
    %486 = vmatprep.subr.mxu0 0.0
    %487 = vmatpush1.xpose.msra.mxu0 0.0
    %488 = vmatprep.subr.mxu0 0.0
    %489 = vmatpush1.xpose.msra.mxu0 0.0
    %490 = vmatprep.subr.mxu0 0.0
    %491 = vmatpush1.xpose.msra.mxu0 0.0
    %492 = vmatprep.subr.mxu0 0.0
    %493 = vmatpush1.xpose.msra.mxu0 0.0
    %494 = vmatprep.subr.mxu0 0.0
    %495 = vmatpush1.xpose.msra.mxu0 0.0
    %496 = vmatprep.subr.mxu0 0.0
    %497 = vmatpush1.xpose.msra.mxu0 0.0
    %498 = vmatprep.subr.mxu0 0.0
    %499 = vmatpush1.xpose.msra.mxu0 0.0
    %500 = vmatprep.subr.mxu0 0.0
    %501 = vmatpush1.xpose.msra.mxu0 0.0
    %502 = vmatprep.subr.mxu0 0.0
    %503 = vmatpush1.xpose.msra.mxu0 0.0
    %504 = vmatprep.subr.mxu0 0.0
    %505 = vmatpush1.xpose.msra.mxu0 0.0
    %506 = vmatprep.subr.mxu0 0.0
    %507 = vmatpush1.xpose.msra.mxu0 0.0
    %508 = vmatprep.subr.mxu0 0.0
    %509 = vmatpush1.xpose.msra.mxu0 0.0
    %510 = vmatprep.subr.mxu0 0.0
    %511 = vmatpush1.xpose.msra.mxu0 0.0
    %512 = vmatprep.subr.mxu0 0.0
    %513 = vmatpush1.xpose.msra.mxu0 0.0
    %514 = vmatprep.subr.mxu0 0.0
    %515 = vmatpush1.xpose.msra.mxu0 0.0
    %516 = vmatprep.mubr.f32.mxu0 0.0
    %517 = vmatmul.mubr.f32.gmra.mrb[0].mxu0 %v441
    %v518 = vpop.f32.mrb[0].mxu0
    %v519 = vadd.f32 0.0, %v518
    %v520 = vpop.f32.mrb[0].mxu0
    %521 = vmatprep.mubr.f32.mxu0 0.0
    %522 = vmatmul.mubr.f32.gmra.mrb[0].mxu0 %v444
    %v523 = vpop.f32.mrb[0].mxu0
    %v524 = vadd.f32 0.0, %v523
    %v525 = vpop.f32.mrb[0].mxu0
    %526 = vdwg.mxu0
    %v527 = vmul.f32 %v519, 0.35355338
    %v528 = vmul.f32 %v524, 0.35355338
    %v529 = vadd.f32 %v527, %v237
    %v530 = vadd.f32 %v528, %v238
    %vm531 = vcmask 130048
    %v532 = vsel %vm531, %v529, -inf
    %533 = vmax.xlane.f32.xlu0 %v532
    %v534 = vpop.xlane.xlu0 %533
    %v535 = vsel %vm531, %v530, -inf
    %536 = vmax.xlane.f32.xlu0 %v535
    %v537 = vpop.xlane.xlu0 %536
    %v538 = vsub.f32 %v529, %v534
    %v539 = vsub.f32 %v530, %v537
    %v540 = vmul.f32 %v538, 1.442695
    %v541 = vpow.pop %v540
    %v542 = vmul.f32 %v539, 1.442695
    %v543 = vpow.pop %v542
    %v544 = vsel %vm531, %v541, 0.0
    %545 = vadd.xlane.f32.xlu0 %v544
    %v546 = vpop.xlane.xlu0 %545
    %v547 = vsel %vm531, %v543, 0.0
    %548 = vadd.xlane.f32.xlu0 %v547
    %v549 = vpop.xlane.xlu0 %548
    %v550 = vrcp.pop %v546
    %v551 = vrcp.pop %v549
    %v552 = vmul.f32 %v541, %v550
    %v553 = vmul.f32 %v543, %v551
    %v555 = vsel %vm531, %v552, 0
    %v558 = vsel %vm531, %v553, 0
    %560 = vmatprep.subr.mxu0 0.0
    %561 = vmatpush1.msra.mxu0 %v433
    %562 = vmatprep.subr.mxu0 0.0
    %563 = vmatpush1.msra.mxu0 %v436
    %564 = vmatprep.subr.mxu0 0.0
    %565 = vmatpush1.msra.mxu0 0.0
    %566 = vmatprep.subr.mxu0 0.0
    %567 = vmatpush1.msra.mxu0 0.0
    %568 = vmatprep.subr.mxu0 0.0
    %569 = vmatpush1.msra.mxu0 0.0
    %570 = vmatprep.subr.mxu0 0.0
    %571 = vmatpush1.msra.mxu0 0.0
    %572 = vmatprep.subr.mxu0 0.0
    %573 = vmatpush1.msra.mxu0 0.0
    %574 = vmatprep.subr.mxu0 0.0
    %575 = vmatpush1.msra.mxu0 0.0
    %576 = vmatprep.subr.mxu0 0.0
    %577 = vmatpush1.msra.mxu0 0.0
    %578 = vmatprep.subr.mxu0 0.0
    %579 = vmatpush1.msra.mxu0 0.0
    %580 = vmatprep.subr.mxu0 0.0
    %581 = vmatpush1.msra.mxu0 0.0
    %582 = vmatprep.subr.mxu0 0.0
    %583 = vmatpush1.msra.mxu0 0.0
    %584 = vmatprep.subr.mxu0 0.0
    %585 = vmatpush1.msra.mxu0 0.0
    %586 = vmatprep.subr.mxu0 0.0
    %587 = vmatpush1.msra.mxu0 0.0
    %588 = vmatprep.subr.mxu0 0.0
    %589 = vmatpush1.msra.mxu0 0.0
    %590 = vmatprep.subr.mxu0 0.0
    %591 = vmatpush1.msra.mxu0 0.0
    %592 = vmatprep.subr.mxu0 0.0
    %593 = vmatpush1.msra.mxu0 0.0
    %594 = vmatprep.subr.mxu0 0.0
    %595 = vmatpush1.msra.mxu0 0.0
    %596 = vmatprep.subr.mxu0 0.0
    %597 = vmatpush1.msra.mxu0 0.0
    %598 = vmatprep.subr.mxu0 0.0
    %599 = vmatpush1.msra.mxu0 0.0
    %600 = vmatprep.subr.mxu0 0.0
    %601 = vmatpush1.msra.mxu0 0.0
    %602 = vmatprep.subr.mxu0 0.0
    %603 = vmatpush1.msra.mxu0 0.0
    %604 = vmatprep.subr.mxu0 0.0
    %605 = vmatpush1.msra.mxu0 0.0
    %606 = vmatprep.subr.mxu0 0.0
    %607 = vmatpush1.msra.mxu0 0.0
    %608 = vmatprep.subr.mxu0 0.0
    %609 = vmatpush1.msra.mxu0 0.0
    %610 = vmatprep.subr.mxu0 0.0
    %611 = vmatpush1.msra.mxu0 0.0
    %612 = vmatprep.subr.mxu0 0.0
    %613 = vmatpush1.msra.mxu0 0.0
    %614 = vmatprep.subr.mxu0 0.0
    %615 = vmatpush1.msra.mxu0 0.0
    %616 = vmatprep.subr.mxu0 0.0
    %617 = vmatpush1.msra.mxu0 0.0
    %618 = vmatprep.subr.mxu0 0.0
    %619 = vmatpush1.msra.mxu0 0.0
    %620 = vmatprep.subr.mxu0 0.0
    %621 = vmatpush1.msra.mxu0 0.0
    %622 = vmatprep.subr.mxu0 0.0
    %623 = vmatpush1.msra.mxu0 0.0
    %624 = vmatprep.mubr.f32.mxu0 0.0
    %625 = vmatmul.mubr.f32.gmra.mrb[0].mxu0 %v555
    %v626 = vpop.f32.mrb[0].mxu0
    %v627 = vadd.f32 0.0, %v626
    %v628 = vpop.f32.mrb[0].mxu0
    %629 = vmatprep.mubr.f32.mxu0 0.0
    %630 = vmatmul.mubr.f32.gmra.mrb[0].mxu0 %v558
    %v631 = vpop.f32.mrb[0].mxu0
    %v632 = vadd.f32 0.0, %v631
    %v633 = vpop.f32.mrb[0].mxu0
    %634 = vdwg.mxu0
    %v635 = vpack.c.bf16 %v632, %v627
    %v636 = vld [vmem:[%s4] sm:$0xf]
    %s637 = scalar_lea.vmem %s2, 16
    %v638 = vld [vmem:[%s637] sm:$0xf]
    %v639 = vld [vmem:[%s637 + $0x4] sm:$0xf]
    %v640 = vld [vmem:[%s637 + $0x8] sm:$0xf]
    %v641 = vld [vmem:[%s637 + $0xc] sm:$0xf]
    %s642 = scalar_lea.vmem %s3, 1
    %v643 = vld [vmem:[%s642] sm:$0x1]
    %v645 = vlaneseq
    %v646 = vshrl.u32 %v645, 7
    %v647 = vsub.s32 0, %v646
    %v648 = vrot.slane %v643, %v647
    %v654 = vunpack.c.l.b16 %v638
    %v655 = vunpack.c.l.b16 %v639
    %v656 = vunpack.c.l.b16 %v640
    %v657 = vunpack.c.l.b16 %v641
    %v658 = vpack.c.b16 %v655, %v654
    %v659 = vpack.c.b16 %v657, %v656
    %662 = vmatprep.subr.bf16.mxu0 0
    %663 = vmatpush1.bf16.msra.mxu0 %v658
    %664 = vmatprep.subr.bf16.mxu0 0
    %665 = vmatpush1.bf16.msra.mxu0 %v659
    %666 = vmatprep.subr.bf16.mxu0 0
    %667 = vmatpush1.bf16.msra.mxu0 0
    %668 = vmatprep.subr.bf16.mxu0 0
    %669 = vmatpush1.bf16.msra.mxu0 0
    %670 = vmatprep.subr.bf16.mxu0 0
    %671 = vmatpush1.bf16.msra.mxu0 0
    %672 = vmatprep.subr.bf16.mxu0 0
    %673 = vmatpush1.bf16.msra.mxu0 0
    %674 = vmatprep.subr.bf16.mxu0 0
    %675 = vmatpush1.bf16.msra.mxu0 0
    %676 = vmatprep.subr.bf16.mxu0 0
    %677 = vmatpush1.bf16.msra.mxu0 0
    %678 = vmatprep.subr.bf16.mxu0 0
    %679 = vmatpush1.bf16.msra.mxu0 0
    %680 = vmatprep.subr.bf16.mxu0 0
    %681 = vmatpush1.bf16.msra.mxu0 0
    %682 = vmatprep.subr.bf16.mxu0 0
    %683 = vmatpush1.bf16.msra.mxu0 0
    %684 = vmatprep.subr.bf16.mxu0 0
    %685 = vmatpush1.bf16.msra.mxu0 0
    %686 = vmatprep.subr.bf16.mxu0 0
    %687 = vmatpush1.bf16.msra.mxu0 0
    %688 = vmatprep.subr.bf16.mxu0 0
    %689 = vmatpush1.bf16.msra.mxu0 0
    %690 = vmatprep.subr.bf16.mxu0 0
    %691 = vmatpush1.bf16.msra.mxu0 0
    %692 = vmatprep.subr.bf16.mxu0 0
    %693 = vmatpush1.bf16.msra.mxu0 0
    %694 = vmatprep.mubr.bf16.mxu0 0
    %695 = vmatmul.mubr.bf16.gmra.mrb[0].mxu0 %v264
    %v696 = vpop.f32.mrb[0].mxu0
    %v697 = vadd.f32 %v648, %v696
    %v698 = vpop.f32.mrb[0].mxu0
    %v699 = vpop.f32.mrb[0].mxu0
    %v700 = vadd.f32 %v648, %v699
    %v701 = vpop.f32.mrb[0].mxu0
    %702 = vdwg.mxu0
    %s703 = scalar_lea.vmem %s2, 80
    %v704 = vld [vmem:[%s703] sm:$0xf]
    %v705 = vld [vmem:[%s703 + $0x4] sm:$0xf]
    %v706 = vld [vmem:[%s703 + $0x8] sm:$0xf]
    %v707 = vld [vmem:[%s703 + $0xc] sm:$0xf]
    %s708 = scalar_lea.vmem %s3, 5
    %v709 = vld [vmem:[%s708] sm:$0x1]
    %v711 = vlaneseq
    %v712 = vshrl.u32 %v711, 7
    %v713 = vsub.s32 0, %v712
    %v714 = vrot.slane %v709, %v713
    %v720 = vunpack.c.l.b16 %v704
    %v721 = vunpack.c.l.b16 %v705
    %v722 = vunpack.c.l.b16 %v706
    %v723 = vunpack.c.l.b16 %v707
    %v724 = vpack.c.b16 %v721, %v720
    %v725 = vpack.c.b16 %v723, %v722
    %728 = vmatprep.subr.bf16.mxu0 0
    %729 = vmatpush1.bf16.msra.mxu0 %v724
    %730 = vmatprep.subr.bf16.mxu0 0
    %731 = vmatpush1.bf16.msra.mxu0 %v725
    %732 = vmatprep.subr.bf16.mxu0 0
    %733 = vmatpush1.bf16.msra.mxu0 0
    %734 = vmatprep.subr.bf16.mxu0 0
    %735 = vmatpush1.bf16.msra.mxu0 0
    %736 = vmatprep.subr.bf16.mxu0 0
    %737 = vmatpush1.bf16.msra.mxu0 0
    %738 = vmatprep.subr.bf16.mxu0 0
    %739 = vmatpush1.bf16.msra.mxu0 0
    %740 = vmatprep.subr.bf16.mxu0 0
    %741 = vmatpush1.bf16.msra.mxu0 0
    %742 = vmatprep.subr.bf16.mxu0 0
    %743 = vmatpush1.bf16.msra.mxu0 0
    %744 = vmatprep.subr.bf16.mxu0 0
    %745 = vmatpush1.bf16.msra.mxu0 0
    %746 = vmatprep.subr.bf16.mxu0 0
    %747 = vmatpush1.bf16.msra.mxu0 0
    %748 = vmatprep.subr.bf16.mxu0 0
    %749 = vmatpush1.bf16.msra.mxu0 0
    %750 = vmatprep.subr.bf16.mxu0 0
    %751 = vmatpush1.bf16.msra.mxu0 0
    %752 = vmatprep.subr.bf16.mxu0 0
    %753 = vmatpush1.bf16.msra.mxu0 0
    %754 = vmatprep.subr.bf16.mxu0 0
    %755 = vmatpush1.bf16.msra.mxu0 0
    %756 = vmatprep.subr.bf16.mxu0 0
    %757 = vmatpush1.bf16.msra.mxu0 0
    %758 = vmatprep.subr.bf16.mxu0 0
    %759 = vmatpush1.bf16.msra.mxu0 0
    %760 = vmatprep.mubr.bf16.mxu0 0
    %761 = vmatmul.mubr.bf16.gmra.mrb[0].mxu0 %v264
    %v762 = vpop.f32.mrb[0].mxu0
    %v763 = vadd.f32 %v714, %v762
    %v764 = vpop.f32.mrb[0].mxu0
    %v765 = vpop.f32.mrb[0].mxu0
    %v766 = vadd.f32 %v714, %v765
    %v767 = vpop.f32.mrb[0].mxu0
    %768 = vdwg.mxu0
    %s769 = scalar_lea.vmem %s2, 144
    %v770 = vld [vmem:[%s769] sm:$0xf]
    %v771 = vld [vmem:[%s769 + $0x4] sm:$0xf]
    %v772 = vld [vmem:[%s769 + $0x8] sm:$0xf]
    %v773 = vld [vmem:[%s769 + $0xc] sm:$0xf]
    %s774 = scalar_lea.vmem %s3, 9
    %v775 = vld [vmem:[%s774] sm:$0x1]
    %v777 = vlaneseq
    %v778 = vshrl.u32 %v777, 7
    %v779 = vsub.s32 0, %v778
    %v780 = vrot.slane %v775, %v779
    %v786 = vunpack.c.l.b16 %v770
    %v787 = vunpack.c.l.b16 %v771
    %v788 = vunpack.c.l.b16 %v772
    %v789 = vunpack.c.l.b16 %v773
    %v790 = vpack.c.b16 %v787, %v786
    %v791 = vpack.c.b16 %v789, %v788
    %794 = vmatprep.subr.bf16.mxu0 0
    %795 = vmatpush1.bf16.msra.mxu0 %v790
    %796 = vmatprep.subr.bf16.mxu0 0
    %797 = vmatpush1.bf16.msra.mxu0 %v791
    %798 = vmatprep.subr.bf16.mxu0 0
    %799 = vmatpush1.bf16.msra.mxu0 0
    %800 = vmatprep.subr.bf16.mxu0 0
    %801 = vmatpush1.bf16.msra.mxu0 0
    %802 = vmatprep.subr.bf16.mxu0 0
    %803 = vmatpush1.bf16.msra.mxu0 0
    %804 = vmatprep.subr.bf16.mxu0 0
    %805 = vmatpush1.bf16.msra.mxu0 0
    %806 = vmatprep.subr.bf16.mxu0 0
    %807 = vmatpush1.bf16.msra.mxu0 0
    %808 = vmatprep.subr.bf16.mxu0 0
    %809 = vmatpush1.bf16.msra.mxu0 0
    %810 = vmatprep.subr.bf16.mxu0 0
    %811 = vmatpush1.bf16.msra.mxu0 0
    %812 = vmatprep.subr.bf16.mxu0 0
    %813 = vmatpush1.bf16.msra.mxu0 0
    %814 = vmatprep.subr.bf16.mxu0 0
    %815 = vmatpush1.bf16.msra.mxu0 0
    %816 = vmatprep.subr.bf16.mxu0 0
    %817 = vmatpush1.bf16.msra.mxu0 0
    %818 = vmatprep.subr.bf16.mxu0 0
    %819 = vmatpush1.bf16.msra.mxu0 0
    %820 = vmatprep.subr.bf16.mxu0 0
    %821 = vmatpush1.bf16.msra.mxu0 0
    %822 = vmatprep.subr.bf16.mxu0 0
    %823 = vmatpush1.bf16.msra.mxu0 0
    %824 = vmatprep.subr.bf16.mxu0 0
    %825 = vmatpush1.bf16.msra.mxu0 0
    %826 = vmatprep.mubr.bf16.mxu0 0
    %827 = vmatmul.mubr.bf16.gmra.mrb[0].mxu0 %v264
    %v828 = vpop.f32.mrb[0].mxu0
    %v829 = vadd.f32 %v780, %v828
    %v830 = vpop.f32.mrb[0].mxu0
    %v831 = vpop.f32.mrb[0].mxu0
    %v832 = vadd.f32 %v780, %v831
    %v833 = vpop.f32.mrb[0].mxu0
    %834 = vdwg.mxu0
    %v836 = vsel %vm439, %v697, 0
    %v839 = vsel %vm439, %v700, 0
    %v842 = vsel %vm439, %v763, 0
    %v845 = vsel %vm439, %v766, 0
    %847 = vmatprep.subr.mxu0 0.0
    %848 = vmatpush1.xpose.msra.mxu0 %v842
    %849 = vmatprep.subr.mxu0 0.0
    %850 = vmatpush1.xpose.msra.mxu0 %v845
    %851 = vmatprep.subr.mxu0 0.0
    %852 = vmatpush1.xpose.msra.mxu0 0.0
    %853 = vmatprep.subr.mxu0 0.0
    %854 = vmatpush1.xpose.msra.mxu0 0.0
    %855 = vmatprep.subr.mxu0 0.0
    %856 = vmatpush1.xpose.msra.mxu0 0.0
    %857 = vmatprep.subr.mxu0 0.0
    %858 = vmatpush1.xpose.msra.mxu0 0.0
    %859 = vmatprep.subr.mxu0 0.0
    %860 = vmatpush1.xpose.msra.mxu0 0.0
    %861 = vmatprep.subr.mxu0 0.0
    %862 = vmatpush1.xpose.msra.mxu0 0.0
    %863 = vmatprep.subr.mxu0 0.0
    %864 = vmatpush1.xpose.msra.mxu0 0.0
    %865 = vmatprep.subr.mxu0 0.0
    %866 = vmatpush1.xpose.msra.mxu0 0.0
    %867 = vmatprep.subr.mxu0 0.0
    %868 = vmatpush1.xpose.msra.mxu0 0.0
    %869 = vmatprep.subr.mxu0 0.0
    %870 = vmatpush1.xpose.msra.mxu0 0.0
    %871 = vmatprep.subr.mxu0 0.0
    %872 = vmatpush1.xpose.msra.mxu0 0.0
    %873 = vmatprep.subr.mxu0 0.0
    %874 = vmatpush1.xpose.msra.mxu0 0.0
    %875 = vmatprep.subr.mxu0 0.0
    %876 = vmatpush1.xpose.msra.mxu0 0.0
    %877 = vmatprep.subr.mxu0 0.0
    %878 = vmatpush1.xpose.msra.mxu0 0.0
    %879 = vmatprep.subr.mxu0 0.0
    %880 = vmatpush1.xpose.msra.mxu0 0.0
    %881 = vmatprep.subr.mxu0 0.0
    %882 = vmatpush1.xpose.msra.mxu0 0.0
    %883 = vmatprep.subr.mxu0 0.0
    %884 = vmatpush1.xpose.msra.mxu0 0.0
    %885 = vmatprep.subr.mxu0 0.0
    %886 = vmatpush1.xpose.msra.mxu0 0.0
    %887 = vmatprep.subr.mxu0 0.0
    %888 = vmatpush1.xpose.msra.mxu0 0.0
    %889 = vmatprep.subr.mxu0 0.0
    %890 = vmatpush1.xpose.msra.mxu0 0.0
    %891 = vmatprep.subr.mxu0 0.0
    %892 = vmatpush1.xpose.msra.mxu0 0.0
    %893 = vmatprep.subr.mxu0 0.0
    %894 = vmatpush1.xpose.msra.mxu0 0.0
    %895 = vmatprep.subr.mxu0 0.0
    %896 = vmatpush1.xpose.msra.mxu0 0.0
    %897 = vmatprep.subr.mxu0 0.0
    %898 = vmatpush1.xpose.msra.mxu0 0.0
    %899 = vmatprep.subr.mxu0 0.0
    %900 = vmatpush1.xpose.msra.mxu0 0.0
    %901 = vmatprep.subr.mxu0 0.0
    %902 = vmatpush1.xpose.msra.mxu0 0.0
    %903 = vmatprep.subr.mxu0 0.0
    %904 = vmatpush1.xpose.msra.mxu0 0.0
    %905 = vmatprep.subr.mxu0 0.0
    %906 = vmatpush1.xpose.msra.mxu0 0.0
    %907 = vmatprep.subr.mxu0 0.0
    %908 = vmatpush1.xpose.msra.mxu0 0.0
    %909 = vmatprep.subr.mxu0 0.0
    %910 = vmatpush1.xpose.msra.mxu0 0.0
    %911 = vmatprep.mubr.f32.mxu0 0.0
    %912 = vmatmul.mubr.f32.gmra.mrb[0].mxu0 %v836
    %v913 = vpop.f32.mrb[0].mxu0
    %v914 = vadd.f32 0.0, %v913
    %v915 = vpop.f32.mrb[0].mxu0
    %916 = vmatprep.mubr.f32.mxu0 0.0
    %917 = vmatmul.mubr.f32.gmra.mrb[0].mxu0 %v839
    %v918 = vpop.f32.mrb[0].mxu0
    %v919 = vadd.f32 0.0, %v918
    %v920 = vpop.f32.mrb[0].mxu0
    %921 = vdwg.mxu0
    %v922 = vmul.f32 %v914, 0.35355338
    %v923 = vmul.f32 %v919, 0.35355338
    %v924 = vadd.f32 %v922, %v237
    %v925 = vadd.f32 %v923, %v238
    %v926 = vsel %vm531, %v924, -inf
    %927 = vmax.xlane.f32.xlu0 %v926
    %v928 = vpop.xlane.xlu0 %927
    %v929 = vsel %vm531, %v925, -inf
    %930 = vmax.xlane.f32.xlu0 %v929
    %v931 = vpop.xlane.xlu0 %930
    %v932 = vsub.f32 %v924, %v928
    %v933 = vsub.f32 %v925, %v931
    %v934 = vmul.f32 %v932, 1.442695
    %v935 = vpow.pop %v934
    %v936 = vmul.f32 %v933, 1.442695
    %v937 = vpow.pop %v936
    %v938 = vsel %vm531, %v935, 0.0
    %939 = vadd.xlane.f32.xlu0 %v938
    %v940 = vpop.xlane.xlu0 %939
    %v941 = vsel %vm531, %v937, 0.0
    %942 = vadd.xlane.f32.xlu0 %v941
    %v943 = vpop.xlane.xlu0 %942
    %v944 = vrcp.pop %v940
    %v945 = vrcp.pop %v943
    %v946 = vmul.f32 %v935, %v944
    %v947 = vmul.f32 %v937, %v945
    %v949 = vsel %vm531, %v946, 0
    %v952 = vsel %vm531, %v947, 0
    %954 = vmatprep.subr.mxu0 0.0
    %955 = vmatpush1.msra.mxu0 %v829
    %956 = vmatprep.subr.mxu0 0.0
    %957 = vmatpush1.msra.mxu0 %v832
    %958 = vmatprep.subr.mxu0 0.0
    %959 = vmatpush1.msra.mxu0 0.0
    %960 = vmatprep.subr.mxu0 0.0
    %961 = vmatpush1.msra.mxu0 0.0
    %962 = vmatprep.subr.mxu0 0.0
    %963 = vmatpush1.msra.mxu0 0.0
    %964 = vmatprep.subr.mxu0 0.0
    %965 = vmatpush1.msra.mxu0 0.0
    %966 = vmatprep.subr.mxu0 0.0
    %967 = vmatpush1.msra.mxu0 0.0
    %968 = vmatprep.subr.mxu0 0.0
    %969 = vmatpush1.msra.mxu0 0.0
    %970 = vmatprep.subr.mxu0 0.0
    %971 = vmatpush1.msra.mxu0 0.0
    %972 = vmatprep.subr.mxu0 0.0
    %973 = vmatpush1.msra.mxu0 0.0
    %974 = vmatprep.subr.mxu0 0.0
    %975 = vmatpush1.msra.mxu0 0.0
    %976 = vmatprep.subr.mxu0 0.0
    %977 = vmatpush1.msra.mxu0 0.0
    %978 = vmatprep.subr.mxu0 0.0
    %979 = vmatpush1.msra.mxu0 0.0
    %980 = vmatprep.subr.mxu0 0.0
    %981 = vmatpush1.msra.mxu0 0.0
    %982 = vmatprep.subr.mxu0 0.0
    %983 = vmatpush1.msra.mxu0 0.0
    %984 = vmatprep.subr.mxu0 0.0
    %985 = vmatpush1.msra.mxu0 0.0
    %986 = vmatprep.subr.mxu0 0.0
    %987 = vmatpush1.msra.mxu0 0.0
    %988 = vmatprep.subr.mxu0 0.0
    %989 = vmatpush1.msra.mxu0 0.0
    %990 = vmatprep.subr.mxu0 0.0
    %991 = vmatpush1.msra.mxu0 0.0
    %992 = vmatprep.subr.mxu0 0.0
    %993 = vmatpush1.msra.mxu0 0.0
    %994 = vmatprep.subr.mxu0 0.0
    %995 = vmatpush1.msra.mxu0 0.0
    %996 = vmatprep.subr.mxu0 0.0
    %997 = vmatpush1.msra.mxu0 0.0
    %998 = vmatprep.subr.mxu0 0.0
    %999 = vmatpush1.msra.mxu0 0.0
    %1000 = vmatprep.subr.mxu0 0.0
    %1001 = vmatpush1.msra.mxu0 0.0
    %1002 = vmatprep.subr.mxu0 0.0
    %1003 = vmatpush1.msra.mxu0 0.0
    %1004 = vmatprep.subr.mxu0 0.0
    %1005 = vmatpush1.msra.mxu0 0.0
    %1006 = vmatprep.subr.mxu0 0.0
    %1007 = vmatpush1.msra.mxu0 0.0
    %1008 = vmatprep.subr.mxu0 0.0
    %1009 = vmatpush1.msra.mxu0 0.0
    %1010 = vmatprep.subr.mxu0 0.0
    %1011 = vmatpush1.msra.mxu0 0.0
    %1012 = vmatprep.subr.mxu0 0.0
    %1013 = vmatpush1.msra.mxu0 0.0
    %1014 = vmatprep.subr.mxu0 0.0
    %1015 = vmatpush1.msra.mxu0 0.0
    %1016 = vmatprep.subr.mxu0 0.0
    %1017 = vmatpush1.msra.mxu0 0.0
    %1018 = vmatprep.mubr.f32.mxu0 0.0
    %1019 = vmatmul.mubr.f32.gmra.mrb[0].mxu0 %v949
    %v1020 = vpop.f32.mrb[0].mxu0
    %v1021 = vadd.f32 0.0, %v1020
    %v1022 = vpop.f32.mrb[0].mxu0
    %1023 = vmatprep.mubr.f32.mxu0 0.0
    %1024 = vmatmul.mubr.f32.gmra.mrb[0].mxu0 %v952
    %v1025 = vpop.f32.mrb[0].mxu0
    %v1026 = vadd.f32 0.0, %v1025
    %v1027 = vpop.f32.mrb[0].mxu0
    %1028 = vdwg.mxu0
    %v1029 = vpack.c.bf16 %v1026, %v1021
    %s1030 = scalar_lea.vmem %s4, 4
    %v1031 = vld [vmem:[%s1030] sm:$0xf]
    %v1033 = vsel %vm439, %v1029, 0
    %vm1035 = vcmask 1043456
    %v1037 = vsel %vm1035, %v1031, 0
    %1039 = vmatprep.subr.bf16.mxu0 0
    %1040 = vmatpush1.bf16.msra.mxu0 %v1037
    %1041 = vmatprep.subr.bf16.mxu0 0
    %1042 = vmatpush1.bf16.msra.mxu0 0
    %1043 = vmatprep.subr.bf16.mxu0 0
    %1044 = vmatpush1.bf16.msra.mxu0 0
    %1045 = vmatprep.subr.bf16.mxu0 0
    %1046 = vmatpush1.bf16.msra.mxu0 0
    %1047 = vmatprep.subr.bf16.mxu0 0
    %1048 = vmatpush1.bf16.msra.mxu0 0
    %1049 = vmatprep.subr.bf16.mxu0 0
    %1050 = vmatpush1.bf16.msra.mxu0 0
    %1051 = vmatprep.subr.bf16.mxu0 0
    %1052 = vmatpush1.bf16.msra.mxu0 0
    %1053 = vmatprep.subr.bf16.mxu0 0
    %1054 = vmatpush1.bf16.msra.mxu0 0
    %1055 = vmatprep.subr.bf16.mxu0 0
    %1056 = vmatpush1.bf16.msra.mxu0 0
    %1057 = vmatprep.subr.bf16.mxu0 0
    %1058 = vmatpush1.bf16.msra.mxu0 0
    %1059 = vmatprep.subr.bf16.mxu0 0
    %1060 = vmatpush1.bf16.msra.mxu0 0
    %1061 = vmatprep.subr.bf16.mxu0 0
    %1062 = vmatpush1.bf16.msra.mxu0 0
    %1063 = vmatprep.subr.bf16.mxu0 0
    %1064 = vmatpush1.bf16.msra.mxu0 0
    %1065 = vmatprep.subr.bf16.mxu0 0
    %1066 = vmatpush1.bf16.msra.mxu0 0
    %1067 = vmatprep.subr.bf16.mxu0 0
    %1068 = vmatpush1.bf16.msra.mxu0 0
    %1069 = vmatprep.subr.bf16.mxu0 0
    %1070 = vmatpush1.bf16.msra.mxu0 0
    %1071 = vmatprep.mubr.bf16.mxu0 0
    %1072 = vmatmul.mubr.bf16.gmra.mrb[0].mxu0 %v1033
    %v1073 = vpop.f32.mrb[0].mxu0
    %v1074 = vadd.f32 0.0, %v1073
    %v1075 = vpop.f32.mrb[0].mxu0
    %v1076 = vpop.f32.mrb[0].mxu0
    %v1077 = vadd.f32 0.0, %v1076
    %v1078 = vpop.f32.mrb[0].mxu0
    %1079 = vdwg.mxu0
    %v1081 = vsel %vm439, %v635, 0
    %v1084 = vsel %vm1035, %v636, 0
    %1086 = vmatprep.subr.bf16.mxu0 0
    %1087 = vmatpush1.bf16.msra.mxu0 %v1084
    %1088 = vmatprep.subr.bf16.mxu0 0
    %1089 = vmatpush1.bf16.msra.mxu0 0
    %1090 = vmatprep.subr.bf16.mxu0 0
    %1091 = vmatpush1.bf16.msra.mxu0 0
    %1092 = vmatprep.subr.bf16.mxu0 0
    %1093 = vmatpush1.bf16.msra.mxu0 0
    %1094 = vmatprep.subr.bf16.mxu0 0
    %1095 = vmatpush1.bf16.msra.mxu0 0
    %1096 = vmatprep.subr.bf16.mxu0 0
    %1097 = vmatpush1.bf16.msra.mxu0 0
    %1098 = vmatprep.subr.bf16.mxu0 0
    %1099 = vmatpush1.bf16.msra.mxu0 0
    %1100 = vmatprep.subr.bf16.mxu0 0
    %1101 = vmatpush1.bf16.msra.mxu0 0
    %1102 = vmatprep.subr.bf16.mxu0 0
    %1103 = vmatpush1.bf16.msra.mxu0 0
    %1104 = vmatprep.subr.bf16.mxu0 0
    %1105 = vmatpush1.bf16.msra.mxu0 0
    %1106 = vmatprep.subr.bf16.mxu0 0
    %1107 = vmatpush1.bf16.msra.mxu0 0
    %1108 = vmatprep.subr.bf16.mxu0 0
    %1109 = vmatpush1.bf16.msra.mxu0 0
    %1110 = vmatprep.subr.bf16.mxu0 0
    %1111 = vmatpush1.bf16.msra.mxu0 0
    %1112 = vmatprep.subr.bf16.mxu0 0
    %1113 = vmatpush1.bf16.msra.mxu0 0
    %1114 = vmatprep.subr.bf16.mxu0 0
    %1115 = vmatpush1.bf16.msra.mxu0 0
    %1116 = vmatprep.subr.bf16.mxu0 0
    %1117 = vmatpush1.bf16.msra.mxu0 0
    %1118 = vmatprep.mubr.bf16.mxu0 0
    %1119 = vmatmul.mubr.bf16.gmra.mrb[0].mxu0 %v1081
    %v1120 = vpop.f32.mrb[0].mxu0
    %v1121 = vadd.f32 %v1074, %v1120
    %v1122 = vpop.f32.mrb[0].mxu0
    %v1123 = vpop.f32.mrb[0].mxu0
    %v1124 = vadd.f32 %v1077, %v1123
    %v1125 = vpop.f32.mrb[0].mxu0
    %1126 = vdwg.mxu0
    %s1127 = scalar_lea.vmem %s2, 32
    %v1128 = vld [vmem:[%s1127] sm:$0xf]
    %v1129 = vld [vmem:[%s1127 + $0x4] sm:$0xf]
    %v1130 = vld [vmem:[%s1127 + $0x8] sm:$0xf]
    %v1131 = vld [vmem:[%s1127 + $0xc] sm:$0xf]
    %s1132 = scalar_lea.vmem %s3, 2
    %v1133 = vld [vmem:[%s1132] sm:$0x1]
    %v1135 = vlaneseq
    %v1136 = vshrl.u32 %v1135, 7
    %v1137 = vsub.s32 0, %v1136
    %v1138 = vrot.slane %v1133, %v1137
    %v1144 = vunpack.c.l.b16 %v1128
    %v1145 = vunpack.c.l.b16 %v1129
    %v1146 = vunpack.c.l.b16 %v1130
    %v1147 = vunpack.c.l.b16 %v1131
    %v1148 = vpack.c.b16 %v1145, %v1144
    %v1149 = vpack.c.b16 %v1147, %v1146
    %1152 = vmatprep.subr.bf16.mxu0 0
    %1153 = vmatpush1.bf16.msra.mxu0 %v1148
    %1154 = vmatprep.subr.bf16.mxu0 0
    %1155 = vmatpush1.bf16.msra.mxu0 %v1149
    %1156 = vmatprep.subr.bf16.mxu0 0
    %1157 = vmatpush1.bf16.msra.mxu0 0
    %1158 = vmatprep.subr.bf16.mxu0 0
    %1159 = vmatpush1.bf16.msra.mxu0 0
    %1160 = vmatprep.subr.bf16.mxu0 0
    %1161 = vmatpush1.bf16.msra.mxu0 0
    %1162 = vmatprep.subr.bf16.mxu0 0
    %1163 = vmatpush1.bf16.msra.mxu0 0
    %1164 = vmatprep.subr.bf16.mxu0 0
    %1165 = vmatpush1.bf16.msra.mxu0 0
    %1166 = vmatprep.subr.bf16.mxu0 0
    %1167 = vmatpush1.bf16.msra.mxu0 0
    %1168 = vmatprep.subr.bf16.mxu0 0
    %1169 = vmatpush1.bf16.msra.mxu0 0
    %1170 = vmatprep.subr.bf16.mxu0 0
    %1171 = vmatpush1.bf16.msra.mxu0 0
    %1172 = vmatprep.subr.bf16.mxu0 0
    %1173 = vmatpush1.bf16.msra.mxu0 0
    %1174 = vmatprep.subr.bf16.mxu0 0
    %1175 = vmatpush1.bf16.msra.mxu0 0
    %1176 = vmatprep.subr.bf16.mxu0 0
    %1177 = vmatpush1.bf16.msra.mxu0 0
    %1178 = vmatprep.subr.bf16.mxu0 0
    %1179 = vmatpush1.bf16.msra.mxu0 0
    %1180 = vmatprep.subr.bf16.mxu0 0
    %1181 = vmatpush1.bf16.msra.mxu0 0
    %1182 = vmatprep.subr.bf16.mxu0 0
    %1183 = vmatpush1.bf16.msra.mxu0 0
    %1184 = vmatprep.mubr.bf16.mxu0 0
    %1185 = vmatmul.mubr.bf16.gmra.mrb[0].mxu0 %v264
    %v1186 = vpop.f32.mrb[0].mxu0
    %v1187 = vadd.f32 %v1138, %v1186
    %v1188 = vpop.f32.mrb[0].mxu0
    %v1189 = vpop.f32.mrb[0].mxu0
    %v1190 = vadd.f32 %v1138, %v1189
    %v1191 = vpop.f32.mrb[0].mxu0
    %1192 = vdwg.mxu0
    %s1193 = scalar_lea.vmem %s2, 96
    %v1194 = vld [vmem:[%s1193] sm:$0xf]
    %v1195 = vld [vmem:[%s1193 + $0x4] sm:$0xf]
    %v1196 = vld [vmem:[%s1193 + $0x8] sm:$0xf]
    %v1197 = vld [vmem:[%s1193 + $0xc] sm:$0xf]
    %s1198 = scalar_lea.vmem %s3, 6
    %v1199 = vld [vmem:[%s1198] sm:$0x1]
    %v1201 = vlaneseq
    %v1202 = vshrl.u32 %v1201, 7
    %v1203 = vsub.s32 0, %v1202
    %v1204 = vrot.slane %v1199, %v1203
    %v1210 = vunpack.c.l.b16 %v1194
    %v1211 = vunpack.c.l.b16 %v1195
    %v1212 = vunpack.c.l.b16 %v1196
    %v1213 = vunpack.c.l.b16 %v1197
    %v1214 = vpack.c.b16 %v1211, %v1210
    %v1215 = vpack.c.b16 %v1213, %v1212
    %1218 = vmatprep.subr.bf16.mxu0 0
    %1219 = vmatpush1.bf16.msra.mxu0 %v1214
    %1220 = vmatprep.subr.bf16.mxu0 0
    %1221 = vmatpush1.bf16.msra.mxu0 %v1215
    %1222 = vmatprep.subr.bf16.mxu0 0
    %1223 = vmatpush1.bf16.msra.mxu0 0
    %1224 = vmatprep.subr.bf16.mxu0 0
    %1225 = vmatpush1.bf16.msra.mxu0 0
    %1226 = vmatprep.subr.bf16.mxu0 0
    %1227 = vmatpush1.bf16.msra.mxu0 0
    %1228 = vmatprep.subr.bf16.mxu0 0
    %1229 = vmatpush1.bf16.msra.mxu0 0
    %1230 = vmatprep.subr.bf16.mxu0 0
    %1231 = vmatpush1.bf16.msra.mxu0 0
    %1232 = vmatprep.subr.bf16.mxu0 0
    %1233 = vmatpush1.bf16.msra.mxu0 0
    %1234 = vmatprep.subr.bf16.mxu0 0
    %1235 = vmatpush1.bf16.msra.mxu0 0
    %1236 = vmatprep.subr.bf16.mxu0 0
    %1237 = vmatpush1.bf16.msra.mxu0 0
    %1238 = vmatprep.subr.bf16.mxu0 0
    %1239 = vmatpush1.bf16.msra.mxu0 0
    %1240 = vmatprep.subr.bf16.mxu0 0
    %1241 = vmatpush1.bf16.msra.mxu0 0
    %1242 = vmatprep.subr.bf16.mxu0 0
    %1243 = vmatpush1.bf16.msra.mxu0 0
    %1244 = vmatprep.subr.bf16.mxu0 0
    %1245 = vmatpush1.bf16.msra.mxu0 0
    %1246 = vmatprep.subr.bf16.mxu0 0
    %1247 = vmatpush1.bf16.msra.mxu0 0
    %1248 = vmatprep.subr.bf16.mxu0 0
    %1249 = vmatpush1.bf16.msra.mxu0 0
    %1250 = vmatprep.mubr.bf16.mxu0 0
    %1251 = vmatmul.mubr.bf16.gmra.mrb[0].mxu0 %v264
    %v1252 = vpop.f32.mrb[0].mxu0
    %v1253 = vadd.f32 %v1204, %v1252
    %v1254 = vpop.f32.mrb[0].mxu0
    %v1255 = vpop.f32.mrb[0].mxu0
    %v1256 = vadd.f32 %v1204, %v1255
    %v1257 = vpop.f32.mrb[0].mxu0
    %1258 = vdwg.mxu0
    %s1259 = scalar_lea.vmem %s2, 160
    %v1260 = vld [vmem:[%s1259] sm:$0xf]
    %v1261 = vld [vmem:[%s1259 + $0x4] sm:$0xf]
    %v1262 = vld [vmem:[%s1259 + $0x8] sm:$0xf]
    %v1263 = vld [vmem:[%s1259 + $0xc] sm:$0xf]
    %s1264 = scalar_lea.vmem %s3, 10
    %v1265 = vld [vmem:[%s1264] sm:$0x1]
    %v1267 = vlaneseq
    %v1268 = vshrl.u32 %v1267, 7
    %v1269 = vsub.s32 0, %v1268
    %v1270 = vrot.slane %v1265, %v1269
    %v1276 = vunpack.c.l.b16 %v1260
    %v1277 = vunpack.c.l.b16 %v1261
    %v1278 = vunpack.c.l.b16 %v1262
    %v1279 = vunpack.c.l.b16 %v1263
    %v1280 = vpack.c.b16 %v1277, %v1276
    %v1281 = vpack.c.b16 %v1279, %v1278
    %1284 = vmatprep.subr.bf16.mxu0 0
    %1285 = vmatpush1.bf16.msra.mxu0 %v1280
    %1286 = vmatprep.subr.bf16.mxu0 0
    %1287 = vmatpush1.bf16.msra.mxu0 %v1281
    %1288 = vmatprep.subr.bf16.mxu0 0
    %1289 = vmatpush1.bf16.msra.mxu0 0
    %1290 = vmatprep.subr.bf16.mxu0 0
    %1291 = vmatpush1.bf16.msra.mxu0 0
    %1292 = vmatprep.subr.bf16.mxu0 0
    %1293 = vmatpush1.bf16.msra.mxu0 0
    %1294 = vmatprep.subr.bf16.mxu0 0
    %1295 = vmatpush1.bf16.msra.mxu0 0
    %1296 = vmatprep.subr.bf16.mxu0 0
    %1297 = vmatpush1.bf16.msra.mxu0 0
    %1298 = vmatprep.subr.bf16.mxu0 0
    %1299 = vmatpush1.bf16.msra.mxu0 0
    %1300 = vmatprep.subr.bf16.mxu0 0
    %1301 = vmatpush1.bf16.msra.mxu0 0
    %1302 = vmatprep.subr.bf16.mxu0 0
    %1303 = vmatpush1.bf16.msra.mxu0 0
    %1304 = vmatprep.subr.bf16.mxu0 0
    %1305 = vmatpush1.bf16.msra.mxu0 0
    %1306 = vmatprep.subr.bf16.mxu0 0
    %1307 = vmatpush1.bf16.msra.mxu0 0
    %1308 = vmatprep.subr.bf16.mxu0 0
    %1309 = vmatpush1.bf16.msra.mxu0 0
    %1310 = vmatprep.subr.bf16.mxu0 0
    %1311 = vmatpush1.bf16.msra.mxu0 0
    %1312 = vmatprep.subr.bf16.mxu0 0
    %1313 = vmatpush1.bf16.msra.mxu0 0
    %1314 = vmatprep.subr.bf16.mxu0 0
    %1315 = vmatpush1.bf16.msra.mxu0 0
    %1316 = vmatprep.mubr.bf16.mxu0 0
    %1317 = vmatmul.mubr.bf16.gmra.mrb[0].mxu0 %v264
    %v1318 = vpop.f32.mrb[0].mxu0
    %v1319 = vadd.f32 %v1270, %v1318
    %v1320 = vpop.f32.mrb[0].mxu0
    %v1321 = vpop.f32.mrb[0].mxu0
    %v1322 = vadd.f32 %v1270, %v1321
    %v1323 = vpop.f32.mrb[0].mxu0
    %1324 = vdwg.mxu0
    %v1326 = vsel %vm439, %v1187, 0
    %v1329 = vsel %vm439, %v1190, 0
    %v1332 = vsel %vm439, %v1253, 0
    %v1335 = vsel %vm439, %v1256, 0
    %1337 = vmatprep.subr.mxu0 0.0
    %1338 = vmatpush1.xpose.msra.mxu0 %v1332
    %1339 = vmatprep.subr.mxu0 0.0
    %1340 = vmatpush1.xpose.msra.mxu0 %v1335
    %1341 = vmatprep.subr.mxu0 0.0
    %1342 = vmatpush1.xpose.msra.mxu0 0.0
    %1343 = vmatprep.subr.mxu0 0.0
    %1344 = vmatpush1.xpose.msra.mxu0 0.0
    %1345 = vmatprep.subr.mxu0 0.0
    %1346 = vmatpush1.xpose.msra.mxu0 0.0
    %1347 = vmatprep.subr.mxu0 0.0
    %1348 = vmatpush1.xpose.msra.mxu0 0.0
    %1349 = vmatprep.subr.mxu0 0.0
    %1350 = vmatpush1.xpose.msra.mxu0 0.0
    %1351 = vmatprep.subr.mxu0 0.0
    %1352 = vmatpush1.xpose.msra.mxu0 0.0
    %1353 = vmatprep.subr.mxu0 0.0
    %1354 = vmatpush1.xpose.msra.mxu0 0.0
    %1355 = vmatprep.subr.mxu0 0.0
    %1356 = vmatpush1.xpose.msra.mxu0 0.0
    %1357 = vmatprep.subr.mxu0 0.0
    %1358 = vmatpush1.xpose.msra.mxu0 0.0
    %1359 = vmatprep.subr.mxu0 0.0
    %1360 = vmatpush1.xpose.msra.mxu0 0.0
    %1361 = vmatprep.subr.mxu0 0.0
    %1362 = vmatpush1.xpose.msra.mxu0 0.0
    %1363 = vmatprep.subr.mxu0 0.0
    %1364 = vmatpush1.xpose.msra.mxu0 0.0
    %1365 = vmatprep.subr.mxu0 0.0
    %1366 = vmatpush1.xpose.msra.mxu0 0.0
    %1367 = vmatprep.subr.mxu0 0.0
    %1368 = vmatpush1.xpose.msra.mxu0 0.0
    %1369 = vmatprep.subr.mxu0 0.0
    %1370 = vmatpush1.xpose.msra.mxu0 0.0
    %1371 = vmatprep.subr.mxu0 0.0
    %1372 = vmatpush1.xpose.msra.mxu0 0.0
    %1373 = vmatprep.subr.mxu0 0.0
    %1374 = vmatpush1.xpose.msra.mxu0 0.0
    %1375 = vmatprep.subr.mxu0 0.0
    %1376 = vmatpush1.xpose.msra.mxu0 0.0
    %1377 = vmatprep.subr.mxu0 0.0
    %1378 = vmatpush1.xpose.msra.mxu0 0.0
    %1379 = vmatprep.subr.mxu0 0.0
    %1380 = vmatpush1.xpose.msra.mxu0 0.0
    %1381 = vmatprep.subr.mxu0 0.0
    %1382 = vmatpush1.xpose.msra.mxu0 0.0
    %1383 = vmatprep.subr.mxu0 0.0
    %1384 = vmatpush1.xpose.msra.mxu0 0.0
    %1385 = vmatprep.subr.mxu0 0.0
    %1386 = vmatpush1.xpose.msra.mxu0 0.0
    %1387 = vmatprep.subr.mxu0 0.0
    %1388 = vmatpush1.xpose.msra.mxu0 0.0
    %1389 = vmatprep.subr.mxu0 0.0
    %1390 = vmatpush1.xpose.msra.mxu0 0.0
    %1391 = vmatprep.subr.mxu0 0.0
    %1392 = vmatpush1.xpose.msra.mxu0 0.0
    %1393 = vmatprep.subr.mxu0 0.0
    %1394 = vmatpush1.xpose.msra.mxu0 0.0
    %1395 = vmatprep.subr.mxu0 0.0
    %1396 = vmatpush1.xpose.msra.mxu0 0.0
    %1397 = vmatprep.subr.mxu0 0.0
    %1398 = vmatpush1.xpose.msra.mxu0 0.0
    %1399 = vmatprep.subr.mxu0 0.0
    %1400 = vmatpush1.xpose.msra.mxu0 0.0
    %1401 = vmatprep.mubr.f32.mxu0 0.0
    %1402 = vmatmul.mubr.f32.gmra.mrb[0].mxu0 %v1326
    %v1403 = vpop.f32.mrb[0].mxu0
    %v1404 = vadd.f32 0.0, %v1403
    %v1405 = vpop.f32.mrb[0].mxu0
    %1406 = vmatprep.mubr.f32.mxu0 0.0
    %1407 = vmatmul.mubr.f32.gmra.mrb[0].mxu0 %v1329
    %v1408 = vpop.f32.mrb[0].mxu0
    %v1409 = vadd.f32 0.0, %v1408
    %v1410 = vpop.f32.mrb[0].mxu0
    %1411 = vdwg.mxu0
    %v1412 = vmul.f32 %v1404, 0.35355338
    %v1413 = vmul.f32 %v1409, 0.35355338
    %v1414 = vadd.f32 %v1412, %v237
    %v1415 = vadd.f32 %v1413, %v238
    %v1416 = vsel %vm531, %v1414, -inf
    %1417 = vmax.xlane.f32.xlu0 %v1416
    %v1418 = vpop.xlane.xlu0 %1417
    %v1419 = vsel %vm531, %v1415, -inf
    %1420 = vmax.xlane.f32.xlu0 %v1419
    %v1421 = vpop.xlane.xlu0 %1420
    %v1422 = vsub.f32 %v1414, %v1418
    %v1423 = vsub.f32 %v1415, %v1421
    %v1424 = vmul.f32 %v1422, 1.442695
    %v1425 = vpow.pop %v1424
    %v1426 = vmul.f32 %v1423, 1.442695
    %v1427 = vpow.pop %v1426
    %v1428 = vsel %vm531, %v1425, 0.0
    %1429 = vadd.xlane.f32.xlu0 %v1428
    %v1430 = vpop.xlane.xlu0 %1429
    %v1431 = vsel %vm531, %v1427, 0.0
    %1432 = vadd.xlane.f32.xlu0 %v1431
    %v1433 = vpop.xlane.xlu0 %1432
    %v1434 = vrcp.pop %v1430
    %v1435 = vrcp.pop %v1433
    %v1436 = vmul.f32 %v1425, %v1434
    %v1437 = vmul.f32 %v1427, %v1435
    %v1439 = vsel %vm531, %v1436, 0
    %v1442 = vsel %vm531, %v1437, 0
    %1444 = vmatprep.subr.mxu0 0.0
    %1445 = vmatpush1.msra.mxu0 %v1319
    %1446 = vmatprep.subr.mxu0 0.0
    %1447 = vmatpush1.msra.mxu0 %v1322
    %1448 = vmatprep.subr.mxu0 0.0
    %1449 = vmatpush1.msra.mxu0 0.0
    %1450 = vmatprep.subr.mxu0 0.0
    %1451 = vmatpush1.msra.mxu0 0.0
    %1452 = vmatprep.subr.mxu0 0.0
    %1453 = vmatpush1.msra.mxu0 0.0
    %1454 = vmatprep.subr.mxu0 0.0
    %1455 = vmatpush1.msra.mxu0 0.0
    %1456 = vmatprep.subr.mxu0 0.0
    %1457 = vmatpush1.msra.mxu0 0.0
    %1458 = vmatprep.subr.mxu0 0.0
    %1459 = vmatpush1.msra.mxu0 0.0
    %1460 = vmatprep.subr.mxu0 0.0
    %1461 = vmatpush1.msra.mxu0 0.0
    %1462 = vmatprep.subr.mxu0 0.0
    %1463 = vmatpush1.msra.mxu0 0.0
    %1464 = vmatprep.subr.mxu0 0.0
    %1465 = vmatpush1.msra.mxu0 0.0
    %1466 = vmatprep.subr.mxu0 0.0
    %1467 = vmatpush1.msra.mxu0 0.0
    %1468 = vmatprep.subr.mxu0 0.0
    %1469 = vmatpush1.msra.mxu0 0.0
    %1470 = vmatprep.subr.mxu0 0.0
    %1471 = vmatpush1.msra.mxu0 0.0
    %1472 = vmatprep.subr.mxu0 0.0
    %1473 = vmatpush1.msra.mxu0 0.0
    %1474 = vmatprep.subr.mxu0 0.0
    %1475 = vmatpush1.msra.mxu0 0.0
    %1476 = vmatprep.subr.mxu0 0.0
    %1477 = vmatpush1.msra.mxu0 0.0
    %1478 = vmatprep.subr.mxu0 0.0
    %1479 = vmatpush1.msra.mxu0 0.0
    %1480 = vmatprep.subr.mxu0 0.0
    %1481 = vmatpush1.msra.mxu0 0.0
    %1482 = vmatprep.subr.mxu0 0.0
    %1483 = vmatpush1.msra.mxu0 0.0
    %1484 = vmatprep.subr.mxu0 0.0
    %1485 = vmatpush1.msra.mxu0 0.0
    %1486 = vmatprep.subr.mxu0 0.0
    %1487 = vmatpush1.msra.mxu0 0.0
    %1488 = vmatprep.subr.mxu0 0.0
    %1489 = vmatpush1.msra.mxu0 0.0
    %1490 = vmatprep.subr.mxu0 0.0
    %1491 = vmatpush1.msra.mxu0 0.0
    %1492 = vmatprep.subr.mxu0 0.0
    %1493 = vmatpush1.msra.mxu0 0.0
    %1494 = vmatprep.subr.mxu0 0.0
    %1495 = vmatpush1.msra.mxu0 0.0
    %1496 = vmatprep.subr.mxu0 0.0
    %1497 = vmatpush1.msra.mxu0 0.0
    %1498 = vmatprep.subr.mxu0 0.0
    %1499 = vmatpush1.msra.mxu0 0.0
    %1500 = vmatprep.subr.mxu0 0.0
    %1501 = vmatpush1.msra.mxu0 0.0
    %1502 = vmatprep.subr.mxu0 0.0
    %1503 = vmatpush1.msra.mxu0 0.0
    %1504 = vmatprep.subr.mxu0 0.0
    %1505 = vmatpush1.msra.mxu0 0.0
    %1506 = vmatprep.subr.mxu0 0.0
    %1507 = vmatpush1.msra.mxu0 0.0
    %1508 = vmatprep.mubr.f32.mxu0 0.0
    %1509 = vmatmul.mubr.f32.gmra.mrb[0].mxu0 %v1439
    %v1510 = vpop.f32.mrb[0].mxu0
    %v1511 = vadd.f32 0.0, %v1510
    %v1512 = vpop.f32.mrb[0].mxu0
    %1513 = vmatprep.mubr.f32.mxu0 0.0
    %1514 = vmatmul.mubr.f32.gmra.mrb[0].mxu0 %v1442
    %v1515 = vpop.f32.mrb[0].mxu0
    %v1516 = vadd.f32 0.0, %v1515
    %v1517 = vpop.f32.mrb[0].mxu0
    %1518 = vdwg.mxu0
    %v1519 = vpack.c.bf16 %v1516, %v1511
    %s1520 = scalar_lea.vmem %s4, 8
    %v1521 = vld [vmem:[%s1520] sm:$0xf]
    %v1523 = vsel %vm439, %v1519, 0
    %v1526 = vsel %vm1035, %v1521, 0
    %1528 = vmatprep.subr.bf16.mxu0 0
    %1529 = vmatpush1.bf16.msra.mxu0 %v1526
    %1530 = vmatprep.subr.bf16.mxu0 0
    %1531 = vmatpush1.bf16.msra.mxu0 0
    %1532 = vmatprep.subr.bf16.mxu0 0
    %1533 = vmatpush1.bf16.msra.mxu0 0
    %1534 = vmatprep.subr.bf16.mxu0 0
    %1535 = vmatpush1.bf16.msra.mxu0 0
    %1536 = vmatprep.subr.bf16.mxu0 0
    %1537 = vmatpush1.bf16.msra.mxu0 0
    %1538 = vmatprep.subr.bf16.mxu0 0
    %1539 = vmatpush1.bf16.msra.mxu0 0
    %1540 = vmatprep.subr.bf16.mxu0 0
    %1541 = vmatpush1.bf16.msra.mxu0 0
    %1542 = vmatprep.subr.bf16.mxu0 0
    %1543 = vmatpush1.bf16.msra.mxu0 0
    %1544 = vmatprep.subr.bf16.mxu0 0
    %1545 = vmatpush1.bf16.msra.mxu0 0
    %1546 = vmatprep.subr.bf16.mxu0 0
    %1547 = vmatpush1.bf16.msra.mxu0 0
    %1548 = vmatprep.subr.bf16.mxu0 0
    %1549 = vmatpush1.bf16.msra.mxu0 0
    %1550 = vmatprep.subr.bf16.mxu0 0
    %1551 = vmatpush1.bf16.msra.mxu0 0
    %1552 = vmatprep.subr.bf16.mxu0 0
    %1553 = vmatpush1.bf16.msra.mxu0 0
    %1554 = vmatprep.subr.bf16.mxu0 0
    %1555 = vmatpush1.bf16.msra.mxu0 0
    %1556 = vmatprep.subr.bf16.mxu0 0
    %1557 = vmatpush1.bf16.msra.mxu0 0
    %1558 = vmatprep.subr.bf16.mxu0 0
    %1559 = vmatpush1.bf16.msra.mxu0 0
    %1560 = vmatprep.mubr.bf16.mxu0 0
    %1561 = vmatmul.mubr.bf16.gmra.mrb[0].mxu0 %v1523
    %v1562 = vpop.f32.mrb[0].mxu0
    %v1563 = vadd.f32 0.0, %v1562
    %v1564 = vpop.f32.mrb[0].mxu0
    %v1565 = vpop.f32.mrb[0].mxu0
    %v1566 = vadd.f32 0.0, %v1565
    %v1567 = vpop.f32.mrb[0].mxu0
    %1568 = vdwg.mxu0
    %v1569 = vadd.f32 %v1121, %v1563
    %v1570 = vadd.f32 %v1124, %v1566
    %s1571 = scalar_lea.vmem %s2, 48
    %v1572 = vld [vmem:[%s1571] sm:$0xf]
    %v1573 = vld [vmem:[%s1571 + $0x4] sm:$0xf]
    %v1574 = vld [vmem:[%s1571 + $0x8] sm:$0xf]
    %v1575 = vld [vmem:[%s1571 + $0xc] sm:$0xf]
    %s1576 = scalar_lea.vmem %s3, 3
    %v1577 = vld [vmem:[%s1576] sm:$0x1]
    %v1579 = vlaneseq
    %v1580 = vshrl.u32 %v1579, 7
    %v1581 = vsub.s32 0, %v1580
    %v1582 = vrot.slane %v1577, %v1581
    %v1588 = vunpack.c.l.b16 %v1572
    %v1589 = vunpack.c.l.b16 %v1573
    %v1590 = vunpack.c.l.b16 %v1574
    %v1591 = vunpack.c.l.b16 %v1575
    %v1592 = vpack.c.b16 %v1589, %v1588
    %v1593 = vpack.c.b16 %v1591, %v1590
    %1596 = vmatprep.subr.bf16.mxu0 0
    %1597 = vmatpush1.bf16.msra.mxu0 %v1592
    %1598 = vmatprep.subr.bf16.mxu0 0
    %1599 = vmatpush1.bf16.msra.mxu0 %v1593
    %1600 = vmatprep.subr.bf16.mxu0 0
    %1601 = vmatpush1.bf16.msra.mxu0 0
    %1602 = vmatprep.subr.bf16.mxu0 0
    %1603 = vmatpush1.bf16.msra.mxu0 0
    %1604 = vmatprep.subr.bf16.mxu0 0
    %1605 = vmatpush1.bf16.msra.mxu0 0
    %1606 = vmatprep.subr.bf16.mxu0 0
    %1607 = vmatpush1.bf16.msra.mxu0 0
    %1608 = vmatprep.subr.bf16.mxu0 0
    %1609 = vmatpush1.bf16.msra.mxu0 0
    %1610 = vmatprep.subr.bf16.mxu0 0
    %1611 = vmatpush1.bf16.msra.mxu0 0
    %1612 = vmatprep.subr.bf16.mxu0 0
    %1613 = vmatpush1.bf16.msra.mxu0 0
    %1614 = vmatprep.subr.bf16.mxu0 0
    %1615 = vmatpush1.bf16.msra.mxu0 0
    %1616 = vmatprep.subr.bf16.mxu0 0
    %1617 = vmatpush1.bf16.msra.mxu0 0
    %1618 = vmatprep.subr.bf16.mxu0 0
    %1619 = vmatpush1.bf16.msra.mxu0 0
    %1620 = vmatprep.subr.bf16.mxu0 0
    %1621 = vmatpush1.bf16.msra.mxu0 0
    %1622 = vmatprep.subr.bf16.mxu0 0
    %1623 = vmatpush1.bf16.msra.mxu0 0
    %1624 = vmatprep.subr.bf16.mxu0 0
    %1625 = vmatpush1.bf16.msra.mxu0 0
    %1626 = vmatprep.subr.bf16.mxu0 0
    %1627 = vmatpush1.bf16.msra.mxu0 0
    %1628 = vmatprep.mubr.bf16.mxu0 0
    %1629 = vmatmul.mubr.bf16.gmra.mrb[0].mxu0 %v264
    %v1630 = vpop.f32.mrb[0].mxu0
    %v1631 = vadd.f32 %v1582, %v1630
    %v1632 = vpop.f32.mrb[0].mxu0
    %v1633 = vpop.f32.mrb[0].mxu0
    %v1634 = vadd.f32 %v1582, %v1633
    %v1635 = vpop.f32.mrb[0].mxu0
    %1636 = vdwg.mxu0
    %s1637 = scalar_lea.vmem %s2, 112
    %v1638 = vld [vmem:[%s1637] sm:$0xf]
    %v1639 = vld [vmem:[%s1637 + $0x4] sm:$0xf]
    %v1640 = vld [vmem:[%s1637 + $0x8] sm:$0xf]
    %v1641 = vld [vmem:[%s1637 + $0xc] sm:$0xf]
    %s1642 = scalar_lea.vmem %s3, 7
    %v1643 = vld [vmem:[%s1642] sm:$0x1]
    %v1645 = vlaneseq
    %v1646 = vshrl.u32 %v1645, 7
    %v1647 = vsub.s32 0, %v1646
    %v1648 = vrot.slane %v1643, %v1647
    %v1654 = vunpack.c.l.b16 %v1638
    %v1655 = vunpack.c.l.b16 %v1639
    %v1656 = vunpack.c.l.b16 %v1640
    %v1657 = vunpack.c.l.b16 %v1641
    %v1658 = vpack.c.b16 %v1655, %v1654
    %v1659 = vpack.c.b16 %v1657, %v1656
    %1662 = vmatprep.subr.bf16.mxu0 0
    %1663 = vmatpush1.bf16.msra.mxu0 %v1658
    %1664 = vmatprep.subr.bf16.mxu0 0
    %1665 = vmatpush1.bf16.msra.mxu0 %v1659
    %1666 = vmatprep.subr.bf16.mxu0 0
    %1667 = vmatpush1.bf16.msra.mxu0 0
    %1668 = vmatprep.subr.bf16.mxu0 0
    %1669 = vmatpush1.bf16.msra.mxu0 0
    %1670 = vmatprep.subr.bf16.mxu0 0
    %1671 = vmatpush1.bf16.msra.mxu0 0
    %1672 = vmatprep.subr.bf16.mxu0 0
    %1673 = vmatpush1.bf16.msra.mxu0 0
    %1674 = vmatprep.subr.bf16.mxu0 0
    %1675 = vmatpush1.bf16.msra.mxu0 0
    %1676 = vmatprep.subr.bf16.mxu0 0
    %1677 = vmatpush1.bf16.msra.mxu0 0
    %1678 = vmatprep.subr.bf16.mxu0 0
    %1679 = vmatpush1.bf16.msra.mxu0 0
    %1680 = vmatprep.subr.bf16.mxu0 0
    %1681 = vmatpush1.bf16.msra.mxu0 0
    %1682 = vmatprep.subr.bf16.mxu0 0
    %1683 = vmatpush1.bf16.msra.mxu0 0
    %1684 = vmatprep.subr.bf16.mxu0 0
    %1685 = vmatpush1.bf16.msra.mxu0 0
    %1686 = vmatprep.subr.bf16.mxu0 0
    %1687 = vmatpush1.bf16.msra.mxu0 0
    %1688 = vmatprep.subr.bf16.mxu0 0
    %1689 = vmatpush1.bf16.msra.mxu0 0
    %1690 = vmatprep.subr.bf16.mxu0 0
    %1691 = vmatpush1.bf16.msra.mxu0 0
    %1692 = vmatprep.subr.bf16.mxu0 0
    %1693 = vmatpush1.bf16.msra.mxu0 0
    %1694 = vmatprep.mubr.bf16.mxu0 0
    %1695 = vmatmul.mubr.bf16.gmra.mrb[0].mxu0 %v264
    %v1696 = vpop.f32.mrb[0].mxu0
    %v1697 = vadd.f32 %v1648, %v1696
    %v1698 = vpop.f32.mrb[0].mxu0
    %v1699 = vpop.f32.mrb[0].mxu0
    %v1700 = vadd.f32 %v1648, %v1699
    %v1701 = vpop.f32.mrb[0].mxu0
    %1702 = vdwg.mxu0
    %s1703 = scalar_lea.vmem %s2, 176
    %v1704 = vld [vmem:[%s1703] sm:$0xf]
    %v1705 = vld [vmem:[%s1703 + $0x4] sm:$0xf]
    %v1706 = vld [vmem:[%s1703 + $0x8] sm:$0xf]
    %v1707 = vld [vmem:[%s1703 + $0xc] sm:$0xf]
    %s1708 = scalar_lea.vmem %s3, 11
    %v1709 = vld [vmem:[%s1708] sm:$0x1]
    %v1711 = vlaneseq
    %v1712 = vshrl.u32 %v1711, 7
    %v1713 = vsub.s32 0, %v1712
    %v1714 = vrot.slane %v1709, %v1713
    %v1720 = vunpack.c.l.b16 %v1704
    %v1721 = vunpack.c.l.b16 %v1705
    %v1722 = vunpack.c.l.b16 %v1706
    %v1723 = vunpack.c.l.b16 %v1707
    %v1724 = vpack.c.b16 %v1721, %v1720
    %v1725 = vpack.c.b16 %v1723, %v1722
    %1728 = vmatprep.subr.bf16.mxu0 0
    %1729 = vmatpush1.bf16.msra.mxu0 %v1724
    %1730 = vmatprep.subr.bf16.mxu0 0
    %1731 = vmatpush1.bf16.msra.mxu0 %v1725
    %1732 = vmatprep.subr.bf16.mxu0 0
    %1733 = vmatpush1.bf16.msra.mxu0 0
    %1734 = vmatprep.subr.bf16.mxu0 0
    %1735 = vmatpush1.bf16.msra.mxu0 0
    %1736 = vmatprep.subr.bf16.mxu0 0
    %1737 = vmatpush1.bf16.msra.mxu0 0
    %1738 = vmatprep.subr.bf16.mxu0 0
    %1739 = vmatpush1.bf16.msra.mxu0 0
    %1740 = vmatprep.subr.bf16.mxu0 0
    %1741 = vmatpush1.bf16.msra.mxu0 0
    %1742 = vmatprep.subr.bf16.mxu0 0
    %1743 = vmatpush1.bf16.msra.mxu0 0
    %1744 = vmatprep.subr.bf16.mxu0 0
    %1745 = vmatpush1.bf16.msra.mxu0 0
    %1746 = vmatprep.subr.bf16.mxu0 0
    %1747 = vmatpush1.bf16.msra.mxu0 0
    %1748 = vmatprep.subr.bf16.mxu0 0
    %1749 = vmatpush1.bf16.msra.mxu0 0
    %1750 = vmatprep.subr.bf16.mxu0 0
    %1751 = vmatpush1.bf16.msra.mxu0 0
    %1752 = vmatprep.subr.bf16.mxu0 0
    %1753 = vmatpush1.bf16.msra.mxu0 0
    %1754 = vmatprep.subr.bf16.mxu0 0
    %1755 = vmatpush1.bf16.msra.mxu0 0
    %1756 = vmatprep.subr.bf16.mxu0 0
    %1757 = vmatpush1.bf16.msra.mxu0 0
    %1758 = vmatprep.subr.bf16.mxu0 0
    %1759 = vmatpush1.bf16.msra.mxu0 0
    %1760 = vmatprep.mubr.bf16.mxu0 0
    %1761 = vmatmul.mubr.bf16.gmra.mrb[0].mxu0 %v264
    %v1762 = vpop.f32.mrb[0].mxu0
    %v1763 = vadd.f32 %v1714, %v1762
    %v1764 = vpop.f32.mrb[0].mxu0
    %v1765 = vpop.f32.mrb[0].mxu0
    %v1766 = vadd.f32 %v1714, %v1765
    %v1767 = vpop.f32.mrb[0].mxu0
    %1768 = vdwg.mxu0
    %v1770 = vsel %vm439, %v1631, 0
    %v1773 = vsel %vm439, %v1634, 0
    %v1776 = vsel %vm439, %v1697, 0
    %v1779 = vsel %vm439, %v1700, 0
    %1781 = vmatprep.subr.mxu0 0.0
    %1782 = vmatpush1.xpose.msra.mxu0 %v1776
    %1783 = vmatprep.subr.mxu0 0.0
    %1784 = vmatpush1.xpose.msra.mxu0 %v1779
    %1785 = vmatprep.subr.mxu0 0.0
    %1786 = vmatpush1.xpose.msra.mxu0 0.0
    %1787 = vmatprep.subr.mxu0 0.0
    %1788 = vmatpush1.xpose.msra.mxu0 0.0
    %1789 = vmatprep.subr.mxu0 0.0
    %1790 = vmatpush1.xpose.msra.mxu0 0.0
    %1791 = vmatprep.subr.mxu0 0.0
    %1792 = vmatpush1.xpose.msra.mxu0 0.0
    %1793 = vmatprep.subr.mxu0 0.0
    %1794 = vmatpush1.xpose.msra.mxu0 0.0
    %1795 = vmatprep.subr.mxu0 0.0
    %1796 = vmatpush1.xpose.msra.mxu0 0.0
    %1797 = vmatprep.subr.mxu0 0.0
    %1798 = vmatpush1.xpose.msra.mxu0 0.0
    %1799 = vmatprep.subr.mxu0 0.0
    %1800 = vmatpush1.xpose.msra.mxu0 0.0
    %1801 = vmatprep.subr.mxu0 0.0
    %1802 = vmatpush1.xpose.msra.mxu0 0.0
    %1803 = vmatprep.subr.mxu0 0.0
    %1804 = vmatpush1.xpose.msra.mxu0 0.0
    %1805 = vmatprep.subr.mxu0 0.0
    %1806 = vmatpush1.xpose.msra.mxu0 0.0
    %1807 = vmatprep.subr.mxu0 0.0
    %1808 = vmatpush1.xpose.msra.mxu0 0.0
    %1809 = vmatprep.subr.mxu0 0.0
    %1810 = vmatpush1.xpose.msra.mxu0 0.0
    %1811 = vmatprep.subr.mxu0 0.0
    %1812 = vmatpush1.xpose.msra.mxu0 0.0
    %1813 = vmatprep.subr.mxu0 0.0
    %1814 = vmatpush1.xpose.msra.mxu0 0.0
    %1815 = vmatprep.subr.mxu0 0.0
    %1816 = vmatpush1.xpose.msra.mxu0 0.0
    %1817 = vmatprep.subr.mxu0 0.0
    %1818 = vmatpush1.xpose.msra.mxu0 0.0
    %1819 = vmatprep.subr.mxu0 0.0
    %1820 = vmatpush1.xpose.msra.mxu0 0.0
    %1821 = vmatprep.subr.mxu0 0.0
    %1822 = vmatpush1.xpose.msra.mxu0 0.0
    %1823 = vmatprep.subr.mxu0 0.0
    %1824 = vmatpush1.xpose.msra.mxu0 0.0
    %1825 = vmatprep.subr.mxu0 0.0
    %1826 = vmatpush1.xpose.msra.mxu0 0.0
    %1827 = vmatprep.subr.mxu0 0.0
    %1828 = vmatpush1.xpose.msra.mxu0 0.0
    %1829 = vmatprep.subr.mxu0 0.0
    %1830 = vmatpush1.xpose.msra.mxu0 0.0
    %1831 = vmatprep.subr.mxu0 0.0
    %1832 = vmatpush1.xpose.msra.mxu0 0.0
    %1833 = vmatprep.subr.mxu0 0.0
    %1834 = vmatpush1.xpose.msra.mxu0 0.0
    %1835 = vmatprep.subr.mxu0 0.0
    %1836 = vmatpush1.xpose.msra.mxu0 0.0
    %1837 = vmatprep.subr.mxu0 0.0
    %1838 = vmatpush1.xpose.msra.mxu0 0.0
    %1839 = vmatprep.subr.mxu0 0.0
    %1840 = vmatpush1.xpose.msra.mxu0 0.0
    %1841 = vmatprep.subr.mxu0 0.0
    %1842 = vmatpush1.xpose.msra.mxu0 0.0
    %1843 = vmatprep.subr.mxu0 0.0
    %1844 = vmatpush1.xpose.msra.mxu0 0.0
    %1845 = vmatprep.mubr.f32.mxu0 0.0
    %1846 = vmatmul.mubr.f32.gmra.mrb[0].mxu0 %v1770
    %v1847 = vpop.f32.mrb[0].mxu0
    %v1848 = vadd.f32 0.0, %v1847
    %v1849 = vpop.f32.mrb[0].mxu0
    %1850 = vmatprep.mubr.f32.mxu0 0.0
    %1851 = vmatmul.mubr.f32.gmra.mrb[0].mxu0 %v1773
    %v1852 = vpop.f32.mrb[0].mxu0
    %v1853 = vadd.f32 0.0, %v1852
    %v1854 = vpop.f32.mrb[0].mxu0
    %1855 = vdwg.mxu0
    %v1856 = vmul.f32 %v1848, 0.35355338
    %v1857 = vmul.f32 %v1853, 0.35355338
    %v1858 = vadd.f32 %v1856, %v237
    %v1859 = vadd.f32 %v1857, %v238
    %v1860 = vsel %vm531, %v1858, -inf
    %1861 = vmax.xlane.f32.xlu0 %v1860
    %v1862 = vpop.xlane.xlu0 %1861
    %v1863 = vsel %vm531, %v1859, -inf
    %1864 = vmax.xlane.f32.xlu0 %v1863
    %v1865 = vpop.xlane.xlu0 %1864
    %v1866 = vsub.f32 %v1858, %v1862
    %v1867 = vsub.f32 %v1859, %v1865
    %v1868 = vmul.f32 %v1866, 1.442695
    %v1869 = vpow.pop %v1868
    %v1870 = vmul.f32 %v1867, 1.442695
    %v1871 = vpow.pop %v1870
    %v1872 = vsel %vm531, %v1869, 0.0
    %1873 = vadd.xlane.f32.xlu0 %v1872
    %v1874 = vpop.xlane.xlu0 %1873
    %v1875 = vsel %vm531, %v1871, 0.0
    %1876 = vadd.xlane.f32.xlu0 %v1875
    %v1877 = vpop.xlane.xlu0 %1876
    %v1878 = vrcp.pop %v1874
    %v1879 = vrcp.pop %v1877
    %v1880 = vmul.f32 %v1869, %v1878
    %v1881 = vmul.f32 %v1871, %v1879
    %v1883 = vsel %vm531, %v1880, 0
    %v1886 = vsel %vm531, %v1881, 0
    %1888 = vmatprep.subr.mxu0 0.0
    %1889 = vmatpush1.msra.mxu0 %v1763
    %1890 = vmatprep.subr.mxu0 0.0
    %1891 = vmatpush1.msra.mxu0 %v1766
    %1892 = vmatprep.subr.mxu0 0.0
    %1893 = vmatpush1.msra.mxu0 0.0
    %1894 = vmatprep.subr.mxu0 0.0
    %1895 = vmatpush1.msra.mxu0 0.0
    %1896 = vmatprep.subr.mxu0 0.0
    %1897 = vmatpush1.msra.mxu0 0.0
    %1898 = vmatprep.subr.mxu0 0.0
    %1899 = vmatpush1.msra.mxu0 0.0
    %1900 = vmatprep.subr.mxu0 0.0
    %1901 = vmatpush1.msra.mxu0 0.0
    %1902 = vmatprep.subr.mxu0 0.0
    %1903 = vmatpush1.msra.mxu0 0.0
    %1904 = vmatprep.subr.mxu0 0.0
    %1905 = vmatpush1.msra.mxu0 0.0
    %1906 = vmatprep.subr.mxu0 0.0
    %1907 = vmatpush1.msra.mxu0 0.0
    %1908 = vmatprep.subr.mxu0 0.0
    %1909 = vmatpush1.msra.mxu0 0.0
    %1910 = vmatprep.subr.mxu0 0.0
    %1911 = vmatpush1.msra.mxu0 0.0
    %1912 = vmatprep.subr.mxu0 0.0
    %1913 = vmatpush1.msra.mxu0 0.0
    %1914 = vmatprep.subr.mxu0 0.0
    %1915 = vmatpush1.msra.mxu0 0.0
    %1916 = vmatprep.subr.mxu0 0.0
    %1917 = vmatpush1.msra.mxu0 0.0
    %1918 = vmatprep.subr.mxu0 0.0
    %1919 = vmatpush1.msra.mxu0 0.0
    %1920 = vmatprep.subr.mxu0 0.0
    %1921 = vmatpush1.msra.mxu0 0.0
    %1922 = vmatprep.subr.mxu0 0.0
    %1923 = vmatpush1.msra.mxu0 0.0
    %1924 = vmatprep.subr.mxu0 0.0
    %1925 = vmatpush1.msra.mxu0 0.0
    %1926 = vmatprep.subr.mxu0 0.0
    %1927 = vmatpush1.msra.mxu0 0.0
    %1928 = vmatprep.subr.mxu0 0.0
    %1929 = vmatpush1.msra.mxu0 0.0
    %1930 = vmatprep.subr.mxu0 0.0
    %1931 = vmatpush1.msra.mxu0 0.0
    %1932 = vmatprep.subr.mxu0 0.0
    %1933 = vmatpush1.msra.mxu0 0.0
    %1934 = vmatprep.subr.mxu0 0.0
    %1935 = vmatpush1.msra.mxu0 0.0
    %1936 = vmatprep.subr.mxu0 0.0
    %1937 = vmatpush1.msra.mxu0 0.0
    %1938 = vmatprep.subr.mxu0 0.0
    %1939 = vmatpush1.msra.mxu0 0.0
    %1940 = vmatprep.subr.mxu0 0.0
    %1941 = vmatpush1.msra.mxu0 0.0
    %1942 = vmatprep.subr.mxu0 0.0
    %1943 = vmatpush1.msra.mxu0 0.0
    %1944 = vmatprep.subr.mxu0 0.0
    %1945 = vmatpush1.msra.mxu0 0.0
    %1946 = vmatprep.subr.mxu0 0.0
    %1947 = vmatpush1.msra.mxu0 0.0
    %1948 = vmatprep.subr.mxu0 0.0
    %1949 = vmatpush1.msra.mxu0 0.0
    %1950 = vmatprep.subr.mxu0 0.0
    %1951 = vmatpush1.msra.mxu0 0.0
    %1952 = vmatprep.mubr.f32.mxu0 0.0
    %1953 = vmatmul.mubr.f32.gmra.mrb[0].mxu0 %v1883
    %v1954 = vpop.f32.mrb[0].mxu0
    %v1955 = vadd.f32 0.0, %v1954
    %v1956 = vpop.f32.mrb[0].mxu0
    %1957 = vmatprep.mubr.f32.mxu0 0.0
    %1958 = vmatmul.mubr.f32.gmra.mrb[0].mxu0 %v1886
    %v1959 = vpop.f32.mrb[0].mxu0
    %v1960 = vadd.f32 0.0, %v1959
    %v1961 = vpop.f32.mrb[0].mxu0
    %1962 = vdwg.mxu0
    %v1963 = vpack.c.bf16 %v1960, %v1955
    %s1964 = scalar_lea.vmem %s4, 12
    %v1965 = vld [vmem:[%s1964] sm:$0xf]
    %v1967 = vsel %vm439, %v1963, 0
    %v1970 = vsel %vm1035, %v1965, 0
    %1972 = vmatprep.subr.bf16.mxu0 0
    %1973 = vmatpush1.bf16.msra.mxu0 %v1970
    %1974 = vmatprep.subr.bf16.mxu0 0
    %1975 = vmatpush1.bf16.msra.mxu0 0
    %1976 = vmatprep.subr.bf16.mxu0 0
    %1977 = vmatpush1.bf16.msra.mxu0 0
    %1978 = vmatprep.subr.bf16.mxu0 0
    %1979 = vmatpush1.bf16.msra.mxu0 0
    %1980 = vmatprep.subr.bf16.mxu0 0
    %1981 = vmatpush1.bf16.msra.mxu0 0
    %1982 = vmatprep.subr.bf16.mxu0 0
    %1983 = vmatpush1.bf16.msra.mxu0 0
    %1984 = vmatprep.subr.bf16.mxu0 0
    %1985 = vmatpush1.bf16.msra.mxu0 0
    %1986 = vmatprep.subr.bf16.mxu0 0
    %1987 = vmatpush1.bf16.msra.mxu0 0
    %1988 = vmatprep.subr.bf16.mxu0 0
    %1989 = vmatpush1.bf16.msra.mxu0 0
    %1990 = vmatprep.subr.bf16.mxu0 0
    %1991 = vmatpush1.bf16.msra.mxu0 0
    %1992 = vmatprep.subr.bf16.mxu0 0
    %1993 = vmatpush1.bf16.msra.mxu0 0
    %1994 = vmatprep.subr.bf16.mxu0 0
    %1995 = vmatpush1.bf16.msra.mxu0 0
    %1996 = vmatprep.subr.bf16.mxu0 0
    %1997 = vmatpush1.bf16.msra.mxu0 0
    %1998 = vmatprep.subr.bf16.mxu0 0
    %1999 = vmatpush1.bf16.msra.mxu0 0
    %2000 = vmatprep.subr.bf16.mxu0 0
    %2001 = vmatpush1.bf16.msra.mxu0 0
    %2002 = vmatprep.subr.bf16.mxu0 0
    %2003 = vmatpush1.bf16.msra.mxu0 0
    %2004 = vmatprep.mubr.bf16.mxu0 0
    %2005 = vmatmul.mubr.bf16.gmra.mrb[0].mxu0 %v1967
    %v2006 = vpop.f32.mrb[0].mxu0
    %v2007 = vadd.f32 0.0, %v2006
    %v2008 = vpop.f32.mrb[0].mxu0
    %v2009 = vpop.f32.mrb[0].mxu0
    %v2010 = vadd.f32 0.0, %v2009
    %v2011 = vpop.f32.mrb[0].mxu0
    %2012 = vdwg.mxu0
    %v2013 = vadd.f32 %v1569, %v2007
    %v2014 = vadd.f32 %v1570, %v2010
    %v2015 = vld [vmem:[%s9 + $0x2] sm:$0x1]
    %v2016 = vlaneseq
    %v2017 = vshrl.u32 %v2016, 7
    %v2018 = vsub.s32 0, %v2017
    %v2019 = vrot.slane %v2015, %v2018
    %v2020 = vadd.f32 %v2013, %v2019
    %v2021 = vadd.f32 %v2014, %v2019
    %v2022 = vadd.f32 %v217, %v2020
    %v2023 = vadd.f32 %v218, %v2021
    %v2024 = vld [vmem:[%s9 + $0x3] sm:$0x1]
    %v2025 = vld [vmem:[%s9 + $0x4] sm:$0x1]
    %v2026 = vsel %vm179, %v2022, 0.0
    %2027 = vadd.xlane.f32.xlu0 %v2026
    %v2028 = vpop.xlane.xlu0 %2027
    %v2029 = vsel %vm179, %v2023, 0.0
    %2030 = vadd.xlane.f32.xlu0 %v2029
    %v2031 = vpop.xlane.xlu0 %2030
    %v2032 = vmul.f32 %v2028, %v186
    %v2033 = vmul.f32 %v2031, %v186
    %v2034 = vsub.f32 %v2022, %v2032
    %v2035 = vsub.f32 %v2023, %v2033
    %v2036 = vmul.f32 %v2034, %v2034
    %v2037 = vmul.f32 %v2035, %v2035
    %v2038 = vsel %vm179, %v2036, 0.0
    %2039 = vadd.xlane.f32.xlu0 %v2038
    %v2040 = vpop.xlane.xlu0 %2039
    %v2041 = vsel %vm179, %v2037, 0.0
    %2042 = vadd.xlane.f32.xlu0 %v2041
    %v2043 = vpop.xlane.xlu0 %2042
    %v2044 = vmul.f32 %v2040, %v186
    %v2045 = vmul.f32 %v2043, %v186
    %v2046 = vadd.f32 %v2044, 1e-12
    %v2047 = vadd.f32 %v2045, 1e-12
    %v2048 = vrsqrt.pop %v2046
    %v2049 = vrsqrt.pop %v2047
    %v2050 = vmul.f32 %v2034, %v2048
    %v2051 = vmul.f32 %v2035, %v2049
    %v2052 = vlaneseq
    %v2053 = vshrl.u32 %v2052, 7
    %v2054 = vsub.s32 0, %v2053
    %v2055 = vrot.slane %v2024, %v2054
    %v2056 = vmul.f32 %v2050, %v2055
    %v2057 = vmul.f32 %v2051, %v2055
    %v2058 = vlaneseq
    %v2059 = vshrl.u32 %v2058, 7
    %v2060 = vsub.s32 0, %v2059
    %v2061 = vrot.slane %v2025, %v2060
    %v2062 = vadd.f32 %v2056, %v2061
    %v2063 = vadd.f32 %v2057, %v2061
    %v2064 = vpack.c.bf16 %v2063, %v2062
    %v2065 = vld [vmem:[%s5] sm:$0xf]
    %v2066 = vld [vmem:[%s5 + $0x4] sm:$0xf]
    %v2067 = vld [vmem:[%s5 + $0x8] sm:$0xf]
    %v2068 = vld [vmem:[%s5 + $0xc] sm:$0xf]
    %v2069 = vld [vmem:[%s9 + $0x5] sm:$0x1]
    %v2070 = vlaneseq
    %v2071 = vshrl.u32 %v2070, 7
    %v2072 = vsub.s32 0, %v2071
    %v2073 = vrot.slane %v2069, %v2072
    %v2078 = vunpack.c.l.b16 %v2065
    %v2079 = vunpack.c.l.b16 %v2066
    %v2080 = vunpack.c.l.b16 %v2067
    %v2081 = vunpack.c.l.b16 %v2068
    %v2082 = vpack.c.b16 %v2079, %v2078
    %v2083 = vpack.c.b16 %v2081, %v2080
    %v2087 = vsel %vm179, %v2064, 0
    %2089 = vmatprep.subr.bf16.mxu0 0
    %2090 = vmatpush1.bf16.msra.mxu0 %v2082
    %2091 = vmatprep.subr.bf16.mxu0 0
    %2092 = vmatpush1.bf16.msra.mxu0 %v2083
    %2093 = vmatprep.subr.bf16.mxu0 0
    %2094 = vmatpush1.bf16.msra.mxu0 0
    %2095 = vmatprep.subr.bf16.mxu0 0
    %2096 = vmatpush1.bf16.msra.mxu0 0
    %2097 = vmatprep.subr.bf16.mxu0 0
    %2098 = vmatpush1.bf16.msra.mxu0 0
    %2099 = vmatprep.subr.bf16.mxu0 0
    %2100 = vmatpush1.bf16.msra.mxu0 0
    %2101 = vmatprep.subr.bf16.mxu0 0
    %2102 = vmatpush1.bf16.msra.mxu0 0
    %2103 = vmatprep.subr.bf16.mxu0 0
    %2104 = vmatpush1.bf16.msra.mxu0 0
    %2105 = vmatprep.subr.bf16.mxu0 0
    %2106 = vmatpush1.bf16.msra.mxu0 0
    %2107 = vmatprep.subr.bf16.mxu0 0
    %2108 = vmatpush1.bf16.msra.mxu0 0
    %2109 = vmatprep.subr.bf16.mxu0 0
    %2110 = vmatpush1.bf16.msra.mxu0 0
    %2111 = vmatprep.subr.bf16.mxu0 0
    %2112 = vmatpush1.bf16.msra.mxu0 0
    %2113 = vmatprep.subr.bf16.mxu0 0
    %2114 = vmatpush1.bf16.msra.mxu0 0
    %2115 = vmatprep.subr.bf16.mxu0 0
    %2116 = vmatpush1.bf16.msra.mxu0 0
    %2117 = vmatprep.subr.bf16.mxu0 0
    %2118 = vmatpush1.bf16.msra.mxu0 0
    %2119 = vmatprep.subr.bf16.mxu0 0
    %2120 = vmatpush1.bf16.msra.mxu0 0
    %2121 = vmatprep.mubr.bf16.mxu0 0
    %2122 = vmatmul.mubr.bf16.gmra.mrb[0].mxu0 %v2087
    %v2123 = vpop.f32.mrb[0].mxu0
    %v2124 = vadd.f32 %v2073, %v2123
    %v2125 = vpop.f32.mrb[0].mxu0
    %v2126 = vpop.f32.mrb[0].mxu0
    %v2127 = vadd.f32 %v2073, %v2126
    %v2128 = vpop.f32.mrb[0].mxu0
    %2129 = vdwg.mxu0
    %v2130 = vmul.f32 %v2124, 0.5
    %v2131 = vmul.f32 %v2127, 0.5
    %v2132 = vmul.f32 %v2124, 0.044715
    %v2133 = vmul.f32 %v2127, 0.044715
    %v2134 = vmul.f32 %v2132, %v2124
    %v2135 = vmul.f32 %v2133, %v2127
    %v2136 = vmul.f32 %v2134, %v2124
    %v2137 = vmul.f32 %v2135, %v2127
    %v2138 = vadd.f32 %v2124, %v2136
    %v2139 = vadd.f32 %v2127, %v2137
    %v2140 = vmul.f32 %v2138, 0.7978846
    %v2141 = vmul.f32 %v2139, 0.7978846
    %v2142 = vtanh.pop %v2140
    %v2143 = vtanh.pop %v2141
    %v2144 = vadd.f32 %v2142, 1.0
    %v2145 = vadd.f32 %v2143, 1.0
    %v2146 = vmul.f32 %v2130, %v2144
    %v2147 = vmul.f32 %v2131, %v2145
    %v2148 = vpack.c.bf16 %v2147, %v2146
    %v2149 = vld [vmem:[%s6] sm:$0xf]
    %v2150 = vld [vmem:[%s6 + $0x4] sm:$0xf]
    %v2151 = vld [vmem:[%s6 + $0x8] sm:$0xf]
    %v2152 = vld [vmem:[%s6 + $0xc] sm:$0xf]
    %v2153 = vld [vmem:[%s6 + $0x10] sm:$0xf]
    %v2154 = vld [vmem:[%s6 + $0x14] sm:$0xf]
    %v2155 = vld [vmem:[%s6 + $0x18] sm:$0xf]
    %v2156 = vld [vmem:[%s6 + $0x1c] sm:$0xf]
    %v2157 = vld [vmem:[%s6 + $0x20] sm:$0xf]
    %v2158 = vld [vmem:[%s6 + $0x24] sm:$0xf]
    %v2159 = vld [vmem:[%s6 + $0x28] sm:$0xf]
    %v2160 = vld [vmem:[%s6 + $0x2c] sm:$0xf]
    %v2161 = vld [vmem:[%s6 + $0x30] sm:$0xf]
    %v2162 = vld [vmem:[%s6 + $0x34] sm:$0xf]
    %v2163 = vld [vmem:[%s6 + $0x38] sm:$0xf]
    %v2164 = vld [vmem:[%s6 + $0x3c] sm:$0xf]
    %v2165 = vld [vmem:[%s9 + $0x6] sm:$0x1]
    %v2166 = vlaneseq
    %v2167 = vshrl.u32 %v2166, 7
    %v2168 = vsub.s32 0, %v2167
    %v2169 = vrot.slane %v2165, %v2168
    %v2186 = vunpack.c.l.b16 %v2149
    %v2187 = vunpack.c.l.b16 %v2150
    %v2188 = vunpack.c.l.b16 %v2151
    %v2189 = vunpack.c.l.b16 %v2152
    %v2190 = vunpack.c.l.b16 %v2153
    %v2191 = vunpack.c.l.b16 %v2154
    %v2192 = vunpack.c.l.b16 %v2155
    %v2193 = vunpack.c.l.b16 %v2156
    %v2194 = vunpack.c.l.b16 %v2157
    %v2195 = vunpack.c.l.b16 %v2158
    %v2196 = vunpack.c.l.b16 %v2159
    %v2197 = vunpack.c.l.b16 %v2160
    %v2198 = vunpack.c.l.b16 %v2161
    %v2199 = vunpack.c.l.b16 %v2162
    %v2200 = vunpack.c.l.b16 %v2163
    %v2201 = vunpack.c.l.b16 %v2164
    %v2202 = vpack.c.b16 %v2187, %v2186
    %v2203 = vpack.c.b16 %v2189, %v2188
    %v2204 = vpack.c.b16 %v2191, %v2190
    %v2205 = vpack.c.b16 %v2193, %v2192
    %v2206 = vpack.c.b16 %v2195, %v2194
    %v2207 = vpack.c.b16 %v2197, %v2196
    %v2208 = vpack.c.b16 %v2199, %v2198
    %v2209 = vpack.c.b16 %v2201, %v2200
    %2218 = vmatprep.subr.bf16.mxu0 0
    %2219 = vmatpush1.bf16.msra.mxu0 %v2202
    %2220 = vmatprep.subr.bf16.mxu0 0
    %2221 = vmatpush1.bf16.msra.mxu0 %v2203
    %2222 = vmatprep.subr.bf16.mxu0 0
    %2223 = vmatpush1.bf16.msra.mxu0 %v2204
    %2224 = vmatprep.subr.bf16.mxu0 0
    %2225 = vmatpush1.bf16.msra.mxu0 %v2205
    %2226 = vmatprep.subr.bf16.mxu0 0
    %2227 = vmatpush1.bf16.msra.mxu0 %v2206
    %2228 = vmatprep.subr.bf16.mxu0 0
    %2229 = vmatpush1.bf16.msra.mxu0 %v2207
    %2230 = vmatprep.subr.bf16.mxu0 0
    %2231 = vmatpush1.bf16.msra.mxu0 %v2208
    %2232 = vmatprep.subr.bf16.mxu0 0
    %2233 = vmatpush1.bf16.msra.mxu0 %v2209
    %2234 = vmatprep.subr.bf16.mxu0 0
    %2235 = vmatpush1.bf16.msra.mxu0 0
    %2236 = vmatprep.subr.bf16.mxu0 0
    %2237 = vmatpush1.bf16.msra.mxu0 0
    %2238 = vmatprep.subr.bf16.mxu0 0
    %2239 = vmatpush1.bf16.msra.mxu0 0
    %2240 = vmatprep.subr.bf16.mxu0 0
    %2241 = vmatpush1.bf16.msra.mxu0 0
    %2242 = vmatprep.subr.bf16.mxu0 0
    %2243 = vmatpush1.bf16.msra.mxu0 0
    %2244 = vmatprep.subr.bf16.mxu0 0
    %2245 = vmatpush1.bf16.msra.mxu0 0
    %2246 = vmatprep.subr.bf16.mxu0 0
    %2247 = vmatpush1.bf16.msra.mxu0 0
    %2248 = vmatprep.subr.bf16.mxu0 0
    %2249 = vmatpush1.bf16.msra.mxu0 0
    %2250 = vmatprep.mubr.bf16.mxu0 0
    %2251 = vmatmul.mubr.bf16.gmra.mrb[0].mxu0 %v2148
    %v2252 = vpop.f32.mrb[0].mxu0
    %v2253 = vadd.f32 %v2169, %v2252
    %v2254 = vpop.f32.mrb[0].mxu0
    %v2255 = vpop.f32.mrb[0].mxu0
    %v2256 = vadd.f32 %v2169, %v2255
    %v2257 = vpop.f32.mrb[0].mxu0
    %2258 = vdwg.mxu0
    %v2259 = vadd.f32 %v2062, %v2253
    %v2260 = vadd.f32 %v2063, %v2256
    %v2261 = vld [vmem:[%s9 + $0x7] sm:$0x1]
    %v2262 = vld [vmem:[%s9 + $0x8] sm:$0x1]
    %v2263 = vsel %vm179, %v2259, 0.0
    %2264 = vadd.xlane.f32.xlu0 %v2263
    %v2265 = vpop.xlane.xlu0 %2264
    %v2266 = vsel %vm179, %v2260, 0.0
    %2267 = vadd.xlane.f32.xlu0 %v2266
    %v2268 = vpop.xlane.xlu0 %2267
    %v2269 = vmul.f32 %v2265, %v186
    %v2270 = vmul.f32 %v2268, %v186
    %v2271 = vsub.f32 %v2259, %v2269
    %v2272 = vsub.f32 %v2260, %v2270
    %v2273 = vmul.f32 %v2271, %v2271
    %v2274 = vmul.f32 %v2272, %v2272
    %v2275 = vsel %vm179, %v2273, 0.0
    %2276 = vadd.xlane.f32.xlu0 %v2275
    %v2277 = vpop.xlane.xlu0 %2276
    %v2278 = vsel %vm179, %v2274, 0.0
    %2279 = vadd.xlane.f32.xlu0 %v2278
    %v2280 = vpop.xlane.xlu0 %2279
    %v2281 = vmul.f32 %v2277, %v186
    %v2282 = vmul.f32 %v2280, %v186
    %v2283 = vadd.f32 %v2281, 1e-12
    %v2284 = vadd.f32 %v2282, 1e-12
    %v2285 = vrsqrt.pop %v2283
    %v2286 = vrsqrt.pop %v2284
    %v2287 = vmul.f32 %v2271, %v2285
    %v2288 = vmul.f32 %v2272, %v2286
    %v2289 = vlaneseq
    %v2290 = vshrl.u32 %v2289, 7
    %v2291 = vsub.s32 0, %v2290
    %v2292 = vrot.slane %v2261, %v2291
    %v2293 = vmul.f32 %v2287, %v2292
    %v2294 = vmul.f32 %v2288, %v2292
    %v2295 = vlaneseq
    %v2296 = vshrl.u32 %v2295, 7
    %v2297 = vsub.s32 0, %v2296
    %v2298 = vrot.slane %v2262, %v2297
    %v2299 = vadd.f32 %v2293, %v2298
    %v2300 = vadd.f32 %v2294, %v2298
    %v2301 = vlaneseq
    %v2302 = vshrl.u32 %v2301, 7
    %v2303 = vmul.u32 %v2302, 8
    %vm2304 = vcmp.eq.s32.totalorder %v40, %v2303
    %v2305 = vsel %vm2304, 1.0, 0.0
    %v2307 = vsel %vm531, %v2305, 0
    %2309 = vmatprep.subr.mxu0 0.0
    %2310 = vmatpush1.msra.mxu0 %v2299
    %2311 = vmatprep.subr.mxu0 0.0
    %2312 = vmatpush1.msra.mxu0 %v2300
    %2313 = vmatprep.subr.mxu0 0.0
    %2314 = vmatpush1.msra.mxu0 0.0
    %2315 = vmatprep.subr.mxu0 0.0
    %2316 = vmatpush1.msra.mxu0 0.0
    %2317 = vmatprep.subr.mxu0 0.0
    %2318 = vmatpush1.msra.mxu0 0.0
    %2319 = vmatprep.subr.mxu0 0.0
    %2320 = vmatpush1.msra.mxu0 0.0
    %2321 = vmatprep.subr.mxu0 0.0
    %2322 = vmatpush1.msra.mxu0 0.0
    %2323 = vmatprep.subr.mxu0 0.0
    %2324 = vmatpush1.msra.mxu0 0.0
    %2325 = vmatprep.subr.mxu0 0.0
    %2326 = vmatpush1.msra.mxu0 0.0
    %2327 = vmatprep.subr.mxu0 0.0
    %2328 = vmatpush1.msra.mxu0 0.0
    %2329 = vmatprep.subr.mxu0 0.0
    %2330 = vmatpush1.msra.mxu0 0.0
    %2331 = vmatprep.subr.mxu0 0.0
    %2332 = vmatpush1.msra.mxu0 0.0
    %2333 = vmatprep.subr.mxu0 0.0
    %2334 = vmatpush1.msra.mxu0 0.0
    %2335 = vmatprep.subr.mxu0 0.0
    %2336 = vmatpush1.msra.mxu0 0.0
    %2337 = vmatprep.subr.mxu0 0.0
    %2338 = vmatpush1.msra.mxu0 0.0
    %2339 = vmatprep.subr.mxu0 0.0
    %2340 = vmatpush1.msra.mxu0 0.0
    %2341 = vmatprep.subr.mxu0 0.0
    %2342 = vmatpush1.msra.mxu0 0.0
    %2343 = vmatprep.subr.mxu0 0.0
    %2344 = vmatpush1.msra.mxu0 0.0
    %2345 = vmatprep.subr.mxu0 0.0
    %2346 = vmatpush1.msra.mxu0 0.0
    %2347 = vmatprep.subr.mxu0 0.0
    %2348 = vmatpush1.msra.mxu0 0.0
    %2349 = vmatprep.subr.mxu0 0.0
    %2350 = vmatpush1.msra.mxu0 0.0
    %2351 = vmatprep.subr.mxu0 0.0
    %2352 = vmatpush1.msra.mxu0 0.0
    %2353 = vmatprep.subr.mxu0 0.0
    %2354 = vmatpush1.msra.mxu0 0.0
    %2355 = vmatprep.subr.mxu0 0.0
    %2356 = vmatpush1.msra.mxu0 0.0
    %2357 = vmatprep.subr.mxu0 0.0
    %2358 = vmatpush1.msra.mxu0 0.0
    %2359 = vmatprep.subr.mxu0 0.0
    %2360 = vmatpush1.msra.mxu0 0.0
    %2361 = vmatprep.subr.mxu0 0.0
    %2362 = vmatpush1.msra.mxu0 0.0
    %2363 = vmatprep.subr.mxu0 0.0
    %2364 = vmatpush1.msra.mxu0 0.0
    %2365 = vmatprep.subr.mxu0 0.0
    %2366 = vmatpush1.msra.mxu0 0.0
    %2367 = vmatprep.subr.mxu0 0.0
    %2368 = vmatpush1.msra.mxu0 0.0
    %2369 = vmatprep.subr.mxu0 0.0
    %2370 = vmatpush1.msra.mxu0 0.0
    %2371 = vmatprep.subr.mxu0 0.0
    %2372 = vmatpush1.msra.mxu0 0.0
    %2373 = vmatprep.mubr.f32.mxu0 0.0
    %2374 = vmatmul.mubr.f32.gmra.mrb[0].mxu0 %v2307
    %v2375 = vpop.f32.mrb[0].mxu0
    %v2376 = vadd.f32 0.0, %v2375
    %v2377 = vpop.f32.mrb[0].mxu0
    %2378 = vdwg.mxu0
    %v2379 = vpack.c.bf16 %v2376, %v2376
    %v2380 = vld [vmem:[%s7] sm:$0xf]
    %v2381 = vld [vmem:[%s7 + $0x4] sm:$0xf]
    %v2382 = vld [vmem:[%s7 + $0x8] sm:$0xf]
    %v2383 = vld [vmem:[%s7 + $0xc] sm:$0xf]
    %v2384 = vld [vmem:[%s9 + $0x9] sm:$0x1]
    %v2385 = vlaneseq
    %v2386 = vshrl.u32 %v2385, 7
    %v2387 = vsub.s32 0, %v2386
    %v2388 = vrot.slane %v2384, %v2387
    %v2393 = vunpack.c.l.b16 %v2380
    %v2394 = vunpack.c.l.b16 %v2381
    %v2395 = vunpack.c.l.b16 %v2382
    %v2396 = vunpack.c.l.b16 %v2383
    %v2397 = vpack.c.b16 %v2394, %v2393
    %v2398 = vpack.c.b16 %v2396, %v2395
    %v2402 = vsel %vm179, %v2379, 0
    %2404 = vmatprep.subr.bf16.mxu0 0
    %2405 = vmatpush1.bf16.msra.mxu0 %v2397
    %2406 = vmatprep.subr.bf16.mxu0 0
    %2407 = vmatpush1.bf16.msra.mxu0 %v2398
    %2408 = vmatprep.subr.bf16.mxu0 0
    %2409 = vmatpush1.bf16.msra.mxu0 0
    %2410 = vmatprep.subr.bf16.mxu0 0
    %2411 = vmatpush1.bf16.msra.mxu0 0
    %2412 = vmatprep.subr.bf16.mxu0 0
    %2413 = vmatpush1.bf16.msra.mxu0 0
    %2414 = vmatprep.subr.bf16.mxu0 0
    %2415 = vmatpush1.bf16.msra.mxu0 0
    %2416 = vmatprep.subr.bf16.mxu0 0
    %2417 = vmatpush1.bf16.msra.mxu0 0
    %2418 = vmatprep.subr.bf16.mxu0 0
    %2419 = vmatpush1.bf16.msra.mxu0 0
    %2420 = vmatprep.subr.bf16.mxu0 0
    %2421 = vmatpush1.bf16.msra.mxu0 0
    %2422 = vmatprep.subr.bf16.mxu0 0
    %2423 = vmatpush1.bf16.msra.mxu0 0
    %2424 = vmatprep.subr.bf16.mxu0 0
    %2425 = vmatpush1.bf16.msra.mxu0 0
    %2426 = vmatprep.subr.bf16.mxu0 0
    %2427 = vmatpush1.bf16.msra.mxu0 0
    %2428 = vmatprep.subr.bf16.mxu0 0
    %2429 = vmatpush1.bf16.msra.mxu0 0
    %2430 = vmatprep.subr.bf16.mxu0 0
    %2431 = vmatpush1.bf16.msra.mxu0 0
    %2432 = vmatprep.subr.bf16.mxu0 0
    %2433 = vmatpush1.bf16.msra.mxu0 0
    %2434 = vmatprep.subr.bf16.mxu0 0
    %2435 = vmatpush1.bf16.msra.mxu0 0
    %2436 = vmatprep.mubr.bf16.mxu0 0
    %2437 = vmatmul.mubr.bf16.gmra.mrb[0].mxu0 %v2402
    %v2438 = vpop.f32.mrb[0].mxu0
    %v2439 = vadd.f32 %v2388, %v2438
    %v2440 = vpop.f32.mrb[0].mxu0
    %v2441 = vpop.f32.mrb[0].mxu0
    %v2442 = vpop.f32.mrb[0].mxu0
    %2443 = vdwg.mxu0
    %v2444 = vtanh.pop %v2439
    %v2445 = vpack.c.bf16 %v2444, %v2444
    %v2446 = vld [vmem:[%s8] sm:$0xf]
    %v2447 = vld [vmem:[%s8 + $0x4] sm:$0xf]
    %v2448 = vld [vmem:[%s8 + $0x8] sm:$0xf]
    %v2449 = vld [vmem:[%s8 + $0xc] sm:$0xf]
    %v2450 = vld [vmem:[%s9 + $0xa] sm:$0x1]
    %v2451 = vlaneseq
    %v2452 = vshrl.u32 %v2451, 7
    %v2453 = vsub.s32 0, %v2452
    %v2454 = vrot.slane %v2450, %v2453
    %v2459 = vunpack.c.l.b16 %v2446
    %v2460 = vunpack.c.l.b16 %v2447
    %v2461 = vunpack.c.l.b16 %v2448
    %v2462 = vunpack.c.l.b16 %v2449
    %v2463 = vpack.c.b16 %v2460, %v2459
    %v2464 = vpack.c.b16 %v2462, %v2461
    %v2468 = vsel %vm179, %v2445, 0
    %2470 = vmatprep.subr.bf16.mxu0 0
    %2471 = vmatpush1.bf16.msra.mxu0 %v2463
    %2472 = vmatprep.subr.bf16.mxu0 0
    %2473 = vmatpush1.bf16.msra.mxu0 %v2464
    %2474 = vmatprep.subr.bf16.mxu0 0
    %2475 = vmatpush1.bf16.msra.mxu0 0
    %2476 = vmatprep.subr.bf16.mxu0 0
    %2477 = vmatpush1.bf16.msra.mxu0 0
    %2478 = vmatprep.subr.bf16.mxu0 0
    %2479 = vmatpush1.bf16.msra.mxu0 0
    %2480 = vmatprep.subr.bf16.mxu0 0
    %2481 = vmatpush1.bf16.msra.mxu0 0
    %2482 = vmatprep.subr.bf16.mxu0 0
    %2483 = vmatpush1.bf16.msra.mxu0 0
    %2484 = vmatprep.subr.bf16.mxu0 0
    %2485 = vmatpush1.bf16.msra.mxu0 0
    %2486 = vmatprep.subr.bf16.mxu0 0
    %2487 = vmatpush1.bf16.msra.mxu0 0
    %2488 = vmatprep.subr.bf16.mxu0 0
    %2489 = vmatpush1.bf16.msra.mxu0 0
    %2490 = vmatprep.subr.bf16.mxu0 0
    %2491 = vmatpush1.bf16.msra.mxu0 0
    %2492 = vmatprep.subr.bf16.mxu0 0
    %2493 = vmatpush1.bf16.msra.mxu0 0
    %2494 = vmatprep.subr.bf16.mxu0 0
    %2495 = vmatpush1.bf16.msra.mxu0 0
    %2496 = vmatprep.subr.bf16.mxu0 0
    %2497 = vmatpush1.bf16.msra.mxu0 0
    %2498 = vmatprep.subr.bf16.mxu0 0
    %2499 = vmatpush1.bf16.msra.mxu0 0
    %2500 = vmatprep.subr.bf16.mxu0 0
    %2501 = vmatpush1.bf16.msra.mxu0 0
    %2502 = vmatprep.mubr.bf16.mxu0 0
    %2503 = vmatmul.mubr.bf16.gmra.mrb[0].mxu0 %v2468
    %v2504 = vpop.f32.mrb[0].mxu0
    %v2505 = vadd.f32 %v2454, %v2504
    %v2506 = vpop.f32.mrb[0].mxu0
    %v2507 = vpop.f32.mrb[0].mxu0
    %v2508 = vpop.f32.mrb[0].mxu0
    %2509 = vdwg.mxu0
    %2510 = vst [vmem:[#allocation2] sm:$0x3] %v2505
    // Predicated region
    $region42: #{tpu_custom_call.1} parent=1 // pred_check
      _
    $region43: #{tpu_custom_call.1} parent=1 // pred_check_branch
      %2512 = sbr.rel (0) target = $region45
    $region44: #{tpu_custom_call.1} parent=1 // pred_region
      %s2514 = ssub.s32 32, 32
      %2515 = vsyncadd [#allocation3], %s2514
      %s2517 = sshll.u32 [#allocation2], 4
      %s2518 = int_to_ptr.vmem [resolvable:$true] %s2517
      %2520 = dma.vmem_to_hbm [thread:$0]  %s2518, 32, %s10, [#allocation3]
    $region45: #{tpu_custom_call.1} parent=1 // pred_fallthru
      _
    // Predicated region
    $region46: #{tpu_custom_call.1} parent=1 // pred_check
      _
    $region47: #{tpu_custom_call.1} parent=1 // pred_check_branch
      %2522 = sbr.rel (0) target = $region49
    $region48: #{tpu_custom_call.1} parent=1 // pred_region
      %2523 = dma.done [#allocation3], 32
    $region49: #{tpu_custom_call.1} parent=1 // pred_fallthru
      _
    %2524 = vsyncpa [#allocation3], 1

</llo_original>
